<compile_context>
chip_gen: v5e
topology: v5e:2x2
jax: 0.10.0
libtpu: 0.0.40
codegen_flags: <defaults>
</compile_context>

<pallas_src>
import functools

import jax
import jax.numpy as jnp
from jax.experimental import pallas as pl
from jax.experimental.pallas import tpu as pltpu

EPS = 1e-5
VMEM_LIMIT = 32 * 1024 * 1024  # explicit scoped-VMEM cap (fits v5e/v6e/v7x)


def _cparams():
    return pltpu.CompilerParams(dimension_semantics=("parallel",),
                                vmem_limit_bytes=VMEM_LIMIT)


# ----------------------------------------------------------------------------
# Pallas kernels (lane-dense: the large N*H*W axis is the last axis of the
# output; matmul inputs are bf16, accumulation + epilogue are f32)
# ----------------------------------------------------------------------------
def _gemm_relu_stats_kernel(x_ref, w_ref, b_ref, o_ref, s1_ref, s2_ref, *,
                            m_total, tile_m):
    """o = ReLU(w @ x + b), shape (Cout, tile_m).  Also emits per-tile,
    per-channel sum and sum-of-squares so training-mode BatchNorm statistics
    can be reduced across tiles/phases outside the kernel (two-pass BN)."""
    y = jnp.dot(w_ref[...], x_ref[...], preferred_element_type=jnp.float32)
    y = jnp.maximum(y + b_ref[...], 0.0)
    # Zero out lanes beyond the true M (padded last grid tile) so stats are
    # exact and any garbage in the padded input region cannot leak in.
    col = pl.program_id(0) * tile_m + jax.lax.broadcasted_iota(
        jnp.int32, y.shape, 1)
    y = jnp.where(col < m_total, y, 0.0)
    o_ref[...] = y
    s1_ref[0] = jnp.sum(y, axis=1, keepdims=True)
    s2_ref[0] = jnp.sum(y * y, axis=1, keepdims=True)


def _gemm_bias_kernel(x_ref, w_ref, b_ref, o_ref):
    """o = w @ x + b (final Conv2d: no ReLU / BatchNorm)."""
    y = jnp.dot(w_ref[...], x_ref[...], preferred_element_type=jnp.float32)
    o_ref[...] = y + b_ref[...]


def _scale_shift_kernel(y_ref, a_ref, c_ref, o_ref):
    """BatchNorm finalize pass: o = y * scale + shift (per-channel affine)."""
    o_ref[...] = y_ref[...] * a_ref[...] + c_ref[...]


def _linear_relu_bn_kernel(x_ref, w_ref, b_ref, g_ref, bt_ref, o_ref):
    """Fused Linear -> ReLU -> BatchNorm1d.  Tiled over output features; each
    feature's batch statistics are complete inside its own tile."""
    y = jnp.dot(x_ref[...], w_ref[...], preferred_element_type=jnp.float32)
    y = jnp.maximum(y + b_ref[...], 0.0)
    mean = jnp.mean(y, axis=0, keepdims=True)
    var = jnp.mean((y - mean) ** 2, axis=0, keepdims=True)  # biased (PyTorch)
    y = (y - mean) * jax.lax.rsqrt(var + EPS)
    o_ref[...] = y * g_ref[...] + bt_ref[...]


# ----------------------------------------------------------------------------
# Pallas wrappers
# ----------------------------------------------------------------------------
def _conv_gemm(patches, w2d, b, *, relu_stats, tile_m=1024):
    """(Cout, M) = w2d @ patches + b, tiled over M with a parallel grid.
    patches: (Ktot, M) bf16, w2d: (Cout, Ktot) bf16, b: (Cout,) f32."""
    ktot, m = patches.shape
    cout = w2d.shape[0]
    tm = m if m <= tile_m else tile_m
    n_t = pl.cdiv(m, tm)
    b2 = b.reshape(cout, 1).astype(jnp.float32)
    in_specs = [
        pl.BlockSpec((ktot, tm), lambda i: (0, i)),
        pl.BlockSpec((cout, ktot), lambda i: (0, 0)),
        pl.BlockSpec((cout, 1), lambda i: (0, 0)),
    ]
    if relu_stats:
        kernel = functools.partial(_gemm_relu_stats_kernel,
                                   m_total=m, tile_m=tm)
        out_shape = (
            jax.ShapeDtypeStruct((cout, m), jnp.float32),
            jax.ShapeDtypeStruct((n_t, cout, 1), jnp.float32),
            jax.ShapeDtypeStruct((n_t, cout, 1), jnp.float32),
        )
        out_specs = (
            pl.BlockSpec((cout, tm), lambda i: (0, i)),
            pl.BlockSpec((1, cout, 1), lambda i: (i, 0, 0)),
            pl.BlockSpec((1, cout, 1), lambda i: (i, 0, 0)),
        )
    else:
        kernel = _gemm_bias_kernel
        out_shape = jax.ShapeDtypeStruct((cout, m), jnp.float32)
        out_specs = pl.BlockSpec((cout, tm), lambda i: (0, i))
    return pl.pallas_call(
        kernel,
        out_shape=out_shape,
        grid=(n_t,),
        in_specs=in_specs,
        out_specs=out_specs,
        compiler_params=_cparams(),
    )(patches, w2d, b2)


def _scale_shift(y2d, scale, shift, *, tile_m=1024):
    c, m = y2d.shape
    tm = m if m <= tile_m else tile_m
    return pl.pallas_call(
        _scale_shift_kernel,
        out_shape=jax.ShapeDtypeStruct((c, m), jnp.float32),
        grid=(pl.cdiv(m, tm),),
        in_specs=[
            pl.BlockSpec((c, tm), lambda i: (0, i)),
            pl.BlockSpec((c, 1), lambda i: (0, 0)),
            pl.BlockSpec((c, 1), lambda i: (0, 0)),
        ],
        out_specs=pl.BlockSpec((c, tm), lambda i: (0, i)),
        compiler_params=_cparams(),
    )(y2d, scale.reshape(c, 1), shift.reshape(c, 1))


def linear_relu_bn(x, w, b, g, bt, *, tile_f=512):
    n, nd = x.shape
    f = w.shape[1]
    tf = f if f <= tile_f else tile_f
    return pl.pallas_call(
        _linear_relu_bn_kernel,
        out_shape=jax.ShapeDtypeStruct((n, f), jnp.float32),
        grid=(pl.cdiv(f, tf),),
        in_specs=[
            pl.BlockSpec((n, nd), lambda j: (0, 0)),
            pl.BlockSpec((nd, tf), lambda j: (0, j)),
            pl.BlockSpec((1, tf), lambda j: (0, j)),
            pl.BlockSpec((1, tf), lambda j: (0, j)),
            pl.BlockSpec((1, tf), lambda j: (0, j)),
        ],
        out_specs=pl.BlockSpec((n, tf), lambda j: (0, j)),
        compiler_params=_cparams(),
    )(x.astype(jnp.bfloat16), w.astype(jnp.bfloat16),
      b.reshape(1, -1), g.reshape(1, -1), bt.reshape(1, -1))


# ----------------------------------------------------------------------------
# Plain-JAX glue: layouts, sub-pixel phase geometry, im2col (transposed form)
# ----------------------------------------------------------------------------
def convtranspose_weight_to_flipped_hwio(w_t):
    # PyTorch ConvTranspose2d weight (Cin, Cout, K, K) -> equivalent stride-1
    # conv weight, HWIO, spatially flipped.
    return jnp.transpose(w_t, (2, 3, 0, 1))[::-1, ::-1, :, :]


def conv_weight_to_hwio(w):
    # PyTorch Conv2d weight (Cout, Cin, K, K) -> HWIO
    return jnp.transpose(w, (2, 3, 1, 0))


def _im2col_T(xp, th, tw):
    """xp: (Cin, N, Hp, Wp) f32 -> bf16 patch matrix (th*tw*Cin, N*Ho*Wo).
    Columns (n, ho, wo) become the lane axis of the GEMM output."""
    cin, n, hp, wp = xp.shape
    ho, wo = hp - th + 1, wp - tw + 1
    xb = xp.astype(jnp.bfloat16)
    cols = [xb[:, :, i:i + ho, j:j + wo] for i in range(th) for j in range(tw)]
    patches = jnp.concatenate(cols, axis=0).reshape(th * tw * cin, n * ho * wo)
    return patches, ho, wo


def _w2d(w_sub_hwio):
    """(th, tw, Cin, Cout) HWIO -> (Cout, th*tw*Cin) bf16, row ordering
    (tap, cin) matching _im2col_T."""
    th, tw, cin, cout = w_sub_hwio.shape
    return jnp.transpose(w_sub_hwio, (3, 0, 1, 2)).reshape(
        cout, th * tw * cin).astype(jnp.bfloat16)


def _phase_geom(K, padding, stride, r, hin, hout):
    """Sub-pixel phase r (output index ≡ r mod stride) of a ConvTranspose2d:
    which flipped-kernel taps participate, how to zero-pad the *undilated*
    input, and the phase output length."""
    lo = K - 1 - padding
    s0 = (lo - r) % stride
    ntaps = len(range(s0, K, stride))
    left = (lo - r - s0) // stride
    hp = (hout - r + stride - 1) // stride
    right = (hp - 1) + (ntaps - 1) - (hin - 1) - left
    assert left >= 0 and right >= 0 and ntaps >= 1, "unsupported geometry"
    return s0, ntaps, left, right, hp


def conv_transpose_relu_bn(x, wf, bias, gamma, beta, *, stride, padding,
                           output_padding):
    """ConvTranspose2d -> ReLU -> BatchNorm2d (training-mode batch stats).
    x: (Cin, N, Hin, Win); wf: flipped equivalent-conv weight (K, K, Cin, Cout).
    Uses the 4-phase sub-pixel decomposition (no zero-dilated intermediate)."""
    cin, n, hin, win = x.shape
    K = wf.shape[0]
    cout = wf.shape[3]
    hout = (hin - 1) * stride - 2 * padding + K + output_padding
    wout = (win - 1) * stride - 2 * padding + K + output_padding

    y = jnp.zeros((cout, n, hout, wout), jnp.float32)
    s1 = jnp.zeros((cout,), jnp.float32)
    s2 = jnp.zeros((cout,), jnp.float32)
    for r in range(stride):
        s0r, ntr, lt, rt, hp = _phase_geom(K, padding, stride, r, hin, hout)
        for c in range(stride):
            s0c, ntc, lc, rc, wp = _phase_geom(K, padding, stride, c, win, wout)
            xp = jnp.pad(x, ((0, 0), (0, 0), (lt, rt), (lc, rc)))
            patches, ho, wo = _im2col_T(xp, ntr, ntc)
            assert (ho, wo) == (hp, wp)
            w2d = _w2d(wf[s0r::stride, s0c::stride])
            yp, ps1, ps2 = _conv_gemm(patches, w2d, bias, relu_stats=True)
            s1 = s1 + jnp.sum(ps1, axis=(0, 2))
            s2 = s2 + jnp.sum(ps2, axis=(0, 2))
            y = y.at[:, :, r::stride, c::stride].set(
                yp.reshape(cout, n, hp, wp))

    m = n * hout * wout
    mean = s1 / m
    var = jnp.maximum(s2 / m - mean * mean, 0.0)  # biased variance
    scale = gamma * jax.lax.rsqrt(var + EPS)
    shift = beta - mean * scale
    ynorm = _scale_shift(y.reshape(cout, m), scale, shift)
    return ynorm.reshape(cout, n, hout, wout)


# ----------------------------------------------------------------------------
# Generator forward
# ----------------------------------------------------------------------------
def generator_forward(params, noise, upsample_dim):
    p = params
    n = noise.shape[0]
    u = upsample_dim

    # Linear -> ReLU -> BatchNorm1d -> Unflatten(-1, U, 3, 3)
    h = linear_relu_bn(noise, p["lin_w"], p["lin_b"], p["bn0_g"], p["bn0_b"])
    # Keep activations channel-major ("CNHW") so N*H*W is the GEMM lane axis.
    h = jnp.transpose(h.reshape(n, u, 3, 3), (1, 0, 2, 3))

    # Three (ConvTranspose2d -> ReLU -> BatchNorm2d) blocks
    for i, opad in enumerate((0, 0, 1)):
        h = conv_transpose_relu_bn(h, p[f"ct{i}_w"], p[f"ct{i}_b"],
                                   p[f"ct{i}_bn_g"], p[f"ct{i}_bn_b"],
                                   stride=2, padding=1, output_padding=opad)

    # ReflectionPad2d(3) -> Conv2d(k=7)
    # TODO(synk): the 7x7 im2col patch matrix of the final conv is still
    # materialized in HBM (49x duplication); could be tiled in-kernel later.
    hp = jnp.pad(h, ((0, 0), (0, 0), (3, 3), (3, 3)), mode="reflect")
    patches, ho, wo = _im2col_T(hp, 7, 7)
    out2d = _conv_gemm(patches, _w2d(p["conv_w"]), p["conv_b"],
                       relu_stats=False)
    cch = p["conv_w"].shape[3]
    out = out2d.reshape(cch, n, ho, wo)
    return jnp.transpose(out, (1, 0, 2, 3))  # NCHW, matching PyTorch


# ----------------------------------------------------------------------------
# Pure-JAX reference (dilated-conv formulation) for numerical validation
# ----------------------------------------------------------------------------
def reference_forward(params, noise, upsample_dim):
    p = params
    n = noise.shape[0]
    u = upsample_dim

    def bn(y, g, b, axes):
        m = jnp.mean(y, axis=axes, keepdims=True)
        v = jnp.mean((y - m) ** 2, axis=axes, keepdims=True)
        return (y - m) * jax.lax.rsqrt(v + EPS) * g + b

    y = jnp.dot(noise.astype(jnp.bfloat16), p["lin_w"].astype(jnp.bfloat16),
                preferred_element_type=jnp.float32) + p["lin_b"]
    y = jnp.maximum(y, 0.0)
    y = bn(y, p["bn0_g"], p["bn0_b"], axes=(0,))
    x = y.reshape(n, u, 3, 3)  # NCHW

    for i, opad in enumerate((0, 0, 1)):
        wf = p[f"ct{i}_w"]
        K = wf.shape[0]
        lo = K - 1 - 1
        hi = lo + opad
        hd = (x.shape[2] - 1) * 2 + 1
        wd = (x.shape[3] - 1) * 2 + 1
        xd = jnp.zeros((n, x.shape[1], hd, wd), x.dtype)
        xd = xd.at[:, :, ::2, ::2].set(x)
        xd = jnp.pad(xd, ((0, 0), (0, 0), (lo, hi), (lo, hi)))
        y = jax.lax.conv_general_dilated(
            xd.astype(jnp.bfloat16), wf.astype(jnp.bfloat16),
            window_strides=(1, 1), padding="VALID",
            dimension_numbers=("NCHW", "HWIO", "NCHW"),
            preferred_element_type=jnp.float32)
        y = jnp.maximum(y + p[f"ct{i}_b"].reshape(1, -1, 1, 1), 0.0)
        x = bn(y, p[f"ct{i}_bn_g"].reshape(1, -1, 1, 1),
               p[f"ct{i}_bn_b"].reshape(1, -1, 1, 1), axes=(0, 2, 3))

    xp = jnp.pad(x, ((0, 0), (0, 0), (3, 3), (3, 3)), mode="reflect")
    out = jax.lax.conv_general_dilated(
        xp.astype(jnp.bfloat16), p["conv_w"].astype(jnp.bfloat16),
        window_strides=(1, 1), padding="VALID",
        dimension_numbers=("NCHW", "HWIO", "NCHW"),
        preferred_element_type=jnp.float32) + p["conv_b"].reshape(1, -1, 1, 1)
    return out


# ----------------------------------------------------------------------------
# Deterministic synthetic parameter init (shapes follow Generator.__init__)
# ----------------------------------------------------------------------------
def init_params(key, noise_dim, upsample_dim, out_channels):
    keys = jax.random.split(key, 18)
    u = upsample_dim

    def nrm(k, shape, scale=0.05):
        return scale * jax.random.normal(k, shape, jnp.float32)

    params = {
        "lin_w": nrm(keys[0], (noise_dim, 9 * u)),
        "lin_b": nrm(keys[1], (9 * u,)),
        "bn0_g": 1.0 + nrm(keys[2], (9 * u,)),
        "bn0_b": nrm(keys[3], (9 * u,)),
    }
    chans = [u, u // 2, u // 4, u // 8]
    ki = 4
    for i in range(3):
        cin, cout = chans[i], chans[i + 1]
        w_t = nrm(keys[ki], (cin, cout, 5, 5)); ki += 1  # ConvTranspose2d weight
        params[f"ct{i}_w"] = convtranspose_weight_to_flipped_hwio(w_t)
        params[f"ct{i}_b"] = nrm(keys[ki], (cout,)); ki += 1
        params[f"ct{i}_bn_g"] = 1.0 + nrm(keys[ki], (cout,)); ki += 1
        params[f"ct{i}_bn_b"] = nrm(keys[ki], (cout,)); ki += 1
    w_c = nrm(keys[ki], (out_channels, u // 8, 7, 7)); ki += 1  # Conv2d weight
    params["conv_w"] = conv_weight_to_hwio(w_c)
    params["conv_b"] = nrm(keys[ki], (out_channels,))
    return params


if __name__ == "__main__":
    # Small shapes consistent with the module (the `dim` arg is unused).
    noise_dim = 16
    upsample_dim = 32
    out_channels = 8
    batch = 2

    key = jax.random.PRNGKey(0)
    k_params, k_noise = jax.random.split(key)
    params = init_params(k_params, noise_dim, upsample_dim, out_channels)
    noise = jax.random.normal(k_noise, (batch, noise_dim), jnp.float32)

    fwd = jax.jit(functools.partial(generator_forward,
                                    upsample_dim=upsample_dim))
    out = fwd(params, noise)
    jax.block_until_ready(out)

    # Spatial trace: 3 -> 7 -> 15 -> 32 -> (reflect-pad 38) -> conv7 -> 32
    assert out.shape == (batch, out_channels, 32, 32), out.shape
    assert out.dtype == jnp.float32
    assert bool(jnp.all(jnp.isfinite(out)))

    # Numerical check against a pure-lax reference (bf16 matmuls, f32 accum).
    ref = jax.jit(functools.partial(reference_forward,
                                    upsample_dim=upsample_dim))(params, noise)
    jax.block_until_ready(ref)
    err = float(jnp.max(jnp.abs(out - ref)))
    assert err < 7.5e-2, f"max abs err vs reference: {err}"

    print("KERNEL_OK")
</pallas_src>

<mosaic_0001>
module attributes {stable_mosaic.version = 11 : i64} {
  func.func @_linear_relu_bn_kernel(%arg0: i32, %arg1: memref<2x16xbf16, #tpu.memory_space<vmem>>, %arg2: memref<16x288xbf16, #tpu.memory_space<vmem>>, %arg3: memref<1x288xf32, #tpu.memory_space<vmem>>, %arg4: memref<1x288xf32, #tpu.memory_space<vmem>>, %arg5: memref<1x288xf32, #tpu.memory_space<vmem>>, %arg6: memref<2x288xf32, #tpu.memory_space<vmem>>) attributes {dimension_semantics = [#tpu.dimension_semantics<parallel>], iteration_bounds = array<i64: 1>, scalar_prefetch = 0 : i64, scratch_operands = 0 : i64, tpu.core_type = #tpu.core_type<tc>, window_params = [{pipeline_mode = #tpu.pipeline_mode<synchronous>, transform_indices = @transform_0, window_bounds = array<i64: 2, 16>}, {transform_indices = @transform_1, window_bounds = array<i64: 16, 288>}, {transform_indices = @transform_2, window_bounds = array<i64: 1, 288>}, {transform_indices = @transform_3, window_bounds = array<i64: 1, 288>}, {transform_indices = @transform_4, window_bounds = array<i64: 1, 288>}, {transform_indices = @transform_5, window_bounds = array<i64: 2, 288>}]} {
    %c0 = arith.constant 0 : index
    %c0_0 = arith.constant 0 : index
    %0 = vector.load %arg1[%c0, %c0_0] : memref<2x16xbf16, #tpu.memory_space<vmem>>, vector<2x16xbf16>
    %c0_1 = arith.constant 0 : index
    %c0_2 = arith.constant 0 : index
    %1 = vector.load %arg2[%c0_1, %c0_2] : memref<16x288xbf16, #tpu.memory_space<vmem>>, vector<16x288xbf16>
    %cst = arith.constant dense<0.000000e+00> : vector<2x288xf32>
    %2 = tpu.matmul %0, %1, %cst {dimension_numbers = #tpu.dot_dimension_numbers<[1], [0], [0], [1], [0, 0, 1, 1], [], []>} : vector<2x16xbf16>, vector<16x288xbf16>, vector<2x288xf32> -> vector<2x288xf32>
    %c0_3 = arith.constant 0 : index
    %c0_4 = arith.constant 0 : index
    %3 = vector.load %arg3[%c0_3, %c0_4] : memref<1x288xf32, #tpu.memory_space<vmem>>, vector<1x288xf32>
    %4 = vector.broadcast %3 : vector<1x288xf32> to vector<2x288xf32>
    %5 = arith.addf %2, %4 : vector<2x288xf32>
    %cst_5 = arith.constant 0.000000e+00 : f32
    %6 = vector.broadcast %cst_5 : f32 to vector<2x288xf32>
    %7 = arith.maximumf %5, %6 : vector<2x288xf32>
    %cst_6 = arith.constant dense<0.000000e+00> : vector<288xf32>
    %8 = vector.multi_reduction <add>, %7, %cst_6 [0] : vector<2x288xf32> to vector<288xf32>
    %9 = vector.shape_cast %8 : vector<288xf32> to vector<1x288xf32>
    %cst_7 = arith.constant 2.000000e+00 : f32
    %10 = vector.broadcast %cst_7 : f32 to vector<1x288xf32>
    %11 = arith.divf %9, %10 : vector<1x288xf32>
    %12 = vector.broadcast %11 : vector<1x288xf32> to vector<2x288xf32>
    %13 = arith.subf %7, %12 : vector<2x288xf32>
    %14 = arith.mulf %13, %13 : vector<2x288xf32>
    %cst_8 = arith.constant dense<0.000000e+00> : vector<288xf32>
    %15 = vector.multi_reduction <add>, %14, %cst_8 [0] : vector<2x288xf32> to vector<288xf32>
    %16 = vector.shape_cast %15 : vector<288xf32> to vector<1x288xf32>
    %cst_9 = arith.constant 2.000000e+00 : f32
    %17 = vector.broadcast %cst_9 : f32 to vector<1x288xf32>
    %18 = arith.divf %16, %17 : vector<1x288xf32>
    %19 = vector.broadcast %11 : vector<1x288xf32> to vector<2x288xf32>
    %20 = arith.subf %7, %19 : vector<2x288xf32>
    %cst_10 = arith.constant 9.99999974E-6 : f32
    %21 = vector.broadcast %cst_10 : f32 to vector<1x288xf32>
    %22 = arith.addf %18, %21 : vector<1x288xf32>
    %23 = math.rsqrt %22 : vector<1x288xf32>
    %24 = vector.broadcast %23 : vector<1x288xf32> to vector<2x288xf32>
    %25 = arith.mulf %20, %24 : vector<2x288xf32>
    %c0_11 = arith.constant 0 : index
    %c0_12 = arith.constant 0 : index
    %26 = vector.load %arg4[%c0_11, %c0_12] : memref<1x288xf32, #tpu.memory_space<vmem>>, vector<1x288xf32>
    %27 = vector.broadcast %26 : vector<1x288xf32> to vector<2x288xf32>
    %28 = arith.mulf %25, %27 : vector<2x288xf32>
    %c0_13 = arith.constant 0 : index
    %c0_14 = arith.constant 0 : index
    %29 = vector.load %arg5[%c0_13, %c0_14] : memref<1x288xf32, #tpu.memory_space<vmem>>, vector<1x288xf32>
    %30 = vector.broadcast %29 : vector<1x288xf32> to vector<2x288xf32>
    %31 = arith.addf %28, %30 : vector<2x288xf32>
    %c0_15 = arith.constant 0 : index
    %c0_16 = arith.constant 0 : index
    %32 = vector.load %arg6[%c0_15, %c0_16] : memref<2x288xf32, #tpu.memory_space<vmem>>, vector<2x288xf32>
    tpu.vector_store %arg6[%c0_15, %c0_16], %31 {strides = array<i32>} : memref<2x288xf32, #tpu.memory_space<vmem>>, vector<2x288xf32>,
    return
  }
  func.func @transform_0(%arg0: i32) -> (i32, i32) {
    %c0_i32 = arith.constant 0 : i32
    %c0_i32_0 = arith.constant 0 : i32
    %c0_i32_1 = arith.constant 0 : i32
    return %c0_i32, %c0_i32_0 : i32, i32
  }
  func.func @transform_1(%arg0: i32) -> (i32, i32) {
    %c0_i32 = arith.constant 0 : i32
    %c0_i32_0 = arith.constant 0 : i32
    return %c0_i32, %arg0 : i32, i32
  }
  func.func @transform_2(%arg0: i32) -> (i32, i32) {
    %c0_i32 = arith.constant 0 : i32
    %c0_i32_0 = arith.constant 0 : i32
    return %c0_i32, %arg0 : i32, i32
  }
  func.func @transform_3(%arg0: i32) -> (i32, i32) {
    %c0_i32 = arith.constant 0 : i32
    %c0_i32_0 = arith.constant 0 : i32
    return %c0_i32, %arg0 : i32, i32
  }
  func.func @transform_4(%arg0: i32) -> (i32, i32) {
    %c0_i32 = arith.constant 0 : i32
    %c0_i32_0 = arith.constant 0 : i32
    return %c0_i32, %arg0 : i32, i32
  }
  func.func @transform_5(%arg0: i32) -> (i32, i32) {
    %c0_i32 = arith.constant 0 : i32
    %c0_i32_0 = arith.constant 0 : i32
    return %c0_i32, %arg0 : i32, i32
  }
}

module attributes {stable_mosaic.version = 11 : i64} {
  func.func @_gemm_relu_stats_kernel(%arg0: i32, %arg1: memref<288x18xbf16, #tpu.memory_space<vmem>>, %arg2: memref<16x288xbf16, #tpu.memory_space<vmem>>, %arg3: memref<16x1xf32, #tpu.memory_space<vmem>>, %arg4: memref<16x18xf32, #tpu.memory_space<vmem>>, %arg5: memref<1x16x1xf32, #tpu.memory_space<vmem>>, %arg6: memref<1x16x1xf32, #tpu.memory_space<vmem>>) attributes {dimension_semantics = [#tpu.dimension_semantics<parallel>], iteration_bounds = array<i64: 1>, scalar_prefetch = 0 : i64, scratch_operands = 0 : i64, tpu.core_type = #tpu.core_type<tc>, window_params = [{transform_indices = @transform_0, window_bounds = array<i64: 288, 18>}, {pipeline_mode = #tpu.pipeline_mode<synchronous>, transform_indices = @transform_1, window_bounds = array<i64: 16, 288>}, {pipeline_mode = #tpu.pipeline_mode<synchronous>, transform_indices = @transform_2, window_bounds = array<i64: 16, 1>}, {transform_indices = @transform_3, window_bounds = array<i64: 16, 18>}, {transform_indices = @transform_4, window_bounds = array<i64: 1, 16, 1>}, {transform_indices = @transform_5, window_bounds = array<i64: 1, 16, 1>}]} {
    %c0 = arith.constant 0 : index
    %c0_0 = arith.constant 0 : index
    %0 = vector.load %arg2[%c0, %c0_0] : memref<16x288xbf16, #tpu.memory_space<vmem>>, vector<16x288xbf16>
    %c0_1 = arith.constant 0 : index
    %c0_2 = arith.constant 0 : index
    %1 = vector.load %arg1[%c0_1, %c0_2] : memref<288x18xbf16, #tpu.memory_space<vmem>>, vector<288x18xbf16>
    %cst = arith.constant dense<0.000000e+00> : vector<16x18xf32>
    %2 = tpu.matmul %0, %1, %cst {dimension_numbers = #tpu.dot_dimension_numbers<[1], [0], [0], [1], [0, 0, 1, 1], [], []>} : vector<16x288xbf16>, vector<288x18xbf16>, vector<16x18xf32> -> vector<16x18xf32>
    %c0_3 = arith.constant 0 : index
    %c0_4 = arith.constant 0 : index
    %3 = vector.load %arg3[%c0_3, %c0_4] : memref<16x1xf32, #tpu.memory_space<vmem>>, vector<16x1xf32>
    %4 = vector.broadcast %3 : vector<16x1xf32> to vector<16x18xf32>
    %5 = arith.addf %2, %4 : vector<16x18xf32>
    %cst_5 = arith.constant 0.000000e+00 : f32
    %6 = vector.broadcast %cst_5 : f32 to vector<16x18xf32>
    %7 = arith.maximumf %5, %6 : vector<16x18xf32>
    %c18_i32 = arith.constant 18 : i32
    %8 = arith.muli %arg0, %c18_i32 : i32
    %9 = tpu.iota {dimensions = array<i32: 1>} : vector<16x18xi32>
    %10 = vector.broadcast %8 : i32 to vector<16x18xi32>
    %11 = arith.addi %10, %9 : vector<16x18xi32>
    %c18_i32_6 = arith.constant 18 : i32
    %12 = vector.broadcast %c18_i32_6 : i32 to vector<16x18xi32>
    %13 = arith.cmpi slt, %11, %12 : vector<16x18xi32>
    %cst_7 = arith.constant 0.000000e+00 : f32
    %14 = vector.broadcast %cst_7 : f32 to vector<16x18xf32>
    %15 = arith.select %13, %7, %14 : vector<16x18xi1>, vector<16x18xf32>
    %c0_8 = arith.constant 0 : index
    %c0_9 = arith.constant 0 : index
    %16 = vector.load %arg4[%c0_8, %c0_9] : memref<16x18xf32, #tpu.memory_space<vmem>>, vector<16x18xf32>
    tpu.vector_store %arg4[%c0_8, %c0_9], %15 {strides = array<i32>} : memref<16x18xf32, #tpu.memory_space<vmem>>, vector<16x18xf32>,
    %cst_10 = arith.constant dense<0.000000e+00> : vector<16xf32>
    %17 = vector.multi_reduction <add>, %15, %cst_10 [1] : vector<16x18xf32> to vector<16xf32>
    %18 = vector.shape_cast %17 : vector<16xf32> to vector<16x1xf32>
    %c0_11 = arith.constant 0 : index
    %c0_12 = arith.constant 0 : index
    %c0_13 = arith.constant 0 : index
    %19 = vector.load %arg5[%c0_11, %c0_12, %c0_13] : memref<1x16x1xf32, #tpu.memory_space<vmem>>, vector<1x16x1xf32>
    %20 = vector.shape_cast %19 : vector<1x16x1xf32> to vector<16x1xf32>
    %21 = vector.shape_cast %18 : vector<16x1xf32> to vector<1x16x1xf32>
    tpu.vector_store %arg5[%c0_11, %c0_12, %c0_13], %21 {strides = array<i32>} : memref<1x16x1xf32, #tpu.memory_space<vmem>>, vector<1x16x1xf32>,
    %22 = arith.mulf %15, %15 : vector<16x18xf32>
    %cst_14 = arith.constant dense<0.000000e+00> : vector<16xf32>
    %23 = vector.multi_reduction <add>, %22, %cst_14 [1] : vector<16x18xf32> to vector<16xf32>
    %24 = vector.shape_cast %23 : vector<16xf32> to vector<16x1xf32>
    %c0_15 = arith.constant 0 : index
    %c0_16 = arith.constant 0 : index
    %c0_17 = arith.constant 0 : index
    %25 = vector.load %arg6[%c0_15, %c0_16, %c0_17] : memref<1x16x1xf32, #tpu.memory_space<vmem>>, vector<1x16x1xf32>
    %26 = vector.shape_cast %25 : vector<1x16x1xf32> to vector<16x1xf32>
    %27 = vector.shape_cast %24 : vector<16x1xf32> to vector<1x16x1xf32>
    tpu.vector_store %arg6[%c0_15, %c0_16, %c0_17], %27 {strides = array<i32>} : memref<1x16x1xf32, #tpu.memory_space<vmem>>, vector<1x16x1xf32>,
    return
  }
  func.func @transform_0(%arg0: i32) -> (i32, i32) {
    %c0_i32 = arith.constant 0 : i32
    %c0_i32_0 = arith.constant 0 : i32
    return %c0_i32, %arg0 : i32, i32
  }
  func.func @transform_1(%arg0: i32) -> (i32, i32) {
    %c0_i32 = arith.constant 0 : i32
    %c0_i32_0 = arith.constant 0 : i32
    %c0_i32_1 = arith.constant 0 : i32
    return %c0_i32, %c0_i32_0 : i32, i32
  }
  func.func @transform_2(%arg0: i32) -> (i32, i32) {
    %c0_i32 = arith.constant 0 : i32
    %c0_i32_0 = arith.constant 0 : i32
    %c0_i32_1 = arith.constant 0 : i32
    return %c0_i32, %c0_i32_0 : i32, i32
  }
  func.func @transform_3(%arg0: i32) -> (i32, i32) {
    %c0_i32 = arith.constant 0 : i32
    %c0_i32_0 = arith.constant 0 : i32
    return %c0_i32, %arg0 : i32, i32
  }
  func.func @transform_4(%arg0: i32) -> (i32, i32, i32) {
    %c0_i32 = arith.constant 0 : i32
    %c0_i32_0 = arith.constant 0 : i32
    %c0_i32_1 = arith.constant 0 : i32
    return %arg0, %c0_i32, %c0_i32_0 : i32, i32, i32
  }
  func.func @transform_5(%arg0: i32) -> (i32, i32, i32) {
    %c0_i32 = arith.constant 0 : i32
    %c0_i32_0 = arith.constant 0 : i32
    %c0_i32_1 = arith.constant 0 : i32
    return %arg0, %c0_i32, %c0_i32_0 : i32, i32, i32
  }
}

module attributes {stable_mosaic.version = 11 : i64} {
  func.func @_gemm_relu_stats_kernel(%arg0: i32, %arg1: memref<192x24xbf16, #tpu.memory_space<vmem>>, %arg2: memref<16x192xbf16, #tpu.memory_space<vmem>>, %arg3: memref<16x1xf32, #tpu.memory_space<vmem>>, %arg4: memref<16x24xf32, #tpu.memory_space<vmem>>, %arg5: memref<1x16x1xf32, #tpu.memory_space<vmem>>, %arg6: memref<1x16x1xf32, #tpu.memory_space<vmem>>) attributes {dimension_semantics = [#tpu.dimension_semantics<parallel>], iteration_bounds = array<i64: 1>, scalar_prefetch = 0 : i64, scratch_operands = 0 : i64, tpu.core_type = #tpu.core_type<tc>, window_params = [{transform_indices = @transform_0, window_bounds = array<i64: 192, 24>}, {pipeline_mode = #tpu.pipeline_mode<synchronous>, transform_indices = @transform_1, window_bounds = array<i64: 16, 192>}, {pipeline_mode = #tpu.pipeline_mode<synchronous>, transform_indices = @transform_2, window_bounds = array<i64: 16, 1>}, {transform_indices = @transform_3, window_bounds = array<i64: 16, 24>}, {transform_indices = @transform_4, window_bounds = array<i64: 1, 16, 1>}, {transform_indices = @transform_5, window_bounds = array<i64: 1, 16, 1>}]} {
    %c0 = arith.constant 0 : index
    %c0_0 = arith.constant 0 : index
    %0 = vector.load %arg2[%c0, %c0_0] : memref<16x192xbf16, #tpu.memory_space<vmem>>, vector<16x192xbf16>
    %c0_1 = arith.constant 0 : index
    %c0_2 = arith.constant 0 : index
    %1 = vector.load %arg1[%c0_1, %c0_2] : memref<192x24xbf16, #tpu.memory_space<vmem>>, vector<192x24xbf16>
    %cst = arith.constant dense<0.000000e+00> : vector<16x24xf32>
    %2 = tpu.matmul %0, %1, %cst {dimension_numbers = #tpu.dot_dimension_numbers<[1], [0], [0], [1], [0, 0, 1, 1], [], []>} : vector<16x192xbf16>, vector<192x24xbf16>, vector<16x24xf32> -> vector<16x24xf32>
    %c0_3 = arith.constant 0 : index
    %c0_4 = arith.constant 0 : index
    %3 = vector.load %arg3[%c0_3, %c0_4] : memref<16x1xf32, #tpu.memory_space<vmem>>, vector<16x1xf32>
    %4 = vector.broadcast %3 : vector<16x1xf32> to vector<16x24xf32>
    %5 = arith.addf %2, %4 : vector<16x24xf32>
    %cst_5 = arith.constant 0.000000e+00 : f32
    %6 = vector.broadcast %cst_5 : f32 to vector<16x24xf32>
    %7 = arith.maximumf %5, %6 : vector<16x24xf32>
    %c24_i32 = arith.constant 24 : i32
    %8 = arith.muli %arg0, %c24_i32 : i32
    %9 = tpu.iota {dimensions = array<i32: 1>} : vector<16x24xi32>
    %10 = vector.broadcast %8 : i32 to vector<16x24xi32>
    %11 = arith.addi %10, %9 : vector<16x24xi32>
    %c24_i32_6 = arith.constant 24 : i32
    %12 = vector.broadcast %c24_i32_6 : i32 to vector<16x24xi32>
    %13 = arith.cmpi slt, %11, %12 : vector<16x24xi32>
    %cst_7 = arith.constant 0.000000e+00 : f32
    %14 = vector.broadcast %cst_7 : f32 to vector<16x24xf32>
    %15 = arith.select %13, %7, %14 : vector<16x24xi1>, vector<16x24xf32>
    %c0_8 = arith.constant 0 : index
    %c0_9 = arith.constant 0 : index
    %16 = vector.load %arg4[%c0_8, %c0_9] : memref<16x24xf32, #tpu.memory_space<vmem>>, vector<16x24xf32>
    tpu.vector_store %arg4[%c0_8, %c0_9], %15 {strides = array<i32>} : memref<16x24xf32, #tpu.memory_space<vmem>>, vector<16x24xf32>,
    %cst_10 = arith.constant dense<0.000000e+00> : vector<16xf32>
    %17 = vector.multi_reduction <add>, %15, %cst_10 [1] : vector<16x24xf32> to vector<16xf32>
    %18 = vector.shape_cast %17 : vector<16xf32> to vector<16x1xf32>
    %c0_11 = arith.constant 0 : index
    %c0_12 = arith.constant 0 : index
    %c0_13 = arith.constant 0 : index
    %19 = vector.load %arg5[%c0_11, %c0_12, %c0_13] : memref<1x16x1xf32, #tpu.memory_space<vmem>>, vector<1x16x1xf32>
    %20 = vector.shape_cast %19 : vector<1x16x1xf32> to vector<16x1xf32>
    %21 = vector.shape_cast %18 : vector<16x1xf32> to vector<1x16x1xf32>
    tpu.vector_store %arg5[%c0_11, %c0_12, %c0_13], %21 {strides = array<i32>} : memref<1x16x1xf32, #tpu.memory_space<vmem>>, vector<1x16x1xf32>,
    %22 = arith.mulf %15, %15 : vector<16x24xf32>
    %cst_14 = arith.constant dense<0.000000e+00> : vector<16xf32>
    %23 = vector.multi_reduction <add>, %22, %cst_14 [1] : vector<16x24xf32> to vector<16xf32>
    %24 = vector.shape_cast %23 : vector<16xf32> to vector<16x1xf32>
    %c0_15 = arith.constant 0 : index
    %c0_16 = arith.constant 0 : index
    %c0_17 = arith.constant 0 : index
    %25 = vector.load %arg6[%c0_15, %c0_16, %c0_17] : memref<1x16x1xf32, #tpu.memory_space<vmem>>, vector<1x16x1xf32>
    %26 = vector.shape_cast %25 : vector<1x16x1xf32> to vector<16x1xf32>
    %27 = vector.shape_cast %24 : vector<16x1xf32> to vector<1x16x1xf32>
    tpu.vector_store %arg6[%c0_15, %c0_16, %c0_17], %27 {strides = array<i32>} : memref<1x16x1xf32, #tpu.memory_space<vmem>>, vector<1x16x1xf32>,
    return
  }
  func.func @transform_0(%arg0: i32) -> (i32, i32) {
    %c0_i32 = arith.constant 0 : i32
    %c0_i32_0 = arith.constant 0 : i32
    return %c0_i32, %arg0 : i32, i32
  }
  func.func @transform_1(%arg0: i32) -> (i32, i32) {
    %c0_i32 = arith.constant 0 : i32
    %c0_i32_0 = arith.constant 0 : i32
    %c0_i32_1 = arith.constant 0 : i32
    return %c0_i32, %c0_i32_0 : i32, i32
  }
  func.func @transform_2(%arg0: i32) -> (i32, i32) {
    %c0_i32 = arith.constant 0 : i32
    %c0_i32_0 = arith.constant 0 : i32
    %c0_i32_1 = arith.constant 0 : i32
    return %c0_i32, %c0_i32_0 : i32, i32
  }
  func.func @transform_3(%arg0: i32) -> (i32, i32) {
    %c0_i32 = arith.constant 0 : i32
    %c0_i32_0 = arith.constant 0 : i32
    return %c0_i32, %arg0 : i32, i32
  }
  func.func @transform_4(%arg0: i32) -> (i32, i32, i32) {
    %c0_i32 = arith.constant 0 : i32
    %c0_i32_0 = arith.constant 0 : i32
    %c0_i32_1 = arith.constant 0 : i32
    return %arg0, %c0_i32, %c0_i32_0 : i32, i32, i32
  }
  func.func @transform_5(%arg0: i32) -> (i32, i32, i32) {
    %c0_i32 = arith.constant 0 : i32
    %c0_i32_0 = arith.constant 0 : i32
    %c0_i32_1 = arith.constant 0 : i32
    return %arg0, %c0_i32, %c0_i32_0 : i32, i32, i32
  }
}

module attributes {stable_mosaic.version = 11 : i64} {
  func.func @_gemm_relu_stats_kernel(%arg0: i32, %arg1: memref<128x32xbf16, #tpu.memory_space<vmem>>, %arg2: memref<16x128xbf16, #tpu.memory_space<vmem>>, %arg3: memref<16x1xf32, #tpu.memory_space<vmem>>, %arg4: memref<16x32xf32, #tpu.memory_space<vmem>>, %arg5: memref<1x16x1xf32, #tpu.memory_space<vmem>>, %arg6: memref<1x16x1xf32, #tpu.memory_space<vmem>>) attributes {dimension_semantics = [#tpu.dimension_semantics<parallel>], iteration_bounds = array<i64: 1>, scalar_prefetch = 0 : i64, scratch_operands = 0 : i64, tpu.core_type = #tpu.core_type<tc>, window_params = [{transform_indices = @transform_0, window_bounds = array<i64: 128, 32>}, {pipeline_mode = #tpu.pipeline_mode<synchronous>, transform_indices = @transform_1, window_bounds = array<i64: 16, 128>}, {pipeline_mode = #tpu.pipeline_mode<synchronous>, transform_indices = @transform_2, window_bounds = array<i64: 16, 1>}, {transform_indices = @transform_3, window_bounds = array<i64: 16, 32>}, {transform_indices = @transform_4, window_bounds = array<i64: 1, 16, 1>}, {transform_indices = @transform_5, window_bounds = array<i64: 1, 16, 1>}]} {
    %c0 = arith.constant 0 : index
    %c0_0 = arith.constant 0 : index
    %0 = vector.load %arg2[%c0, %c0_0] : memref<16x128xbf16, #tpu.memory_space<vmem>>, vector<16x128xbf16>
    %c0_1 = arith.constant 0 : index
    %c0_2 = arith.constant 0 : index
    %1 = vector.load %arg1[%c0_1, %c0_2] : memref<128x32xbf16, #tpu.memory_space<vmem>>, vector<128x32xbf16>
    %cst = arith.constant dense<0.000000e+00> : vector<16x32xf32>
    %2 = tpu.matmul %0, %1, %cst {dimension_numbers = #tpu.dot_dimension_numbers<[1], [0], [0], [1], [0, 0, 1, 1], [], []>} : vector<16x128xbf16>, vector<128x32xbf16>, vector<16x32xf32> -> vector<16x32xf32>
    %c0_3 = arith.constant 0 : index
    %c0_4 = arith.constant 0 : index
    %3 = vector.load %arg3[%c0_3, %c0_4] : memref<16x1xf32, #tpu.memory_space<vmem>>, vector<16x1xf32>
    %4 = vector.broadcast %3 : vector<16x1xf32> to vector<16x32xf32>
    %5 = arith.addf %2, %4 : vector<16x32xf32>
    %cst_5 = arith.constant 0.000000e+00 : f32
    %6 = vector.broadcast %cst_5 : f32 to vector<16x32xf32>
    %7 = arith.maximumf %5, %6 : vector<16x32xf32>
    %c32_i32 = arith.constant 32 : i32
    %8 = arith.muli %arg0, %c32_i32 : i32
    %9 = tpu.iota {dimensions = array<i32: 1>} : vector<16x32xi32>
    %10 = vector.broadcast %8 : i32 to vector<16x32xi32>
    %11 = arith.addi %10, %9 : vector<16x32xi32>
    %c32_i32_6 = arith.constant 32 : i32
    %12 = vector.broadcast %c32_i32_6 : i32 to vector<16x32xi32>
    %13 = arith.cmpi slt, %11, %12 : vector<16x32xi32>
    %cst_7 = arith.constant 0.000000e+00 : f32
    %14 = vector.broadcast %cst_7 : f32 to vector<16x32xf32>
    %15 = arith.select %13, %7, %14 : vector<16x32xi1>, vector<16x32xf32>
    %c0_8 = arith.constant 0 : index
    %c0_9 = arith.constant 0 : index
    %16 = vector.load %arg4[%c0_8, %c0_9] : memref<16x32xf32, #tpu.memory_space<vmem>>, vector<16x32xf32>
    tpu.vector_store %arg4[%c0_8, %c0_9], %15 {strides = array<i32>} : memref<16x32xf32, #tpu.memory_space<vmem>>, vector<16x32xf32>,
    %cst_10 = arith.constant dense<0.000000e+00> : vector<16xf32>
    %17 = vector.multi_reduction <add>, %15, %cst_10 [1] : vector<16x32xf32> to vector<16xf32>
    %18 = vector.shape_cast %17 : vector<16xf32> to vector<16x1xf32>
    %c0_11 = arith.constant 0 : index
    %c0_12 = arith.constant 0 : index
    %c0_13 = arith.constant 0 : index
    %19 = vector.load %arg5[%c0_11, %c0_12, %c0_13] : memref<1x16x1xf32, #tpu.memory_space<vmem>>, vector<1x16x1xf32>
    %20 = vector.shape_cast %19 : vector<1x16x1xf32> to vector<16x1xf32>
    %21 = vector.shape_cast %18 : vector<16x1xf32> to vector<1x16x1xf32>
    tpu.vector_store %arg5[%c0_11, %c0_12, %c0_13], %21 {strides = array<i32>} : memref<1x16x1xf32, #tpu.memory_space<vmem>>, vector<1x16x1xf32>,
    %22 = arith.mulf %15, %15 : vector<16x32xf32>
    %cst_14 = arith.constant dense<0.000000e+00> : vector<16xf32>
    %23 = vector.multi_reduction <add>, %22, %cst_14 [1] : vector<16x32xf32> to vector<16xf32>
    %24 = vector.shape_cast %23 : vector<16xf32> to vector<16x1xf32>
    %c0_15 = arith.constant 0 : index
    %c0_16 = arith.constant 0 : index
    %c0_17 = arith.constant 0 : index
    %25 = vector.load %arg6[%c0_15, %c0_16, %c0_17] : memref<1x16x1xf32, #tpu.memory_space<vmem>>, vector<1x16x1xf32>
    %26 = vector.shape_cast %25 : vector<1x16x1xf32> to vector<16x1xf32>
    %27 = vector.shape_cast %24 : vector<16x1xf32> to vector<1x16x1xf32>
    tpu.vector_store %arg6[%c0_15, %c0_16, %c0_17], %27 {strides = array<i32>} : memref<1x16x1xf32, #tpu.memory_space<vmem>>, vector<1x16x1xf32>,
    return
  }
  func.func @transform_0(%arg0: i32) -> (i32, i32) {
    %c0_i32 = arith.constant 0 : i32
    %c0_i32_0 = arith.constant 0 : i32
    return %c0_i32, %arg0 : i32, i32
  }
  func.func @transform_1(%arg0: i32) -> (i32, i32) {
    %c0_i32 = arith.constant 0 : i32
    %c0_i32_0 = arith.constant 0 : i32
    %c0_i32_1 = arith.constant 0 : i32
    return %c0_i32, %c0_i32_0 : i32, i32
  }
  func.func @transform_2(%arg0: i32) -> (i32, i32) {
    %c0_i32 = arith.constant 0 : i32
    %c0_i32_0 = arith.constant 0 : i32
    %c0_i32_1 = arith.constant 0 : i32
    return %c0_i32, %c0_i32_0 : i32, i32
  }
  func.func @transform_3(%arg0: i32) -> (i32, i32) {
    %c0_i32 = arith.constant 0 : i32
    %c0_i32_0 = arith.constant 0 : i32
    return %c0_i32, %arg0 : i32, i32
  }
  func.func @transform_4(%arg0: i32) -> (i32, i32, i32) {
    %c0_i32 = arith.constant 0 : i32
    %c0_i32_0 = arith.constant 0 : i32
    %c0_i32_1 = arith.constant 0 : i32
    return %arg0, %c0_i32, %c0_i32_0 : i32, i32, i32
  }
  func.func @transform_5(%arg0: i32) -> (i32, i32, i32) {
    %c0_i32 = arith.constant 0 : i32
    %c0_i32_0 = arith.constant 0 : i32
    %c0_i32_1 = arith.constant 0 : i32
    return %arg0, %c0_i32, %c0_i32_0 : i32, i32, i32
  }
}

module attributes {stable_mosaic.version = 11 : i64} {
  func.func @_scale_shift_kernel(%arg0: i32, %arg1: memref<16x98xf32, #tpu.memory_space<vmem>>, %arg2: memref<16x1xf32, #tpu.memory_space<vmem>>, %arg3: memref<16x1xf32, #tpu.memory_space<vmem>>, %arg4: memref<16x98xf32, #tpu.memory_space<vmem>>) attributes {dimension_semantics = [#tpu.dimension_semantics<parallel>], iteration_bounds = array<i64: 1>, scalar_prefetch = 0 : i64, scratch_operands = 0 : i64, tpu.core_type = #tpu.core_type<tc>, window_params = [{transform_indices = @transform_0, window_bounds = array<i64: 16, 98>}, {pipeline_mode = #tpu.pipeline_mode<synchronous>, transform_indices = @transform_1, window_bounds = array<i64: 16, 1>}, {pipeline_mode = #tpu.pipeline_mode<synchronous>, transform_indices = @transform_2, window_bounds = array<i64: 16, 1>}, {transform_indices = @transform_3, window_bounds = array<i64: 16, 98>}]} {
    %c0 = arith.constant 0 : index
    %c0_0 = arith.constant 0 : index
    %0 = vector.load %arg1[%c0, %c0_0] : memref<16x98xf32, #tpu.memory_space<vmem>>, vector<16x98xf32>
    %c0_1 = arith.constant 0 : index
    %c0_2 = arith.constant 0 : index
    %1 = vector.load %arg2[%c0_1, %c0_2] : memref<16x1xf32, #tpu.memory_space<vmem>>, vector<16x1xf32>
    %2 = vector.broadcast %1 : vector<16x1xf32> to vector<16x98xf32>
    %3 = arith.mulf %0, %2 : vector<16x98xf32>
    %c0_3 = arith.constant 0 : index
    %c0_4 = arith.constant 0 : index
    %4 = vector.load %arg3[%c0_3, %c0_4] : memref<16x1xf32, #tpu.memory_space<vmem>>, vector<16x1xf32>
    %5 = vector.broadcast %4 : vector<16x1xf32> to vector<16x98xf32>
    %6 = arith.addf %3, %5 : vector<16x98xf32>
    %c0_5 = arith.constant 0 : index
    %c0_6 = arith.constant 0 : index
    %7 = vector.load %arg4[%c0_5, %c0_6] : memref<16x98xf32, #tpu.memory_space<vmem>>, vector<16x98xf32>
    tpu.vector_store %arg4[%c0_5, %c0_6], %6 {strides = array<i32>} : memref<16x98xf32, #tpu.memory_space<vmem>>, vector<16x98xf32>,
    return
  }
  func.func @transform_0(%arg0: i32) -> (i32, i32) {
    %c0_i32 = arith.constant 0 : i32
    %c0_i32_0 = arith.constant 0 : i32
    return %c0_i32, %arg0 : i32, i32
  }
  func.func @transform_1(%arg0: i32) -> (i32, i32) {
    %c0_i32 = arith.constant 0 : i32
    %c0_i32_0 = arith.constant 0 : i32
    %c0_i32_1 = arith.constant 0 : i32
    return %c0_i32, %c0_i32_0 : i32, i32
  }
  func.func @transform_2(%arg0: i32) -> (i32, i32) {
    %c0_i32 = arith.constant 0 : i32
    %c0_i32_0 = arith.constant 0 : i32
    %c0_i32_1 = arith.constant 0 : i32
    return %c0_i32, %c0_i32_0 : i32, i32
  }
  func.func @transform_3(%arg0: i32) -> (i32, i32) {
    %c0_i32 = arith.constant 0 : i32
    %c0_i32_0 = arith.constant 0 : i32
    return %c0_i32, %arg0 : i32, i32
  }
}

module attributes {stable_mosaic.version = 11 : i64} {
  func.func @_gemm_relu_stats_kernel(%arg0: i32, %arg1: memref<144x98xbf16, #tpu.memory_space<vmem>>, %arg2: memref<8x144xbf16, #tpu.memory_space<vmem>>, %arg3: memref<8x1xf32, #tpu.memory_space<vmem>>, %arg4: memref<8x98xf32, #tpu.memory_space<vmem>>, %arg5: memref<1x8x1xf32, #tpu.memory_space<vmem>>, %arg6: memref<1x8x1xf32, #tpu.memory_space<vmem>>) attributes {dimension_semantics = [#tpu.dimension_semantics<parallel>], iteration_bounds = array<i64: 1>, scalar_prefetch = 0 : i64, scratch_operands = 0 : i64, tpu.core_type = #tpu.core_type<tc>, window_params = [{transform_indices = @transform_0, window_bounds = array<i64: 144, 98>}, {pipeline_mode = #tpu.pipeline_mode<synchronous>, transform_indices = @transform_1, window_bounds = array<i64: 8, 144>}, {pipeline_mode = #tpu.pipeline_mode<synchronous>, transform_indices = @transform_2, window_bounds = array<i64: 8, 1>}, {transform_indices = @transform_3, window_bounds = array<i64: 8, 98>}, {transform_indices = @transform_4, window_bounds = array<i64: 1, 8, 1>}, {transform_indices = @transform_5, window_bounds = array<i64: 1, 8, 1>}]} {
    %c0 = arith.constant 0 : index
    %c0_0 = arith.constant 0 : index
    %0 = vector.load %arg2[%c0, %c0_0] : memref<8x144xbf16, #tpu.memory_space<vmem>>, vector<8x144xbf16>
    %c0_1 = arith.constant 0 : index
    %c0_2 = arith.constant 0 : index
    %1 = vector.load %arg1[%c0_1, %c0_2] : memref<144x98xbf16, #tpu.memory_space<vmem>>, vector<144x98xbf16>
    %cst = arith.constant dense<0.000000e+00> : vector<8x98xf32>
    %2 = tpu.matmul %0, %1, %cst {dimension_numbers = #tpu.dot_dimension_numbers<[1], [0], [0], [1], [0, 0, 1, 1], [], []>} : vector<8x144xbf16>, vector<144x98xbf16>, vector<8x98xf32> -> vector<8x98xf32>
    %c0_3 = arith.constant 0 : index
    %c0_4 = arith.constant 0 : index
    %3 = vector.load %arg3[%c0_3, %c0_4] : memref<8x1xf32, #tpu.memory_space<vmem>>, vector<8x1xf32>
    %4 = vector.broadcast %3 : vector<8x1xf32> to vector<8x98xf32>
    %5 = arith.addf %2, %4 : vector<8x98xf32>
    %cst_5 = arith.constant 0.000000e+00 : f32
    %6 = vector.broadcast %cst_5 : f32 to vector<8x98xf32>
    %7 = arith.maximumf %5, %6 : vector<8x98xf32>
    %c98_i32 = arith.constant 98 : i32
    %8 = arith.muli %arg0, %c98_i32 : i32
    %9 = tpu.iota {dimensions = array<i32: 1>} : vector<8x98xi32>
    %10 = vector.broadcast %8 : i32 to vector<8x98xi32>
    %11 = arith.addi %10, %9 : vector<8x98xi32>
    %c98_i32_6 = arith.constant 98 : i32
    %12 = vector.broadcast %c98_i32_6 : i32 to vector<8x98xi32>
    %13 = arith.cmpi slt, %11, %12 : vector<8x98xi32>
    %cst_7 = arith.constant 0.000000e+00 : f32
    %14 = vector.broadcast %cst_7 : f32 to vector<8x98xf32>
    %15 = arith.select %13, %7, %14 : vector<8x98xi1>, vector<8x98xf32>
    %c0_8 = arith.constant 0 : index
    %c0_9 = arith.constant 0 : index
    %16 = vector.load %arg4[%c0_8, %c0_9] : memref<8x98xf32, #tpu.memory_space<vmem>>, vector<8x98xf32>
    tpu.vector_store %arg4[%c0_8, %c0_9], %15 {strides = array<i32>} : memref<8x98xf32, #tpu.memory_space<vmem>>, vector<8x98xf32>,
    %cst_10 = arith.constant dense<0.000000e+00> : vector<8xf32>
    %17 = vector.multi_reduction <add>, %15, %cst_10 [1] : vector<8x98xf32> to vector<8xf32>
    %18 = vector.shape_cast %17 : vector<8xf32> to vector<8x1xf32>
    %c0_11 = arith.constant 0 : index
    %c0_12 = arith.constant 0 : index
    %c0_13 = arith.constant 0 : index
    %19 = vector.load %arg5[%c0_11, %c0_12, %c0_13] : memref<1x8x1xf32, #tpu.memory_space<vmem>>, vector<1x8x1xf32>
    %20 = vector.shape_cast %19 : vector<1x8x1xf32> to vector<8x1xf32>
    %21 = vector.shape_cast %18 : vector<8x1xf32> to vector<1x8x1xf32>
    tpu.vector_store %arg5[%c0_11, %c0_12, %c0_13], %21 {strides = array<i32>} : memref<1x8x1xf32, #tpu.memory_space<vmem>>, vector<1x8x1xf32>,
    %22 = arith.mulf %15, %15 : vector<8x98xf32>
    %cst_14 = arith.constant dense<0.000000e+00> : vector<8xf32>
    %23 = vector.multi_reduction <add>, %22, %cst_14 [1] : vector<8x98xf32> to vector<8xf32>
    %24 = vector.shape_cast %23 : vector<8xf32> to vector<8x1xf32>
    %c0_15 = arith.constant 0 : index
    %c0_16 = arith.constant 0 : index
    %c0_17 = arith.constant 0 : index
    %25 = vector.load %arg6[%c0_15, %c0_16, %c0_17] : memref<1x8x1xf32, #tpu.memory_space<vmem>>, vector<1x8x1xf32>
    %26 = vector.shape_cast %25 : vector<1x8x1xf32> to vector<8x1xf32>
    %27 = vector.shape_cast %24 : vector<8x1xf32> to vector<1x8x1xf32>
    tpu.vector_store %arg6[%c0_15, %c0_16, %c0_17], %27 {strides = array<i32>} : memref<1x8x1xf32, #tpu.memory_space<vmem>>, vector<1x8x1xf32>,
    return
  }
  func.func @transform_0(%arg0: i32) -> (i32, i32) {
    %c0_i32 = arith.constant 0 : i32
    %c0_i32_0 = arith.constant 0 : i32
    return %c0_i32, %arg0 : i32, i32
  }
  func.func @transform_1(%arg0: i32) -> (i32, i32) {
    %c0_i32 = arith.constant 0 : i32
    %c0_i32_0 = arith.constant 0 : i32
    %c0_i32_1 = arith.constant 0 : i32
    return %c0_i32, %c0_i32_0 : i32, i32
  }
  func.func @transform_2(%arg0: i32) -> (i32, i32) {
    %c0_i32 = arith.constant 0 : i32
    %c0_i32_0 = arith.constant 0 : i32
    %c0_i32_1 = arith.constant 0 : i32
    return %c0_i32, %c0_i32_0 : i32, i32
  }
  func.func @transform_3(%arg0: i32) -> (i32, i32) {
    %c0_i32 = arith.constant 0 : i32
    %c0_i32_0 = arith.constant 0 : i32
    return %c0_i32, %arg0 : i32, i32
  }
  func.func @transform_4(%arg0: i32) -> (i32, i32, i32) {
    %c0_i32 = arith.constant 0 : i32
    %c0_i32_0 = arith.constant 0 : i32
    %c0_i32_1 = arith.constant 0 : i32
    return %arg0, %c0_i32, %c0_i32_0 : i32, i32, i32
  }
  func.func @transform_5(%arg0: i32) -> (i32, i32, i32) {
    %c0_i32 = arith.constant 0 : i32
    %c0_i32_0 = arith.constant 0 : i32
    %c0_i32_1 = arith.constant 0 : i32
    return %arg0, %c0_i32, %c0_i32_0 : i32, i32, i32
  }
}

module attributes {stable_mosaic.version = 11 : i64} {
  func.func @_gemm_relu_stats_kernel(%arg0: i32, %arg1: memref<96x112xbf16, #tpu.memory_space<vmem>>, %arg2: memref<8x96xbf16, #tpu.memory_space<vmem>>, %arg3: memref<8x1xf32, #tpu.memory_space<vmem>>, %arg4: memref<8x112xf32, #tpu.memory_space<vmem>>, %arg5: memref<1x8x1xf32, #tpu.memory_space<vmem>>, %arg6: memref<1x8x1xf32, #tpu.memory_space<vmem>>) attributes {dimension_semantics = [#tpu.dimension_semantics<parallel>], iteration_bounds = array<i64: 1>, scalar_prefetch = 0 : i64, scratch_operands = 0 : i64, tpu.core_type = #tpu.core_type<tc>, window_params = [{transform_indices = @transform_0, window_bounds = array<i64: 96, 112>}, {pipeline_mode = #tpu.pipeline_mode<synchronous>, transform_indices = @transform_1, window_bounds = array<i64: 8, 96>}, {pipeline_mode = #tpu.pipeline_mode<synchronous>, transform_indices = @transform_2, window_bounds = array<i64: 8, 1>}, {transform_indices = @transform_3, window_bounds = array<i64: 8, 112>}, {transform_indices = @transform_4, window_bounds = array<i64: 1, 8, 1>}, {transform_indices = @transform_5, window_bounds = array<i64: 1, 8, 1>}]} {
    %c0 = arith.constant 0 : index
    %c0_0 = arith.constant 0 : index
    %0 = vector.load %arg2[%c0, %c0_0] : memref<8x96xbf16, #tpu.memory_space<vmem>>, vector<8x96xbf16>
    %c0_1 = arith.constant 0 : index
    %c0_2 = arith.constant 0 : index
    %1 = vector.load %arg1[%c0_1, %c0_2] : memref<96x112xbf16, #tpu.memory_space<vmem>>, vector<96x112xbf16>
    %cst = arith.constant dense<0.000000e+00> : vector<8x112xf32>
    %2 = tpu.matmul %0, %1, %cst {dimension_numbers = #tpu.dot_dimension_numbers<[1], [0], [0], [1], [0, 0, 1, 1], [], []>} : vector<8x96xbf16>, vector<96x112xbf16>, vector<8x112xf32> -> vector<8x112xf32>
    %c0_3 = arith.constant 0 : index
    %c0_4 = arith.constant 0 : index
    %3 = vector.load %arg3[%c0_3, %c0_4] : memref<8x1xf32, #tpu.memory_space<vmem>>, vector<8x1xf32>
    %4 = vector.broadcast %3 : vector<8x1xf32> to vector<8x112xf32>
    %5 = arith.addf %2, %4 : vector<8x112xf32>
    %cst_5 = arith.constant 0.000000e+00 : f32
    %6 = vector.broadcast %cst_5 : f32 to vector<8x112xf32>
    %7 = arith.maximumf %5, %6 : vector<8x112xf32>
    %c112_i32 = arith.constant 112 : i32
    %8 = arith.muli %arg0, %c112_i32 : i32
    %9 = tpu.iota {dimensions = array<i32: 1>} : vector<8x112xi32>
    %10 = vector.broadcast %8 : i32 to vector<8x112xi32>
    %11 = arith.addi %10, %9 : vector<8x112xi32>
    %c112_i32_6 = arith.constant 112 : i32
    %12 = vector.broadcast %c112_i32_6 : i32 to vector<8x112xi32>
    %13 = arith.cmpi slt, %11, %12 : vector<8x112xi32>
    %cst_7 = arith.constant 0.000000e+00 : f32
    %14 = vector.broadcast %cst_7 : f32 to vector<8x112xf32>
    %15 = arith.select %13, %7, %14 : vector<8x112xi1>, vector<8x112xf32>
    %c0_8 = arith.constant 0 : index
    %c0_9 = arith.constant 0 : index
    %16 = vector.load %arg4[%c0_8, %c0_9] : memref<8x112xf32, #tpu.memory_space<vmem>>, vector<8x112xf32>
    tpu.vector_store %arg4[%c0_8, %c0_9], %15 {strides = array<i32>} : memref<8x112xf32, #tpu.memory_space<vmem>>, vector<8x112xf32>,
    %cst_10 = arith.constant dense<0.000000e+00> : vector<8xf32>
    %17 = vector.multi_reduction <add>, %15, %cst_10 [1] : vector<8x112xf32> to vector<8xf32>
    %18 = vector.shape_cast %17 : vector<8xf32> to vector<8x1xf32>
    %c0_11 = arith.constant 0 : index
    %c0_12 = arith.constant 0 : index
    %c0_13 = arith.constant 0 : index
    %19 = vector.load %arg5[%c0_11, %c0_12, %c0_13] : memref<1x8x1xf32, #tpu.memory_space<vmem>>, vector<1x8x1xf32>
    %20 = vector.shape_cast %19 : vector<1x8x1xf32> to vector<8x1xf32>
    %21 = vector.shape_cast %18 : vector<8x1xf32> to vector<1x8x1xf32>
    tpu.vector_store %arg5[%c0_11, %c0_12, %c0_13], %21 {strides = array<i32>} : memref<1x8x1xf32, #tpu.memory_space<vmem>>, vector<1x8x1xf32>,
    %22 = arith.mulf %15, %15 : vector<8x112xf32>
    %cst_14 = arith.constant dense<0.000000e+00> : vector<8xf32>
    %23 = vector.multi_reduction <add>, %22, %cst_14 [1] : vector<8x112xf32> to vector<8xf32>
    %24 = vector.shape_cast %23 : vector<8xf32> to vector<8x1xf32>
    %c0_15 = arith.constant 0 : index
    %c0_16 = arith.constant 0 : index
    %c0_17 = arith.constant 0 : index
    %25 = vector.load %arg6[%c0_15, %c0_16, %c0_17] : memref<1x8x1xf32, #tpu.memory_space<vmem>>, vector<1x8x1xf32>
    %26 = vector.shape_cast %25 : vector<1x8x1xf32> to vector<8x1xf32>
    %27 = vector.shape_cast %24 : vector<8x1xf32> to vector<1x8x1xf32>
    tpu.vector_store %arg6[%c0_15, %c0_16, %c0_17], %27 {strides = array<i32>} : memref<1x8x1xf32, #tpu.memory_space<vmem>>, vector<1x8x1xf32>,
    return
  }
  func.func @transform_0(%arg0: i32) -> (i32, i32) {
    %c0_i32 = arith.constant 0 : i32
    %c0_i32_0 = arith.constant 0 : i32
    return %c0_i32, %arg0 : i32, i32
  }
  func.func @transform_1(%arg0: i32) -> (i32, i32) {
    %c0_i32 = arith.constant 0 : i32
    %c0_i32_0 = arith.constant 0 : i32
    %c0_i32_1 = arith.constant 0 : i32
    return %c0_i32, %c0_i32_0 : i32, i32
  }
  func.func @transform_2(%arg0: i32) -> (i32, i32) {
    %c0_i32 = arith.constant 0 : i32
    %c0_i32_0 = arith.constant 0 : i32
    %c0_i32_1 = arith.constant 0 : i32
    return %c0_i32, %c0_i32_0 : i32, i32
  }
  func.func @transform_3(%arg0: i32) -> (i32, i32) {
    %c0_i32 = arith.constant 0 : i32
    %c0_i32_0 = arith.constant 0 : i32
    return %c0_i32, %arg0 : i32, i32
  }
  func.func @transform_4(%arg0: i32) -> (i32, i32, i32) {
    %c0_i32 = arith.constant 0 : i32
    %c0_i32_0 = arith.constant 0 : i32
    %c0_i32_1 = arith.constant 0 : i32
    return %arg0, %c0_i32, %c0_i32_0 : i32, i32, i32
  }
  func.func @transform_5(%arg0: i32) -> (i32, i32, i32) {
    %c0_i32 = arith.constant 0 : i32
    %c0_i32_0 = arith.constant 0 : i32
    %c0_i32_1 = arith.constant 0 : i32
    return %arg0, %c0_i32, %c0_i32_0 : i32, i32, i32
  }
}

module attributes {stable_mosaic.version = 11 : i64} {
  func.func @_gemm_relu_stats_kernel(%arg0: i32, %arg1: memref<64x128xbf16, #tpu.memory_space<vmem>>, %arg2: memref<8x64xbf16, #tpu.memory_space<vmem>>, %arg3: memref<8x1xf32, #tpu.memory_space<vmem>>, %arg4: memref<8x128xf32, #tpu.memory_space<vmem>>, %arg5: memref<1x8x1xf32, #tpu.memory_space<vmem>>, %arg6: memref<1x8x1xf32, #tpu.memory_space<vmem>>) attributes {dimension_semantics = [#tpu.dimension_semantics<parallel>], iteration_bounds = array<i64: 1>, scalar_prefetch = 0 : i64, scratch_operands = 0 : i64, tpu.core_type = #tpu.core_type<tc>, window_params = [{transform_indices = @transform_0, window_bounds = array<i64: 64, 128>}, {pipeline_mode = #tpu.pipeline_mode<synchronous>, transform_indices = @transform_1, window_bounds = array<i64: 8, 64>}, {pipeline_mode = #tpu.pipeline_mode<synchronous>, transform_indices = @transform_2, window_bounds = array<i64: 8, 1>}, {transform_indices = @transform_3, window_bounds = array<i64: 8, 128>}, {transform_indices = @transform_4, window_bounds = array<i64: 1, 8, 1>}, {transform_indices = @transform_5, window_bounds = array<i64: 1, 8, 1>}]} {
    %c0 = arith.constant 0 : index
    %c0_0 = arith.constant 0 : index
    %0 = vector.load %arg2[%c0, %c0_0] : memref<8x64xbf16, #tpu.memory_space<vmem>>, vector<8x64xbf16>
    %c0_1 = arith.constant 0 : index
    %c0_2 = arith.constant 0 : index
    %1 = vector.load %arg1[%c0_1, %c0_2] : memref<64x128xbf16, #tpu.memory_space<vmem>>, vector<64x128xbf16>
    %cst = arith.constant dense<0.000000e+00> : vector<8x128xf32>
    %2 = tpu.matmul %0, %1, %cst {dimension_numbers = #tpu.dot_dimension_numbers<[1], [0], [0], [1], [0, 0, 1, 1], [], []>} : vector<8x64xbf16>, vector<64x128xbf16>, vector<8x128xf32> -> vector<8x128xf32>
    %c0_3 = arith.constant 0 : index
    %c0_4 = arith.constant 0 : index
    %3 = vector.load %arg3[%c0_3, %c0_4] : memref<8x1xf32, #tpu.memory_space<vmem>>, vector<8x1xf32>
    %4 = vector.broadcast %3 : vector<8x1xf32> to vector<8x128xf32>
    %5 = arith.addf %2, %4 : vector<8x128xf32>
    %cst_5 = arith.constant 0.000000e+00 : f32
    %6 = vector.broadcast %cst_5 : f32 to vector<8x128xf32>
    %7 = arith.maximumf %5, %6 : vector<8x128xf32>
    %c128_i32 = arith.constant 128 : i32
    %8 = arith.muli %arg0, %c128_i32 : i32
    %9 = tpu.iota {dimensions = array<i32: 1>} : vector<8x128xi32>
    %10 = vector.broadcast %8 : i32 to vector<8x128xi32>
    %11 = arith.addi %10, %9 : vector<8x128xi32>
    %c128_i32_6 = arith.constant 128 : i32
    %12 = vector.broadcast %c128_i32_6 : i32 to vector<8x128xi32>
    %13 = arith.cmpi slt, %11, %12 : vector<8x128xi32>
    %cst_7 = arith.constant 0.000000e+00 : f32
    %14 = vector.broadcast %cst_7 : f32 to vector<8x128xf32>
    %15 = arith.select %13, %7, %14 : vector<8x128xi1>, vector<8x128xf32>
    %c0_8 = arith.constant 0 : index
    %c0_9 = arith.constant 0 : index
    %16 = vector.load %arg4[%c0_8, %c0_9] : memref<8x128xf32, #tpu.memory_space<vmem>>, vector<8x128xf32>
    tpu.vector_store %arg4[%c0_8, %c0_9], %15 {strides = array<i32>} : memref<8x128xf32, #tpu.memory_space<vmem>>, vector<8x128xf32>,
    %cst_10 = arith.constant dense<0.000000e+00> : vector<8xf32>
    %17 = vector.multi_reduction <add>, %15, %cst_10 [1] : vector<8x128xf32> to vector<8xf32>
    %18 = vector.shape_cast %17 : vector<8xf32> to vector<8x1xf32>
    %c0_11 = arith.constant 0 : index
    %c0_12 = arith.constant 0 : index
    %c0_13 = arith.constant 0 : index
    %19 = vector.load %arg5[%c0_11, %c0_12, %c0_13] : memref<1x8x1xf32, #tpu.memory_space<vmem>>, vector<1x8x1xf32>
    %20 = vector.shape_cast %19 : vector<1x8x1xf32> to vector<8x1xf32>
    %21 = vector.shape_cast %18 : vector<8x1xf32> to vector<1x8x1xf32>
    tpu.vector_store %arg5[%c0_11, %c0_12, %c0_13], %21 {strides = array<i32>} : memref<1x8x1xf32, #tpu.memory_space<vmem>>, vector<1x8x1xf32>,
    %22 = arith.mulf %15, %15 : vector<8x128xf32>
    %cst_14 = arith.constant dense<0.000000e+00> : vector<8xf32>
    %23 = vector.multi_reduction <add>, %22, %cst_14 [1] : vector<8x128xf32> to vector<8xf32>
    %24 = vector.shape_cast %23 : vector<8xf32> to vector<8x1xf32>
    %c0_15 = arith.constant 0 : index
    %c0_16 = arith.constant 0 : index
    %c0_17 = arith.constant 0 : index
    %25 = vector.load %arg6[%c0_15, %c0_16, %c0_17] : memref<1x8x1xf32, #tpu.memory_space<vmem>>, vector<1x8x1xf32>
    %26 = vector.shape_cast %25 : vector<1x8x1xf32> to vector<8x1xf32>
    %27 = vector.shape_cast %24 : vector<8x1xf32> to vector<1x8x1xf32>
    tpu.vector_store %arg6[%c0_15, %c0_16, %c0_17], %27 {strides = array<i32>} : memref<1x8x1xf32, #tpu.memory_space<vmem>>, vector<1x8x1xf32>,
    return
  }
  func.func @transform_0(%arg0: i32) -> (i32, i32) {
    %c0_i32 = arith.constant 0 : i32
    %c0_i32_0 = arith.constant 0 : i32
    return %c0_i32, %arg0 : i32, i32
  }
  func.func @transform_1(%arg0: i32) -> (i32, i32) {
    %c0_i32 = arith.constant 0 : i32
    %c0_i32_0 = arith.constant 0 : i32
    %c0_i32_1 = arith.constant 0 : i32
    return %c0_i32, %c0_i32_0 : i32, i32
  }
  func.func @transform_2(%arg0: i32) -> (i32, i32) {
    %c0_i32 = arith.constant 0 : i32
    %c0_i32_0 = arith.constant 0 : i32
    %c0_i32_1 = arith.constant 0 : i32
    return %c0_i32, %c0_i32_0 : i32, i32
  }
  func.func @transform_3(%arg0: i32) -> (i32, i32) {
    %c0_i32 = arith.constant 0 : i32
    %c0_i32_0 = arith.constant 0 : i32
    return %c0_i32, %arg0 : i32, i32
  }
  func.func @transform_4(%arg0: i32) -> (i32, i32, i32) {
    %c0_i32 = arith.constant 0 : i32
    %c0_i32_0 = arith.constant 0 : i32
    %c0_i32_1 = arith.constant 0 : i32
    return %arg0, %c0_i32, %c0_i32_0 : i32, i32, i32
  }
  func.func @transform_5(%arg0: i32) -> (i32, i32, i32) {
    %c0_i32 = arith.constant 0 : i32
    %c0_i32_0 = arith.constant 0 : i32
    %c0_i32_1 = arith.constant 0 : i32
    return %arg0, %c0_i32, %c0_i32_0 : i32, i32, i32
  }
}

module attributes {stable_mosaic.version = 11 : i64} {
  func.func @_scale_shift_kernel(%arg0: i32, %arg1: memref<8x450xf32, #tpu.memory_space<vmem>>, %arg2: memref<8x1xf32, #tpu.memory_space<vmem>>, %arg3: memref<8x1xf32, #tpu.memory_space<vmem>>, %arg4: memref<8x450xf32, #tpu.memory_space<vmem>>) attributes {dimension_semantics = [#tpu.dimension_semantics<parallel>], iteration_bounds = array<i64: 1>, scalar_prefetch = 0 : i64, scratch_operands = 0 : i64, tpu.core_type = #tpu.core_type<tc>, window_params = [{transform_indices = @transform_0, window_bounds = array<i64: 8, 450>}, {pipeline_mode = #tpu.pipeline_mode<synchronous>, transform_indices = @transform_1, window_bounds = array<i64: 8, 1>}, {pipeline_mode = #tpu.pipeline_mode<synchronous>, transform_indices = @transform_2, window_bounds = array<i64: 8, 1>}, {transform_indices = @transform_3, window_bounds = array<i64: 8, 450>}]} {
    %c0 = arith.constant 0 : index
    %c0_0 = arith.constant 0 : index
    %0 = vector.load %arg1[%c0, %c0_0] : memref<8x450xf32, #tpu.memory_space<vmem>>, vector<8x450xf32>
    %c0_1 = arith.constant 0 : index
    %c0_2 = arith.constant 0 : index
    %1 = vector.load %arg2[%c0_1, %c0_2] : memref<8x1xf32, #tpu.memory_space<vmem>>, vector<8x1xf32>
    %2 = vector.broadcast %1 : vector<8x1xf32> to vector<8x450xf32>
    %3 = arith.mulf %0, %2 : vector<8x450xf32>
    %c0_3 = arith.constant 0 : index
    %c0_4 = arith.constant 0 : index
    %4 = vector.load %arg3[%c0_3, %c0_4] : memref<8x1xf32, #tpu.memory_space<vmem>>, vector<8x1xf32>
    %5 = vector.broadcast %4 : vector<8x1xf32> to vector<8x450xf32>
    %6 = arith.addf %3, %5 : vector<8x450xf32>
    %c0_5 = arith.constant 0 : index
    %c0_6 = arith.constant 0 : index
    %7 = vector.load %arg4[%c0_5, %c0_6] : memref<8x450xf32, #tpu.memory_space<vmem>>, vector<8x450xf32>
    tpu.vector_store %arg4[%c0_5, %c0_6], %6 {strides = array<i32>} : memref<8x450xf32, #tpu.memory_space<vmem>>, vector<8x450xf32>,
    return
  }
  func.func @transform_0(%arg0: i32) -> (i32, i32) {
    %c0_i32 = arith.constant 0 : i32
    %c0_i32_0 = arith.constant 0 : i32
    return %c0_i32, %arg0 : i32, i32
  }
  func.func @transform_1(%arg0: i32) -> (i32, i32) {
    %c0_i32 = arith.constant 0 : i32
    %c0_i32_0 = arith.constant 0 : i32
    %c0_i32_1 = arith.constant 0 : i32
    return %c0_i32, %c0_i32_0 : i32, i32
  }
  func.func @transform_2(%arg0: i32) -> (i32, i32) {
    %c0_i32 = arith.constant 0 : i32
    %c0_i32_0 = arith.constant 0 : i32
    %c0_i32_1 = arith.constant 0 : i32
    return %c0_i32, %c0_i32_0 : i32, i32
  }
  func.func @transform_3(%arg0: i32) -> (i32, i32) {
    %c0_i32 = arith.constant 0 : i32
    %c0_i32_0 = arith.constant 0 : i32
    return %c0_i32, %arg0 : i32, i32
  }
}

module attributes {stable_mosaic.version = 11 : i64} {
  func.func @_gemm_relu_stats_kernel(%arg0: i32, %arg1: memref<72x512xbf16, #tpu.memory_space<vmem>>, %arg2: memref<4x72xbf16, #tpu.memory_space<vmem>>, %arg3: memref<4x1xf32, #tpu.memory_space<vmem>>, %arg4: memref<4x512xf32, #tpu.memory_space<vmem>>, %arg5: memref<1x4x1xf32, #tpu.memory_space<vmem>>, %arg6: memref<1x4x1xf32, #tpu.memory_space<vmem>>) attributes {dimension_semantics = [#tpu.dimension_semantics<parallel>], iteration_bounds = array<i64: 1>, scalar_prefetch = 0 : i64, scratch_operands = 0 : i64, tpu.core_type = #tpu.core_type<tc>, window_params = [{transform_indices = @transform_0, window_bounds = array<i64: 72, 512>}, {pipeline_mode = #tpu.pipeline_mode<synchronous>, transform_indices = @transform_1, window_bounds = array<i64: 4, 72>}, {pipeline_mode = #tpu.pipeline_mode<synchronous>, transform_indices = @transform_2, window_bounds = array<i64: 4, 1>}, {transform_indices = @transform_3, window_bounds = array<i64: 4, 512>}, {transform_indices = @transform_4, window_bounds = array<i64: 1, 4, 1>}, {transform_indices = @transform_5, window_bounds = array<i64: 1, 4, 1>}]} {
    %c0 = arith.constant 0 : index
    %c0_0 = arith.constant 0 : index
    %0 = vector.load %arg2[%c0, %c0_0] : memref<4x72xbf16, #tpu.memory_space<vmem>>, vector<4x72xbf16>
    %c0_1 = arith.constant 0 : index
    %c0_2 = arith.constant 0 : index
    %1 = vector.load %arg1[%c0_1, %c0_2] : memref<72x512xbf16, #tpu.memory_space<vmem>>, vector<72x512xbf16>
    %cst = arith.constant dense<0.000000e+00> : vector<4x512xf32>
    %2 = tpu.matmul %0, %1, %cst {dimension_numbers = #tpu.dot_dimension_numbers<[1], [0], [0], [1], [0, 0, 1, 1], [], []>} : vector<4x72xbf16>, vector<72x512xbf16>, vector<4x512xf32> -> vector<4x512xf32>
    %c0_3 = arith.constant 0 : index
    %c0_4 = arith.constant 0 : index
    %3 = vector.load %arg3[%c0_3, %c0_4] : memref<4x1xf32, #tpu.memory_space<vmem>>, vector<4x1xf32>
    %4 = vector.broadcast %3 : vector<4x1xf32> to vector<4x512xf32>
    %5 = arith.addf %2, %4 : vector<4x512xf32>
    %cst_5 = arith.constant 0.000000e+00 : f32
    %6 = vector.broadcast %cst_5 : f32 to vector<4x512xf32>
    %7 = arith.maximumf %5, %6 : vector<4x512xf32>
    %c512_i32 = arith.constant 512 : i32
    %8 = arith.muli %arg0, %c512_i32 : i32
    %9 = tpu.iota {dimensions = array<i32: 1>} : vector<4x512xi32>
    %10 = vector.broadcast %8 : i32 to vector<4x512xi32>
    %11 = arith.addi %10, %9 : vector<4x512xi32>
    %c512_i32_6 = arith.constant 512 : i32
    %12 = vector.broadcast %c512_i32_6 : i32 to vector<4x512xi32>
    %13 = arith.cmpi slt, %11, %12 : vector<4x512xi32>
    %cst_7 = arith.constant 0.000000e+00 : f32
    %14 = vector.broadcast %cst_7 : f32 to vector<4x512xf32>
    %15 = arith.select %13, %7, %14 : vector<4x512xi1>, vector<4x512xf32>
    %c0_8 = arith.constant 0 : index
    %c0_9 = arith.constant 0 : index
    %16 = vector.load %arg4[%c0_8, %c0_9] : memref<4x512xf32, #tpu.memory_space<vmem>>, vector<4x512xf32>
    tpu.vector_store %arg4[%c0_8, %c0_9], %15 {strides = array<i32>} : memref<4x512xf32, #tpu.memory_space<vmem>>, vector<4x512xf32>,
    %cst_10 = arith.constant dense<0.000000e+00> : vector<4xf32>
    %17 = vector.multi_reduction <add>, %15, %cst_10 [1] : vector<4x512xf32> to vector<4xf32>
    %18 = vector.shape_cast %17 : vector<4xf32> to vector<4x1xf32>
    %c0_11 = arith.constant 0 : index
    %c0_12 = arith.constant 0 : index
    %c0_13 = arith.constant 0 : index
    %19 = vector.load %arg5[%c0_11, %c0_12, %c0_13] : memref<1x4x1xf32, #tpu.memory_space<vmem>>, vector<1x4x1xf32>
    %20 = vector.shape_cast %19 : vector<1x4x1xf32> to vector<4x1xf32>
    %21 = vector.shape_cast %18 : vector<4x1xf32> to vector<1x4x1xf32>
    tpu.vector_store %arg5[%c0_11, %c0_12, %c0_13], %21 {strides = array<i32>} : memref<1x4x1xf32, #tpu.memory_space<vmem>>, vector<1x4x1xf32>,
    %22 = arith.mulf %15, %15 : vector<4x512xf32>
    %cst_14 = arith.constant dense<0.000000e+00> : vector<4xf32>
    %23 = vector.multi_reduction <add>, %22, %cst_14 [1] : vector<4x512xf32> to vector<4xf32>
    %24 = vector.shape_cast %23 : vector<4xf32> to vector<4x1xf32>
    %c0_15 = arith.constant 0 : index
    %c0_16 = arith.constant 0 : index
    %c0_17 = arith.constant 0 : index
    %25 = vector.load %arg6[%c0_15, %c0_16, %c0_17] : memref<1x4x1xf32, #tpu.memory_space<vmem>>, vector<1x4x1xf32>
    %26 = vector.shape_cast %25 : vector<1x4x1xf32> to vector<4x1xf32>
    %27 = vector.shape_cast %24 : vector<4x1xf32> to vector<1x4x1xf32>
    tpu.vector_store %arg6[%c0_15, %c0_16, %c0_17], %27 {strides = array<i32>} : memref<1x4x1xf32, #tpu.memory_space<vmem>>, vector<1x4x1xf32>,
    return
  }
  func.func @transform_0(%arg0: i32) -> (i32, i32) {
    %c0_i32 = arith.constant 0 : i32
    %c0_i32_0 = arith.constant 0 : i32
    return %c0_i32, %arg0 : i32, i32
  }
  func.func @transform_1(%arg0: i32) -> (i32, i32) {
    %c0_i32 = arith.constant 0 : i32
    %c0_i32_0 = arith.constant 0 : i32
    %c0_i32_1 = arith.constant 0 : i32
    return %c0_i32, %c0_i32_0 : i32, i32
  }
  func.func @transform_2(%arg0: i32) -> (i32, i32) {
    %c0_i32 = arith.constant 0 : i32
    %c0_i32_0 = arith.constant 0 : i32
    %c0_i32_1 = arith.constant 0 : i32
    return %c0_i32, %c0_i32_0 : i32, i32
  }
  func.func @transform_3(%arg0: i32) -> (i32, i32) {
    %c0_i32 = arith.constant 0 : i32
    %c0_i32_0 = arith.constant 0 : i32
    return %c0_i32, %arg0 : i32, i32
  }
  func.func @transform_4(%arg0: i32) -> (i32, i32, i32) {
    %c0_i32 = arith.constant 0 : i32
    %c0_i32_0 = arith.constant 0 : i32
    %c0_i32_1 = arith.constant 0 : i32
    return %arg0, %c0_i32, %c0_i32_0 : i32, i32, i32
  }
  func.func @transform_5(%arg0: i32) -> (i32, i32, i32) {
    %c0_i32 = arith.constant 0 : i32
    %c0_i32_0 = arith.constant 0 : i32
    %c0_i32_1 = arith.constant 0 : i32
    return %arg0, %c0_i32, %c0_i32_0 : i32, i32, i32
  }
}

module attributes {stable_mosaic.version = 11 : i64} {
  func.func @_gemm_relu_stats_kernel(%arg0: i32, %arg1: memref<48x512xbf16, #tpu.memory_space<vmem>>, %arg2: memref<4x48xbf16, #tpu.memory_space<vmem>>, %arg3: memref<4x1xf32, #tpu.memory_space<vmem>>, %arg4: memref<4x512xf32, #tpu.memory_space<vmem>>, %arg5: memref<1x4x1xf32, #tpu.memory_space<vmem>>, %arg6: memref<1x4x1xf32, #tpu.memory_space<vmem>>) attributes {dimension_semantics = [#tpu.dimension_semantics<parallel>], iteration_bounds = array<i64: 1>, scalar_prefetch = 0 : i64, scratch_operands = 0 : i64, tpu.core_type = #tpu.core_type<tc>, window_params = [{transform_indices = @transform_0, window_bounds = array<i64: 48, 512>}, {pipeline_mode = #tpu.pipeline_mode<synchronous>, transform_indices = @transform_1, window_bounds = array<i64: 4, 48>}, {pipeline_mode = #tpu.pipeline_mode<synchronous>, transform_indices = @transform_2, window_bounds = array<i64: 4, 1>}, {transform_indices = @transform_3, window_bounds = array<i64: 4, 512>}, {transform_indices = @transform_4, window_bounds = array<i64: 1, 4, 1>}, {transform_indices = @transform_5, window_bounds = array<i64: 1, 4, 1>}]} {
    %c0 = arith.constant 0 : index
    %c0_0 = arith.constant 0 : index
    %0 = vector.load %arg2[%c0, %c0_0] : memref<4x48xbf16, #tpu.memory_space<vmem>>, vector<4x48xbf16>
    %c0_1 = arith.constant 0 : index
    %c0_2 = arith.constant 0 : index
    %1 = vector.load %arg1[%c0_1, %c0_2] : memref<48x512xbf16, #tpu.memory_space<vmem>>, vector<48x512xbf16>
    %cst = arith.constant dense<0.000000e+00> : vector<4x512xf32>
    %2 = tpu.matmul %0, %1, %cst {dimension_numbers = #tpu.dot_dimension_numbers<[1], [0], [0], [1], [0, 0, 1, 1], [], []>} : vector<4x48xbf16>, vector<48x512xbf16>, vector<4x512xf32> -> vector<4x512xf32>
    %c0_3 = arith.constant 0 : index
    %c0_4 = arith.constant 0 : index
    %3 = vector.load %arg3[%c0_3, %c0_4] : memref<4x1xf32, #tpu.memory_space<vmem>>, vector<4x1xf32>
    %4 = vector.broadcast %3 : vector<4x1xf32> to vector<4x512xf32>
    %5 = arith.addf %2, %4 : vector<4x512xf32>
    %cst_5 = arith.constant 0.000000e+00 : f32
    %6 = vector.broadcast %cst_5 : f32 to vector<4x512xf32>
    %7 = arith.maximumf %5, %6 : vector<4x512xf32>
    %c512_i32 = arith.constant 512 : i32
    %8 = arith.muli %arg0, %c512_i32 : i32
    %9 = tpu.iota {dimensions = array<i32: 1>} : vector<4x512xi32>
    %10 = vector.broadcast %8 : i32 to vector<4x512xi32>
    %11 = arith.addi %10, %9 : vector<4x512xi32>
    %c512_i32_6 = arith.constant 512 : i32
    %12 = vector.broadcast %c512_i32_6 : i32 to vector<4x512xi32>
    %13 = arith.cmpi slt, %11, %12 : vector<4x512xi32>
    %cst_7 = arith.constant 0.000000e+00 : f32
    %14 = vector.broadcast %cst_7 : f32 to vector<4x512xf32>
    %15 = arith.select %13, %7, %14 : vector<4x512xi1>, vector<4x512xf32>
    %c0_8 = arith.constant 0 : index
    %c0_9 = arith.constant 0 : index
    %16 = vector.load %arg4[%c0_8, %c0_9] : memref<4x512xf32, #tpu.memory_space<vmem>>, vector<4x512xf32>
    tpu.vector_store %arg4[%c0_8, %c0_9], %15 {strides = array<i32>} : memref<4x512xf32, #tpu.memory_space<vmem>>, vector<4x512xf32>,
    %cst_10 = arith.constant dense<0.000000e+00> : vector<4xf32>
    %17 = vector.multi_reduction <add>, %15, %cst_10 [1] : vector<4x512xf32> to vector<4xf32>
    %18 = vector.shape_cast %17 : vector<4xf32> to vector<4x1xf32>
    %c0_11 = arith.constant 0 : index
    %c0_12 = arith.constant 0 : index
    %c0_13 = arith.constant 0 : index
    %19 = vector.load %arg5[%c0_11, %c0_12, %c0_13] : memref<1x4x1xf32, #tpu.memory_space<vmem>>, vector<1x4x1xf32>
    %20 = vector.shape_cast %19 : vector<1x4x1xf32> to vector<4x1xf32>
    %21 = vector.shape_cast %18 : vector<4x1xf32> to vector<1x4x1xf32>
    tpu.vector_store %arg5[%c0_11, %c0_12, %c0_13], %21 {strides = array<i32>} : memref<1x4x1xf32, #tpu.memory_space<vmem>>, vector<1x4x1xf32>,
    %22 = arith.mulf %15, %15 : vector<4x512xf32>
    %cst_14 = arith.constant dense<0.000000e+00> : vector<4xf32>
    %23 = vector.multi_reduction <add>, %22, %cst_14 [1] : vector<4x512xf32> to vector<4xf32>
    %24 = vector.shape_cast %23 : vector<4xf32> to vector<4x1xf32>
    %c0_15 = arith.constant 0 : index
    %c0_16 = arith.constant 0 : index
    %c0_17 = arith.constant 0 : index
    %25 = vector.load %arg6[%c0_15, %c0_16, %c0_17] : memref<1x4x1xf32, #tpu.memory_space<vmem>>, vector<1x4x1xf32>
    %26 = vector.shape_cast %25 : vector<1x4x1xf32> to vector<4x1xf32>
    %27 = vector.shape_cast %24 : vector<4x1xf32> to vector<1x4x1xf32>
    tpu.vector_store %arg6[%c0_15, %c0_16, %c0_17], %27 {strides = array<i32>} : memref<1x4x1xf32, #tpu.memory_space<vmem>>, vector<1x4x1xf32>,
    return
  }
  func.func @transform_0(%arg0: i32) -> (i32, i32) {
    %c0_i32 = arith.constant 0 : i32
    %c0_i32_0 = arith.constant 0 : i32
    return %c0_i32, %arg0 : i32, i32
  }
  func.func @transform_1(%arg0: i32) -> (i32, i32) {
    %c0_i32 = arith.constant 0 : i32
    %c0_i32_0 = arith.constant 0 : i32
    %c0_i32_1 = arith.constant 0 : i32
    return %c0_i32, %c0_i32_0 : i32, i32
  }
  func.func @transform_2(%arg0: i32) -> (i32, i32) {
    %c0_i32 = arith.constant 0 : i32
    %c0_i32_0 = arith.constant 0 : i32
    %c0_i32_1 = arith.constant 0 : i32
    return %c0_i32, %c0_i32_0 : i32, i32
  }
  func.func @transform_3(%arg0: i32) -> (i32, i32) {
    %c0_i32 = arith.constant 0 : i32
    %c0_i32_0 = arith.constant 0 : i32
    return %c0_i32, %arg0 : i32, i32
  }
  func.func @transform_4(%arg0: i32) -> (i32, i32, i32) {
    %c0_i32 = arith.constant 0 : i32
    %c0_i32_0 = arith.constant 0 : i32
    %c0_i32_1 = arith.constant 0 : i32
    return %arg0, %c0_i32, %c0_i32_0 : i32, i32, i32
  }
  func.func @transform_5(%arg0: i32) -> (i32, i32, i32) {
    %c0_i32 = arith.constant 0 : i32
    %c0_i32_0 = arith.constant 0 : i32
    %c0_i32_1 = arith.constant 0 : i32
    return %arg0, %c0_i32, %c0_i32_0 : i32, i32, i32
  }
}

module attributes {stable_mosaic.version = 11 : i64} {
  func.func @_gemm_relu_stats_kernel(%arg0: i32, %arg1: memref<32x512xbf16, #tpu.memory_space<vmem>>, %arg2: memref<4x32xbf16, #tpu.memory_space<vmem>>, %arg3: memref<4x1xf32, #tpu.memory_space<vmem>>, %arg4: memref<4x512xf32, #tpu.memory_space<vmem>>, %arg5: memref<1x4x1xf32, #tpu.memory_space<vmem>>, %arg6: memref<1x4x1xf32, #tpu.memory_space<vmem>>) attributes {dimension_semantics = [#tpu.dimension_semantics<parallel>], iteration_bounds = array<i64: 1>, scalar_prefetch = 0 : i64, scratch_operands = 0 : i64, tpu.core_type = #tpu.core_type<tc>, window_params = [{transform_indices = @transform_0, window_bounds = array<i64: 32, 512>}, {pipeline_mode = #tpu.pipeline_mode<synchronous>, transform_indices = @transform_1, window_bounds = array<i64: 4, 32>}, {pipeline_mode = #tpu.pipeline_mode<synchronous>, transform_indices = @transform_2, window_bounds = array<i64: 4, 1>}, {transform_indices = @transform_3, window_bounds = array<i64: 4, 512>}, {transform_indices = @transform_4, window_bounds = array<i64: 1, 4, 1>}, {transform_indices = @transform_5, window_bounds = array<i64: 1, 4, 1>}]} {
    %c0 = arith.constant 0 : index
    %c0_0 = arith.constant 0 : index
    %0 = vector.load %arg2[%c0, %c0_0] : memref<4x32xbf16, #tpu.memory_space<vmem>>, vector<4x32xbf16>
    %c0_1 = arith.constant 0 : index
    %c0_2 = arith.constant 0 : index
    %1 = vector.load %arg1[%c0_1, %c0_2] : memref<32x512xbf16, #tpu.memory_space<vmem>>, vector<32x512xbf16>
    %cst = arith.constant dense<0.000000e+00> : vector<4x512xf32>
    %2 = tpu.matmul %0, %1, %cst {dimension_numbers = #tpu.dot_dimension_numbers<[1], [0], [0], [1], [0, 0, 1, 1], [], []>} : vector<4x32xbf16>, vector<32x512xbf16>, vector<4x512xf32> -> vector<4x512xf32>
    %c0_3 = arith.constant 0 : index
    %c0_4 = arith.constant 0 : index
    %3 = vector.load %arg3[%c0_3, %c0_4] : memref<4x1xf32, #tpu.memory_space<vmem>>, vector<4x1xf32>
    %4 = vector.broadcast %3 : vector<4x1xf32> to vector<4x512xf32>
    %5 = arith.addf %2, %4 : vector<4x512xf32>
    %cst_5 = arith.constant 0.000000e+00 : f32
    %6 = vector.broadcast %cst_5 : f32 to vector<4x512xf32>
    %7 = arith.maximumf %5, %6 : vector<4x512xf32>
    %c512_i32 = arith.constant 512 : i32
    %8 = arith.muli %arg0, %c512_i32 : i32
    %9 = tpu.iota {dimensions = array<i32: 1>} : vector<4x512xi32>
    %10 = vector.broadcast %8 : i32 to vector<4x512xi32>
    %11 = arith.addi %10, %9 : vector<4x512xi32>
    %c512_i32_6 = arith.constant 512 : i32
    %12 = vector.broadcast %c512_i32_6 : i32 to vector<4x512xi32>
    %13 = arith.cmpi slt, %11, %12 : vector<4x512xi32>
    %cst_7 = arith.constant 0.000000e+00 : f32
    %14 = vector.broadcast %cst_7 : f32 to vector<4x512xf32>
    %15 = arith.select %13, %7, %14 : vector<4x512xi1>, vector<4x512xf32>
    %c0_8 = arith.constant 0 : index
    %c0_9 = arith.constant 0 : index
    %16 = vector.load %arg4[%c0_8, %c0_9] : memref<4x512xf32, #tpu.memory_space<vmem>>, vector<4x512xf32>
    tpu.vector_store %arg4[%c0_8, %c0_9], %15 {strides = array<i32>} : memref<4x512xf32, #tpu.memory_space<vmem>>, vector<4x512xf32>,
    %cst_10 = arith.constant dense<0.000000e+00> : vector<4xf32>
    %17 = vector.multi_reduction <add>, %15, %cst_10 [1] : vector<4x512xf32> to vector<4xf32>
    %18 = vector.shape_cast %17 : vector<4xf32> to vector<4x1xf32>
    %c0_11 = arith.constant 0 : index
    %c0_12 = arith.constant 0 : index
    %c0_13 = arith.constant 0 : index
    %19 = vector.load %arg5[%c0_11, %c0_12, %c0_13] : memref<1x4x1xf32, #tpu.memory_space<vmem>>, vector<1x4x1xf32>
    %20 = vector.shape_cast %19 : vector<1x4x1xf32> to vector<4x1xf32>
    %21 = vector.shape_cast %18 : vector<4x1xf32> to vector<1x4x1xf32>
    tpu.vector_store %arg5[%c0_11, %c0_12, %c0_13], %21 {strides = array<i32>} : memref<1x4x1xf32, #tpu.memory_space<vmem>>, vector<1x4x1xf32>,
    %22 = arith.mulf %15, %15 : vector<4x512xf32>
    %cst_14 = arith.constant dense<0.000000e+00> : vector<4xf32>
    %23 = vector.multi_reduction <add>, %22, %cst_14 [1] : vector<4x512xf32> to vector<4xf32>
    %24 = vector.shape_cast %23 : vector<4xf32> to vector<4x1xf32>
    %c0_15 = arith.constant 0 : index
    %c0_16 = arith.constant 0 : index
    %c0_17 = arith.constant 0 : index
    %25 = vector.load %arg6[%c0_15, %c0_16, %c0_17] : memref<1x4x1xf32, #tpu.memory_space<vmem>>, vector<1x4x1xf32>
    %26 = vector.shape_cast %25 : vector<1x4x1xf32> to vector<4x1xf32>
    %27 = vector.shape_cast %24 : vector<4x1xf32> to vector<1x4x1xf32>
    tpu.vector_store %arg6[%c0_15, %c0_16, %c0_17], %27 {strides = array<i32>} : memref<1x4x1xf32, #tpu.memory_space<vmem>>, vector<1x4x1xf32>,
    return
  }
  func.func @transform_0(%arg0: i32) -> (i32, i32) {
    %c0_i32 = arith.constant 0 : i32
    %c0_i32_0 = arith.constant 0 : i32
    return %c0_i32, %arg0 : i32, i32
  }
  func.func @transform_1(%arg0: i32) -> (i32, i32) {
    %c0_i32 = arith.constant 0 : i32
    %c0_i32_0 = arith.constant 0 : i32
    %c0_i32_1 = arith.constant 0 : i32
    return %c0_i32, %c0_i32_0 : i32, i32
  }
  func.func @transform_2(%arg0: i32) -> (i32, i32) {
    %c0_i32 = arith.constant 0 : i32
    %c0_i32_0 = arith.constant 0 : i32
    %c0_i32_1 = arith.constant 0 : i32
    return %c0_i32, %c0_i32_0 : i32, i32
  }
  func.func @transform_3(%arg0: i32) -> (i32, i32) {
    %c0_i32 = arith.constant 0 : i32
    %c0_i32_0 = arith.constant 0 : i32
    return %c0_i32, %arg0 : i32, i32
  }
  func.func @transform_4(%arg0: i32) -> (i32, i32, i32) {
    %c0_i32 = arith.constant 0 : i32
    %c0_i32_0 = arith.constant 0 : i32
    %c0_i32_1 = arith.constant 0 : i32
    return %arg0, %c0_i32, %c0_i32_0 : i32, i32, i32
  }
  func.func @transform_5(%arg0: i32) -> (i32, i32, i32) {
    %c0_i32 = arith.constant 0 : i32
    %c0_i32_0 = arith.constant 0 : i32
    %c0_i32_1 = arith.constant 0 : i32
    return %arg0, %c0_i32, %c0_i32_0 : i32, i32, i32
  }
}

module attributes {stable_mosaic.version = 11 : i64} {
  func.func @_scale_shift_kernel(%arg0: i32, %arg1: memref<4x1024xf32, #tpu.memory_space<vmem>>, %arg2: memref<4x1xf32, #tpu.memory_space<vmem>>, %arg3: memref<4x1xf32, #tpu.memory_space<vmem>>, %arg4: memref<4x1024xf32, #tpu.memory_space<vmem>>) attributes {dimension_semantics = [#tpu.dimension_semantics<parallel>], iteration_bounds = array<i64: 2>, scalar_prefetch = 0 : i64, scratch_operands = 0 : i64, tpu.core_type = #tpu.core_type<tc>, window_params = [{transform_indices = @transform_0, window_bounds = array<i64: 4, 1024>}, {pipeline_mode = #tpu.pipeline_mode<synchronous>, transform_indices = @transform_1, window_bounds = array<i64: 4, 1>}, {pipeline_mode = #tpu.pipeline_mode<synchronous>, transform_indices = @transform_2, window_bounds = array<i64: 4, 1>}, {transform_indices = @transform_3, window_bounds = array<i64: 4, 1024>}]} {
    %c0 = arith.constant 0 : index
    %c0_0 = arith.constant 0 : index
    %0 = vector.load %arg1[%c0, %c0_0] : memref<4x1024xf32, #tpu.memory_space<vmem>>, vector<4x1024xf32>
    %c0_1 = arith.constant 0 : index
    %c0_2 = arith.constant 0 : index
    %1 = vector.load %arg2[%c0_1, %c0_2] : memref<4x1xf32, #tpu.memory_space<vmem>>, vector<4x1xf32>
    %2 = vector.broadcast %1 : vector<4x1xf32> to vector<4x1024xf32>
    %3 = arith.mulf %0, %2 : vector<4x1024xf32>
    %c0_3 = arith.constant 0 : index
    %c0_4 = arith.constant 0 : index
    %4 = vector.load %arg3[%c0_3, %c0_4] : memref<4x1xf32, #tpu.memory_space<vmem>>, vector<4x1xf32>
    %5 = vector.broadcast %4 : vector<4x1xf32> to vector<4x1024xf32>
    %6 = arith.addf %3, %5 : vector<4x1024xf32>
    %c0_5 = arith.constant 0 : index
    %c0_6 = arith.constant 0 : index
    %7 = vector.load %arg4[%c0_5, %c0_6] : memref<4x1024xf32, #tpu.memory_space<vmem>>, vector<4x1024xf32>
    tpu.vector_store %arg4[%c0_5, %c0_6], %6 {strides = array<i32>} : memref<4x1024xf32, #tpu.memory_space<vmem>>, vector<4x1024xf32>,
    return
  }
  func.func @transform_0(%arg0: i32) -> (i32, i32) {
    %c0_i32 = arith.constant 0 : i32
    %c0_i32_0 = arith.constant 0 : i32
    return %c0_i32, %arg0 : i32, i32
  }
  func.func @transform_1(%arg0: i32) -> (i32, i32) {
    %c0_i32 = arith.constant 0 : i32
    %c0_i32_0 = arith.constant 0 : i32
    %c0_i32_1 = arith.constant 0 : i32
    return %c0_i32, %c0_i32_0 : i32, i32
  }
  func.func @transform_2(%arg0: i32) -> (i32, i32) {
    %c0_i32 = arith.constant 0 : i32
    %c0_i32_0 = arith.constant 0 : i32
    %c0_i32_1 = arith.constant 0 : i32
    return %c0_i32, %c0_i32_0 : i32, i32
  }
  func.func @transform_3(%arg0: i32) -> (i32, i32) {
    %c0_i32 = arith.constant 0 : i32
    %c0_i32_0 = arith.constant 0 : i32
    return %c0_i32, %arg0 : i32, i32
  }
}

module attributes {stable_mosaic.version = 11 : i64} {
  func.func @_gemm_bias_kernel(%arg0: i32, %arg1: memref<196x1024xbf16, #tpu.memory_space<vmem>>, %arg2: memref<8x196xbf16, #tpu.memory_space<vmem>>, %arg3: memref<8x1xf32, #tpu.memory_space<vmem>>, %arg4: memref<8x1024xf32, #tpu.memory_space<vmem>>) attributes {dimension_semantics = [#tpu.dimension_semantics<parallel>], iteration_bounds = array<i64: 2>, scalar_prefetch = 0 : i64, scratch_operands = 0 : i64, tpu.core_type = #tpu.core_type<tc>, window_params = [{transform_indices = @transform_0, window_bounds = array<i64: 196, 1024>}, {pipeline_mode = #tpu.pipeline_mode<synchronous>, transform_indices = @transform_1, window_bounds = array<i64: 8, 196>}, {pipeline_mode = #tpu.pipeline_mode<synchronous>, transform_indices = @transform_2, window_bounds = array<i64: 8, 1>}, {transform_indices = @transform_3, window_bounds = array<i64: 8, 1024>}]} {
    %c0 = arith.constant 0 : index
    %c0_0 = arith.constant 0 : index
    %0 = vector.load %arg2[%c0, %c0_0] : memref<8x196xbf16, #tpu.memory_space<vmem>>, vector<8x196xbf16>
    %c0_1 = arith.constant 0 : index
    %c0_2 = arith.constant 0 : index
    %1 = vector.load %arg1[%c0_1, %c0_2] : memref<196x1024xbf16, #tpu.memory_space<vmem>>, vector<196x1024xbf16>
    %cst = arith.constant dense<0.000000e+00> : vector<8x1024xf32>
    %2 = tpu.matmul %0, %1, %cst {dimension_numbers = #tpu.dot_dimension_numbers<[1], [0], [0], [1], [0, 0, 1, 1], [], []>} : vector<8x196xbf16>, vector<196x1024xbf16>, vector<8x1024xf32> -> vector<8x1024xf32>
    %c0_3 = arith.constant 0 : index
    %c0_4 = arith.constant 0 : index
    %3 = vector.load %arg3[%c0_3, %c0_4] : memref<8x1xf32, #tpu.memory_space<vmem>>, vector<8x1xf32>
    %4 = vector.broadcast %3 : vector<8x1xf32> to vector<8x1024xf32>
    %5 = arith.addf %2, %4 : vector<8x1024xf32>
    %c0_5 = arith.constant 0 : index
    %c0_6 = arith.constant 0 : index
    %6 = vector.load %arg4[%c0_5, %c0_6] : memref<8x1024xf32, #tpu.memory_space<vmem>>, vector<8x1024xf32>
    tpu.vector_store %arg4[%c0_5, %c0_6], %5 {strides = array<i32>} : memref<8x1024xf32, #tpu.memory_space<vmem>>, vector<8x1024xf32>,
    return
  }
  func.func @transform_0(%arg0: i32) -> (i32, i32) {
    %c0_i32 = arith.constant 0 : i32
    %c0_i32_0 = arith.constant 0 : i32
    return %c0_i32, %arg0 : i32, i32
  }
  func.func @transform_1(%arg0: i32) -> (i32, i32) {
    %c0_i32 = arith.constant 0 : i32
    %c0_i32_0 = arith.constant 0 : i32
    %c0_i32_1 = arith.constant 0 : i32
    return %c0_i32, %c0_i32_0 : i32, i32
  }
  func.func @transform_2(%arg0: i32) -> (i32, i32) {
    %c0_i32 = arith.constant 0 : i32
    %c0_i32_0 = arith.constant 0 : i32
    %c0_i32_1 = arith.constant 0 : i32
    return %c0_i32, %c0_i32_0 : i32, i32
  }
  func.func @transform_3(%arg0: i32) -> (i32, i32) {
    %c0_i32 = arith.constant 0 : i32
    %c0_i32_0 = arith.constant 0 : i32
    return %c0_i32, %arg0 : i32, i32
  }
}

</mosaic_0001>

<llo_original>
// kernel: generator_forward.17
$region0: #{generator_forward.17}
  #allocation0 [shape = 'u32[]', space=smem, size = 0x4, offset = 0x4, fixed_abs, tag = 'smem constant byte address 0x4 - core index']
  #allocation1 [shape = 'u32[72,128]{1,0:T(1,128)}', space=vmem, size = 0x9000, scoped, tag = 'internal scratch']
  %s0 = inlined_call_operand.vmem [shape: bf16[2,16], index: 0, kind: input, shape index: {}]
  %s1 = inlined_call_operand.vmem [shape: bf16[16,288], index: 1, kind: input, shape index: {}]
  %s2 = inlined_call_operand.vmem [shape: f32[1,288], index: 2, kind: input, shape index: {}]
  %s3 = inlined_call_operand.vmem [shape: f32[1,288], index: 3, kind: input, shape index: {}]
  %s4 = inlined_call_operand.vmem [shape: f32[1,288], index: 4, kind: input, shape index: {}]
  %s5 = inlined_call_operand.vmem [shape: f32[2,288], index: 5, kind: output, shape index: {}]
  %s6 = sld [smem:[#allocation0]]
  $region30: #{generator_forward.17} parent=0
    _
  %s8 = ssub.s32 1, %s6
  %s9 = scalar_select 0, %s8, %s6
  // Predicated region
  $region2: #{generator_forward.17} parent=0 // pred_check
    _
  $region3: #{generator_forward.17} parent=0 // pred_check_branch
    %11 = sbr.rel (0) target = $region5
  $region4: #{generator_forward.17} parent=0 // pred_region
    _
  $region5: #{generator_forward.17} parent=0 // pred_fallthru
    _
  // Predicated region
  $region6: #{generator_forward.17} parent=0 // pred_check
    _
  $region7: #{generator_forward.17} parent=0 // pred_check_branch
    %13 = sbr.rel (0) target = $region9
  $region8: #{generator_forward.17} parent=0 // pred_region
    _
  $region9: #{generator_forward.17} parent=0 // pred_fallthru
    _
  // Predicated region
  $region10: #{generator_forward.17} parent=0 // pred_check
    _
  $region11: #{generator_forward.17} parent=0 // pred_check_branch
    %15 = sbr.rel (0) target = $region13
  $region12: #{generator_forward.17} parent=0 // pred_region
    _
  $region13: #{generator_forward.17} parent=0 // pred_fallthru
    _
  // Predicated region
  $region14: #{generator_forward.17} parent=0 // pred_check
    _
  $region15: #{generator_forward.17} parent=0 // pred_check_branch
    %17 = sbr.rel (0) target = $region17
  $region16: #{generator_forward.17} parent=0 // pred_region
    _
  $region17: #{generator_forward.17} parent=0 // pred_fallthru
    _
  // Predicated region
  $region18: #{generator_forward.17} parent=0 // pred_check
    _
  $region19: #{generator_forward.17} parent=0 // pred_check_branch
    %19 = sbr.rel (0) target = $region21
  $region20: #{generator_forward.17} parent=0 // pred_region
    _
  $region21: #{generator_forward.17} parent=0 // pred_fallthru
    _
  %v21 = vld [vmem:[%s0] sm:$0x1]
  %v22 = vld [vmem:[%s1] sm:$0xff]
  %v23 = vld [vmem:[%s1 + $0x8] sm:$0xf]
  %v24 = vld [vmem:[%s1 + $0xc] sm:$0xff]
  %v25 = vld [vmem:[%s1 + $0x14] sm:$0xf]
  %v26 = vld [vmem:[%s2] sm:$0x7]
  %v28 = vperm.slane %v26, 0
  %v29 = vperm.slane %v26, 1
  %v30 = vperm.slane %v26, 2
  %v38 = vunpack.c.l.b16 %v22
  %v39 = vunpack.c.h.b16 %v22
  %v40 = vunpack.c.l.b16 %v23
  %v41 = vunpack.c.l.b16 %v24
  %v42 = vunpack.c.h.b16 %v24
  %v43 = vunpack.c.l.b16 %v25
  %v44 = vpack.c.b16 %v41, %v38
  %v45 = vpack.c.b16 %v42, %v39
  %v46 = vpack.c.b16 %v43, %v40
  %vm50 = vcmask 130048
  %v52 = vsel %vm50, %v21, 0
  %54 = vmatpush.bf16.msra.mxu0 0
  %55 = vmatpush.bf16.msra.mxu0 0
  %56 = vmatpush.bf16.msra.mxu0 0
  %57 = vmatpush.bf16.msra.mxu0 0
  %58 = vmatpush.bf16.msra.mxu0 0
  %59 = vmatpush.bf16.msra.mxu0 0
  %60 = vmatpush.bf16.msra.mxu0 0
  %61 = vmatpush.bf16.msra.mxu0 %v44
  %62 = vmatmul.bf16.gmra.mxu0 %v52
  %v63 = vpop.f32.mrf.mxu0
  %v64 = vadd.f32 %v28, %v63
  %v65 = vpop.f32.mrf.mxu0
  %66 = vdwg.mxu0
  %67 = vmatpush.bf16.msra.mxu0 0
  %68 = vmatpush.bf16.msra.mxu0 0
  %69 = vmatpush.bf16.msra.mxu0 0
  %70 = vmatpush.bf16.msra.mxu0 0
  %71 = vmatpush.bf16.msra.mxu0 0
  %72 = vmatpush.bf16.msra.mxu0 0
  %73 = vmatpush.bf16.msra.mxu0 0
  %74 = vmatpush.bf16.msra.mxu0 %v45
  %75 = vmatmul.bf16.gmra.mxu0 %v52
  %v76 = vpop.f32.mrf.mxu0
  %v77 = vadd.f32 %v29, %v76
  %v78 = vpop.f32.mrf.mxu0
  %79 = vdwg.mxu0
  %80 = vmatpush.bf16.msra.mxu0 0
  %81 = vmatpush.bf16.msra.mxu0 0
  %82 = vmatpush.bf16.msra.mxu0 0
  %83 = vmatpush.bf16.msra.mxu0 0
  %84 = vmatpush.bf16.msra.mxu0 0
  %85 = vmatpush.bf16.msra.mxu0 0
  %86 = vmatpush.bf16.msra.mxu0 0
  %87 = vmatpush.bf16.msra.mxu0 %v46
  %88 = vmatmul.bf16.gmra.mxu0 %v52
  %v89 = vpop.f32.mrf.mxu0
  %v90 = vadd.f32 %v30, %v89
  %v91 = vpop.f32.mrf.mxu0
  %92 = vdwg.mxu0
  %v93 = vmax.f32 %v64, 0.0
  %v94 = vmax.f32 %v77, 0.0
  %v95 = vmax.f32 %v90, 0.0
  %vm96 = vcmask 1041408
  %v97 = vsel %vm96, %v93, 0.0
  %v98 = vrot.slane %v97, 4
  %v99 = vadd.f32 %v97, %v98
  %v100 = vrot.slane %v99, 2
  %v101 = vadd.f32 %v99, %v100
  %v102 = vrot.slane %v101, 1
  %v103 = vadd.f32 %v101, %v102
  %v104 = vsel %vm96, %v94, 0.0
  %v105 = vrot.slane %v104, 4
  %v106 = vadd.f32 %v104, %v105
  %v107 = vrot.slane %v106, 2
  %v108 = vadd.f32 %v106, %v107
  %v109 = vrot.slane %v108, 1
  %v110 = vadd.f32 %v108, %v109
  %vm111 = vcmask 254976
  %v112 = vsel %vm111, %v95, 0.0
  %v113 = vrot.slane %v112, 4
  %v114 = vadd.f32 %v112, %v113
  %v115 = vrot.slane %v114, 2
  %v116 = vadd.f32 %v114, %v115
  %v117 = vrot.slane %v116, 1
  %v118 = vadd.f32 %v116, %v117
  %v119 = vrcp.pop 2.0
  %v120 = vmul.f32 2.0, %v119
  %v121 = vsub.f32 1.0, %v120
  %v122 = vmul.f32 %v119, %v121
  %v123 = vadd.f32 %v119, %v122
  %vm124 = vweird.f32 %v119
  %v125 = vsel %vm124, %v119, %v123
  %v126 = vmul.f32 %v103, %v125
  %v127 = vmul.f32 %v110, %v125
  %v128 = vmul.f32 %v118, %v125
  %v129 = vsub.f32 %v93, %v126
  %v130 = vsub.f32 %v94, %v127
  %v131 = vsub.f32 %v95, %v128
  %v132 = vmul.f32 %v129, %v129
  %v133 = vmul.f32 %v130, %v130
  %v134 = vmul.f32 %v131, %v131
  %v135 = vsel %vm96, %v132, 0.0
  %v136 = vrot.slane %v135, 4
  %v137 = vadd.f32 %v135, %v136
  %v138 = vrot.slane %v137, 2
  %v139 = vadd.f32 %v137, %v138
  %v140 = vrot.slane %v139, 1
  %v141 = vadd.f32 %v139, %v140
  %v142 = vsel %vm96, %v133, 0.0
  %v143 = vrot.slane %v142, 4
  %v144 = vadd.f32 %v142, %v143
  %v145 = vrot.slane %v144, 2
  %v146 = vadd.f32 %v144, %v145
  %v147 = vrot.slane %v146, 1
  %v148 = vadd.f32 %v146, %v147
  %v149 = vsel %vm111, %v134, 0.0
  %v150 = vrot.slane %v149, 4
  %v151 = vadd.f32 %v149, %v150
  %v152 = vrot.slane %v151, 2
  %v153 = vadd.f32 %v151, %v152
  %v154 = vrot.slane %v153, 1
  %v155 = vadd.f32 %v153, %v154
  %v156 = vmul.f32 %v141, %v125
  %v157 = vmul.f32 %v148, %v125
  %v158 = vmul.f32 %v155, %v125
  %v159 = vadd.f32 %v156, 1e-05
  %v160 = vadd.f32 %v157, 1e-05
  %v161 = vadd.f32 %v158, 1e-05
  %v162 = vrsqrt.pop %v159
  %v163 = vmul.f32 %v162, %v159
  %v164 = vmul.f32 %v163, %v162
  %v165 = vmul.f32 0.5, %v164
  %v166 = vsub.f32 1.5, %v165
  %v167 = vmul.f32 %v162, %v166
  %vm168 = vweird.f32 %v159
  %vm169 = vweird.f32 %v162
  %vm170 = vmor %vm168, %vm169
  %v171 = vsel %vm170, %v162, %v167
  %v172 = vrsqrt.pop %v160
  %v173 = vmul.f32 %v172, %v160
  %v174 = vmul.f32 %v173, %v172
  %v175 = vmul.f32 0.5, %v174
  %v176 = vsub.f32 1.5, %v175
  %v177 = vmul.f32 %v172, %v176
  %vm178 = vweird.f32 %v160
  %vm179 = vweird.f32 %v172
  %vm180 = vmor %vm178, %vm179
  %v181 = vsel %vm180, %v172, %v177
  %v182 = vrsqrt.pop %v161
  %v183 = vmul.f32 %v182, %v161
  %v184 = vmul.f32 %v183, %v182
  %v185 = vmul.f32 0.5, %v184
  %v186 = vsub.f32 1.5, %v185
  %v187 = vmul.f32 %v182, %v186
  %vm188 = vweird.f32 %v161
  %vm189 = vweird.f32 %v182
  %vm190 = vmor %vm188, %vm189
  %v191 = vsel %vm190, %v182, %v187
  %v192 = vmul.f32 %v129, %v171
  %v193 = vmul.f32 %v130, %v181
  %v194 = vmul.f32 %v131, %v191
  %v195 = vld [vmem:[%s3] sm:$0x7]
  %v197 = vperm.slane %v195, 0
  %v198 = vperm.slane %v195, 1
  %v199 = vperm.slane %v195, 2
  %v203 = vmul.f32 %v192, %v197
  %v204 = vmul.f32 %v193, %v198
  %v205 = vmul.f32 %v194, %v199
  %v206 = vld [vmem:[%s4] sm:$0x7]
  %v208 = vperm.slane %v206, 0
  %v209 = vperm.slane %v206, 1
  %v210 = vperm.slane %v206, 2
  %v214 = vadd.f32 %v203, %v208
  %v215 = vadd.f32 %v204, %v209
  %v216 = vadd.f32 %v205, %v210
  %v220 = vrot.slane %v215, 6
  %v221 = vrot.slane %v216, 4
  %v222 = vsel %vm96, %v214, %v220
  %vm223 = vcmask 1043456
  %v224 = vsel %vm223, %v222, %v221
  %vm226 = vcmask 1043458
  %vm227 = vmor %vm226, %vm96
  %vm228 = vcmask 259076
  %vm229 = vmor %vm228, %vm227
  %230 = vst.msk [vmem:[%s5] sm:$0x3f] %vm229, %v224
  // Predicated region
  $region22: #{generator_forward.17} parent=0 // pred_check
    _
  $region23: #{generator_forward.17} parent=0 // pred_check_branch
    %232 = sbr.rel (0) target = $region25
  $region24: #{generator_forward.17} parent=0 // pred_region
    _
  $region25: #{generator_forward.17} parent=0 // pred_fallthru
    _
  // Predicated region
  $region26: #{generator_forward.17} parent=0 // pred_check
    _
  $region27: #{generator_forward.17} parent=0 // pred_check_branch
    %234 = sbr.rel (0) target = $region29
  $region28: #{generator_forward.17} parent=0 // pred_region
    _
  $region29: #{generator_forward.17} parent=0 // pred_fallthru
    _

// kernel: generator_forward.21
$region0: #{generator_forward.21}
  #allocation0 [shape = 'u32[]', space=smem, size = 0x4, offset = 0x4, fixed_abs, tag = 'smem constant byte address 0x4 - core index']
  #allocation1 [shape = 'u32[72,128]{1,0:T(1,128)}', space=vmem, size = 0x9000, scoped, tag = 'internal scratch']
  %s0 = inlined_call_operand.vmem [shape: bf16[288,18], index: 0, kind: input, shape index: {}]
  %s1 = inlined_call_operand.vmem [shape: bf16[16,288], index: 1, kind: input, shape index: {}]
  %s2 = inlined_call_operand.vmem [shape: f32[16,1], index: 2, kind: input, shape index: {}]
  %s3 = inlined_call_operand.vmem [shape: f32[16,18], index: 3, kind: output, shape index: {0}]
  %s4 = inlined_call_operand.vmem [shape: f32[1,16,1], index: 4, kind: output, shape index: {1}]
  %s5 = inlined_call_operand.vmem [shape: f32[1,16,1], index: 5, kind: output, shape index: {2}]
  %6 = xla_tuple %s3, %s4, %s5
  %s7 = sld [smem:[#allocation0]]
  $region38: #{generator_forward.21} parent=0
    _
  %s9 = ssub.s32 1, %s7
  %s10 = scalar_select 0, %s9, %s7
  // Predicated region
  $region2: #{generator_forward.21} parent=0 // pred_check
    _
  $region3: #{generator_forward.21} parent=0 // pred_check_branch
    %12 = sbr.rel (0) target = $region5
  $region4: #{generator_forward.21} parent=0 // pred_region
    _
  $region5: #{generator_forward.21} parent=0 // pred_fallthru
    _
  // Predicated region
  $region6: #{generator_forward.21} parent=0 // pred_check
    _
  $region7: #{generator_forward.21} parent=0 // pred_check_branch
    %14 = sbr.rel (0) target = $region9
  $region8: #{generator_forward.21} parent=0 // pred_region
    _
  $region9: #{generator_forward.21} parent=0 // pred_fallthru
    _
  // Predicated region
  $region10: #{generator_forward.21} parent=0 // pred_check
    _
  $region11: #{generator_forward.21} parent=0 // pred_check_branch
    %16 = sbr.rel (0) target = $region13
  $region12: #{generator_forward.21} parent=0 // pred_region
    _
  $region13: #{generator_forward.21} parent=0 // pred_fallthru
    _
  %v18 = vld [vmem:[%s1] sm:$0xff]
  %v19 = vld [vmem:[%s1 + $0x8] sm:$0xf]
  %v20 = vld [vmem:[%s1 + $0xc] sm:$0xff]
  %v21 = vld [vmem:[%s1 + $0x14] sm:$0xf]
  %v22 = vld [vmem:[%s0] sm:$0xf]
  %v23 = vld [vmem:[%s0 + $0x4] sm:$0xf]
  %v24 = vld [vmem:[%s0 + $0x8] sm:$0xf]
  %v25 = vld [vmem:[%s0 + $0xc] sm:$0xf]
  %v26 = vld [vmem:[%s0 + $0x10] sm:$0xf]
  %v27 = vld [vmem:[%s0 + $0x14] sm:$0xf]
  %v28 = vld [vmem:[%s0 + $0x18] sm:$0xf]
  %v29 = vld [vmem:[%s0 + $0x1c] sm:$0xf]
  %v30 = vld [vmem:[%s0 + $0x20] sm:$0xf]
  %v31 = vld [vmem:[%s0 + $0x24] sm:$0xf]
  %v32 = vld [vmem:[%s0 + $0x28] sm:$0xf]
  %v33 = vld [vmem:[%s0 + $0x2c] sm:$0xf]
  %v34 = vld [vmem:[%s0 + $0x30] sm:$0xf]
  %v35 = vld [vmem:[%s0 + $0x34] sm:$0xf]
  %v36 = vld [vmem:[%s0 + $0x38] sm:$0xf]
  %v37 = vld [vmem:[%s0 + $0x3c] sm:$0xf]
  %v38 = vld [vmem:[%s0 + $0x40] sm:$0xf]
  %v39 = vld [vmem:[%s0 + $0x44] sm:$0xf]
  %v40 = vld [vmem:[%s0 + $0x48] sm:$0xf]
  %v41 = vld [vmem:[%s0 + $0x4c] sm:$0xf]
  %v42 = vld [vmem:[%s0 + $0x50] sm:$0xf]
  %v43 = vld [vmem:[%s0 + $0x54] sm:$0xf]
  %v44 = vld [vmem:[%s0 + $0x58] sm:$0xf]
  %v45 = vld [vmem:[%s0 + $0x5c] sm:$0xf]
  %v46 = vld [vmem:[%s0 + $0x60] sm:$0xf]
  %v47 = vld [vmem:[%s0 + $0x64] sm:$0xf]
  %v48 = vld [vmem:[%s0 + $0x68] sm:$0xf]
  %v49 = vld [vmem:[%s0 + $0x6c] sm:$0xf]
  %v50 = vld [vmem:[%s0 + $0x70] sm:$0xf]
  %v51 = vld [vmem:[%s0 + $0x74] sm:$0xf]
  %v52 = vld [vmem:[%s0 + $0x78] sm:$0xf]
  %v53 = vld [vmem:[%s0 + $0x7c] sm:$0xf]
  %v54 = vld [vmem:[%s0 + $0x80] sm:$0xf]
  %v55 = vld [vmem:[%s0 + $0x84] sm:$0xf]
  %v56 = vld [vmem:[%s0 + $0x88] sm:$0xf]
  %v57 = vld [vmem:[%s0 + $0x8c] sm:$0xf]
  %v58 = vld [vmem:[%s2] sm:$0xff]
  %v59 = vld [vmem:[%s2 + $0x8] sm:$0xff]
  %61 = vset.pattern.permute.xlu0 0
  %62 = vperm.xlu0 %61, %v58
  %v63 = vpop.permute.xlu0 %62
  %66 = vset.pattern.permute.xlu0 0
  %67 = vperm.xlu0 %66, %v59
  %v68 = vpop.permute.xlu0 %67
  %v74 = vunpack.c.l.b16 %v18
  %v75 = vunpack.c.h.b16 %v18
  %v76 = vunpack.c.l.b16 %v19
  %v77 = vunpack.c.l.b16 %v20
  %v78 = vunpack.c.h.b16 %v20
  %v79 = vunpack.c.l.b16 %v21
  %v80 = vpack.c.b16 %v77, %v74
  %v81 = vpack.c.b16 %v78, %v75
  %v82 = vpack.c.b16 %v79, %v76
  %v121 = vunpack.c.l.b16 %v22
  %v122 = vunpack.c.l.b16 %v23
  %v123 = vunpack.c.l.b16 %v24
  %v124 = vunpack.c.l.b16 %v25
  %v125 = vunpack.c.l.b16 %v26
  %v126 = vunpack.c.l.b16 %v27
  %v127 = vunpack.c.l.b16 %v28
  %v128 = vunpack.c.l.b16 %v29
  %v129 = vunpack.c.l.b16 %v30
  %v130 = vunpack.c.l.b16 %v31
  %v131 = vunpack.c.l.b16 %v32
  %v132 = vunpack.c.l.b16 %v33
  %v133 = vunpack.c.l.b16 %v34
  %v134 = vunpack.c.l.b16 %v35
  %v135 = vunpack.c.l.b16 %v36
  %v136 = vunpack.c.l.b16 %v37
  %v137 = vunpack.c.l.b16 %v38
  %v138 = vunpack.c.l.b16 %v39
  %v139 = vunpack.c.l.b16 %v40
  %v140 = vunpack.c.l.b16 %v41
  %v141 = vunpack.c.l.b16 %v42
  %v142 = vunpack.c.l.b16 %v43
  %v143 = vunpack.c.l.b16 %v44
  %v144 = vunpack.c.l.b16 %v45
  %v145 = vunpack.c.l.b16 %v46
  %v146 = vunpack.c.l.b16 %v47
  %v147 = vunpack.c.l.b16 %v48
  %v148 = vunpack.c.l.b16 %v49
  %v149 = vunpack.c.l.b16 %v50
  %v150 = vunpack.c.l.b16 %v51
  %v151 = vunpack.c.l.b16 %v52
  %v152 = vunpack.c.l.b16 %v53
  %v153 = vunpack.c.l.b16 %v54
  %v154 = vunpack.c.l.b16 %v55
  %v155 = vunpack.c.l.b16 %v56
  %v156 = vunpack.c.l.b16 %v57
  %v157 = vpack.c.b16 %v122, %v121
  %v158 = vpack.c.b16 %v124, %v123
  %v159 = vpack.c.b16 %v126, %v125
  %v160 = vpack.c.b16 %v128, %v127
  %v161 = vpack.c.b16 %v130, %v129
  %v162 = vpack.c.b16 %v132, %v131
  %v163 = vpack.c.b16 %v134, %v133
  %v164 = vpack.c.b16 %v136, %v135
  %v165 = vpack.c.b16 %v138, %v137
  %v166 = vpack.c.b16 %v140, %v139
  %v167 = vpack.c.b16 %v142, %v141
  %v168 = vpack.c.b16 %v144, %v143
  %v169 = vpack.c.b16 %v146, %v145
  %v170 = vpack.c.b16 %v148, %v147
  %v171 = vpack.c.b16 %v150, %v149
  %v172 = vpack.c.b16 %v152, %v151
  %v173 = vpack.c.b16 %v154, %v153
  %v174 = vpack.c.b16 %v156, %v155
  %vm193 = vcmask 261120
  %v195 = vsel %vm193, %v82, 0
  %197 = vmatpush.bf16.msra.mxu0 %v164
  %198 = vmatpush.bf16.msra.mxu0 %v163
  %199 = vmatpush.bf16.msra.mxu0 %v162
  %200 = vmatpush.bf16.msra.mxu0 %v161
  %201 = vmatpush.bf16.msra.mxu0 %v160
  %202 = vmatpush.bf16.msra.mxu0 %v159
  %203 = vmatpush.bf16.msra.mxu0 %v158
  %204 = vmatpush.bf16.msra.mxu0 %v157
  %205 = vmatmul.bf16.gmra.mxu0 %v80
  %v206 = vpop.f32.mrf.mxu0
  %v207 = vadd.f32 %v63, %v206
  %v208 = vpop.f32.mrf.mxu0
  %v209 = vadd.f32 %v68, %v208
  %210 = vdwg.mxu0
  %211 = vmatpush.bf16.msra.mxu0 %v172
  %212 = vmatpush.bf16.msra.mxu0 %v171
  %213 = vmatpush.bf16.msra.mxu0 %v170
  %214 = vmatpush.bf16.msra.mxu0 %v169
  %215 = vmatpush.bf16.msra.mxu0 %v168
  %216 = vmatpush.bf16.msra.mxu0 %v167
  %217 = vmatpush.bf16.msra.mxu0 %v166
  %218 = vmatpush.bf16.msra.mxu0 %v165
  %219 = vmatmul.bf16.gmra.mxu0 %v81
  %v220 = vpop.f32.mrf.mxu0
  %v221 = vadd.f32 %v207, %v220
  %v222 = vpop.f32.mrf.mxu0
  %v223 = vadd.f32 %v209, %v222
  %224 = vdwg.mxu0
  %225 = vmatpush.bf16.msra.mxu0 0
  %226 = vmatpush.bf16.msra.mxu0 0
  %227 = vmatpush.bf16.msra.mxu0 0
  %228 = vmatpush.bf16.msra.mxu0 0
  %229 = vmatpush.bf16.msra.mxu0 0
  %230 = vmatpush.bf16.msra.mxu0 0
  %231 = vmatpush.bf16.msra.mxu0 %v174
  %232 = vmatpush.bf16.msra.mxu0 %v173
  %233 = vmatmul.bf16.gmra.mxu0 %v195
  %v234 = vpop.f32.mrf.mxu0
  %v235 = vadd.f32 %v221, %v234
  %v236 = vpop.f32.mrf.mxu0
  %v237 = vadd.f32 %v223, %v236
  %238 = vdwg.mxu0
  %v239 = vmax.f32 %v235, 0.0
  %v240 = vmax.f32 %v237, 0.0
  %s241 = smul.u32 0, 18
  %v242 = vlaneseq
  %v243 = vand.u32 %v242, 127
  %v244 = vstv %s241
  %v245 = vadd.s32 %v244, %v243
  %vm246 = vcmp.lt.s32.totalorder %v245, 18
  %v247 = vsel %vm246, %v239, 0.0
  %v248 = vsel %vm246, %v240, 0.0
  %vm249 = vcmask 146432
  %250 = vst.msk [vmem:[%s3] sm:$0xff] %vm249, %v247
  %251 = vst.msk [vmem:[%s3 + $0x8] sm:$0xff] %vm249, %v248
  %v252 = vsel %vm249, %v247, 0.0
  %253 = vadd.xlane.f32.xlu0 %v252
  %v254 = vpop.xlane.xlu0 %253
  %v255 = vsel %vm249, %v248, 0.0
  %256 = vadd.xlane.f32.xlu0 %v255
  %v257 = vpop.xlane.xlu0 %256
  %vm258 = vcmask 7168
  %259 = vst.msk [vmem:[%s4] sm:$0xff] %vm258, %v254
  %260 = vst.msk [vmem:[%s4 + $0x8] sm:$0xff] %vm258, %v257
  %v261 = vmul.f32 %v247, %v247
  %v262 = vmul.f32 %v248, %v248
  %v263 = vsel %vm249, %v261, 0.0
  %264 = vadd.xlane.f32.xlu0 %v263
  %v265 = vpop.xlane.xlu0 %264
  %v266 = vsel %vm249, %v262, 0.0
  %267 = vadd.xlane.f32.xlu0 %v266
  %v268 = vpop.xlane.xlu0 %267
  %269 = vst.msk [vmem:[%s5] sm:$0xff] %vm258, %v265
  %270 = vst.msk [vmem:[%s5 + $0x8] sm:$0xff] %vm258, %v268
  // Predicated region
  $region14: #{generator_forward.21} parent=0 // pred_check
    _
  $region15: #{generator_forward.21} parent=0 // pred_check_branch
    %272 = sbr.rel (0) target = $region17
  $region16: #{generator_forward.21} parent=0 // pred_region
    _
  $region17: #{generator_forward.21} parent=0 // pred_fallthru
    _
  // Predicated region
  $region18: #{generator_forward.21} parent=0 // pred_check
    _
  $region19: #{generator_forward.21} parent=0 // pred_check_branch
    %274 = sbr.rel (0) target = $region21
  $region20: #{generator_forward.21} parent=0 // pred_region
    _
  $region21: #{generator_forward.21} parent=0 // pred_fallthru
    _
  // Predicated region
  $region22: #{generator_forward.21} parent=0 // pred_check
    _
  $region23: #{generator_forward.21} parent=0 // pred_check_branch
    %276 = sbr.rel (0) target = $region25
  $region24: #{generator_forward.21} parent=0 // pred_region
    _
  $region25: #{generator_forward.21} parent=0 // pred_fallthru
    _
  // Predicated region
  $region26: #{generator_forward.21} parent=0 // pred_check
    _
  $region27: #{generator_forward.21} parent=0 // pred_check_branch
    %278 = sbr.rel (0) target = $region29
  $region28: #{generator_forward.21} parent=0 // pred_region
    _
  $region29: #{generator_forward.21} parent=0 // pred_fallthru
    _
  // Predicated region
  $region30: #{generator_forward.21} parent=0 // pred_check
    _
  $region31: #{generator_forward.21} parent=0 // pred_check_branch
    %280 = sbr.rel (0) target = $region33
  $region32: #{generator_forward.21} parent=0 // pred_region
    _
  $region33: #{generator_forward.21} parent=0 // pred_fallthru
    _
  // Predicated region
  $region34: #{generator_forward.21} parent=0 // pred_check
    _
  $region35: #{generator_forward.21} parent=0 // pred_check_branch
    %282 = sbr.rel (0) target = $region37
  $region36: #{generator_forward.21} parent=0 // pred_region
    _
  $region37: #{generator_forward.21} parent=0 // pred_fallthru
    _

// kernel: generator_forward.20
$region0: #{generator_forward.20}
  #allocation0 [shape = 'u32[]', space=smem, size = 0x4, offset = 0x4, fixed_abs, tag = 'smem constant byte address 0x4 - core index']
  #allocation1 [shape = 'u32[72,128]{1,0:T(1,128)}', space=vmem, size = 0x9000, scoped, tag = 'internal scratch']
  %s0 = inlined_call_operand.vmem [shape: bf16[192,24], index: 0, kind: input, shape index: {}]
  %s1 = inlined_call_operand.vmem [shape: bf16[16,192], index: 1, kind: input, shape index: {}]
  %s2 = inlined_call_operand.vmem [shape: f32[16,1], index: 2, kind: input, shape index: {}]
  %s3 = inlined_call_operand.vmem [shape: f32[16,24], index: 3, kind: output, shape index: {0}]
  %s4 = inlined_call_operand.vmem [shape: f32[1,16,1], index: 4, kind: output, shape index: {1}]
  %s5 = inlined_call_operand.vmem [shape: f32[1,16,1], index: 5, kind: output, shape index: {2}]
  %6 = xla_tuple %s3, %s4, %s5
  %s7 = sld [smem:[#allocation0]]
  $region38: #{generator_forward.20} parent=0
    _
  %s9 = ssub.s32 1, %s7
  %s10 = scalar_select 0, %s9, %s7
  // Predicated region
  $region2: #{generator_forward.20} parent=0 // pred_check
    _
  $region3: #{generator_forward.20} parent=0 // pred_check_branch
    %12 = sbr.rel (0) target = $region5
  $region4: #{generator_forward.20} parent=0 // pred_region
    _
  $region5: #{generator_forward.20} parent=0 // pred_fallthru
    _
  // Predicated region
  $region6: #{generator_forward.20} parent=0 // pred_check
    _
  $region7: #{generator_forward.20} parent=0 // pred_check_branch
    %14 = sbr.rel (0) target = $region9
  $region8: #{generator_forward.20} parent=0 // pred_region
    _
  $region9: #{generator_forward.20} parent=0 // pred_fallthru
    _
  // Predicated region
  $region10: #{generator_forward.20} parent=0 // pred_check
    _
  $region11: #{generator_forward.20} parent=0 // pred_check_branch
    %16 = sbr.rel (0) target = $region13
  $region12: #{generator_forward.20} parent=0 // pred_region
    _
  $region13: #{generator_forward.20} parent=0 // pred_fallthru
    _
  %v18 = vld [vmem:[%s1] sm:$0xff]
  %v19 = vld [vmem:[%s1 + $0x8] sm:$0xff]
  %v20 = vld [vmem:[%s0] sm:$0xf]
  %v21 = vld [vmem:[%s0 + $0x4] sm:$0xf]
  %v22 = vld [vmem:[%s0 + $0x8] sm:$0xf]
  %v23 = vld [vmem:[%s0 + $0xc] sm:$0xf]
  %v24 = vld [vmem:[%s0 + $0x10] sm:$0xf]
  %v25 = vld [vmem:[%s0 + $0x14] sm:$0xf]
  %v26 = vld [vmem:[%s0 + $0x18] sm:$0xf]
  %v27 = vld [vmem:[%s0 + $0x1c] sm:$0xf]
  %v28 = vld [vmem:[%s0 + $0x20] sm:$0xf]
  %v29 = vld [vmem:[%s0 + $0x24] sm:$0xf]
  %v30 = vld [vmem:[%s0 + $0x28] sm:$0xf]
  %v31 = vld [vmem:[%s0 + $0x2c] sm:$0xf]
  %v32 = vld [vmem:[%s0 + $0x30] sm:$0xf]
  %v33 = vld [vmem:[%s0 + $0x34] sm:$0xf]
  %v34 = vld [vmem:[%s0 + $0x38] sm:$0xf]
  %v35 = vld [vmem:[%s0 + $0x3c] sm:$0xf]
  %v36 = vld [vmem:[%s0 + $0x40] sm:$0xf]
  %v37 = vld [vmem:[%s0 + $0x44] sm:$0xf]
  %v38 = vld [vmem:[%s0 + $0x48] sm:$0xf]
  %v39 = vld [vmem:[%s0 + $0x4c] sm:$0xf]
  %v40 = vld [vmem:[%s0 + $0x50] sm:$0xf]
  %v41 = vld [vmem:[%s0 + $0x54] sm:$0xf]
  %v42 = vld [vmem:[%s0 + $0x58] sm:$0xf]
  %v43 = vld [vmem:[%s0 + $0x5c] sm:$0xf]
  %v44 = vld [vmem:[%s2] sm:$0xff]
  %v45 = vld [vmem:[%s2 + $0x8] sm:$0xff]
  %47 = vset.pattern.permute.xlu0 0
  %48 = vperm.xlu0 %47, %v44
  %v49 = vpop.permute.xlu0 %48
  %52 = vset.pattern.permute.xlu0 0
  %53 = vperm.xlu0 %52, %v45
  %v54 = vpop.permute.xlu0 %53
  %v58 = vunpack.c.l.b16 %v18
  %v59 = vunpack.c.h.b16 %v18
  %v60 = vunpack.c.l.b16 %v19
  %v61 = vunpack.c.h.b16 %v19
  %v62 = vpack.c.b16 %v60, %v58
  %v63 = vpack.c.b16 %v61, %v59
  %v89 = vunpack.c.l.b16 %v20
  %v90 = vunpack.c.l.b16 %v21
  %v91 = vunpack.c.l.b16 %v22
  %v92 = vunpack.c.l.b16 %v23
  %v93 = vunpack.c.l.b16 %v24
  %v94 = vunpack.c.l.b16 %v25
  %v95 = vunpack.c.l.b16 %v26
  %v96 = vunpack.c.l.b16 %v27
  %v97 = vunpack.c.l.b16 %v28
  %v98 = vunpack.c.l.b16 %v29
  %v99 = vunpack.c.l.b16 %v30
  %v100 = vunpack.c.l.b16 %v31
  %v101 = vunpack.c.l.b16 %v32
  %v102 = vunpack.c.l.b16 %v33
  %v103 = vunpack.c.l.b16 %v34
  %v104 = vunpack.c.l.b16 %v35
  %v105 = vunpack.c.l.b16 %v36
  %v106 = vunpack.c.l.b16 %v37
  %v107 = vunpack.c.l.b16 %v38
  %v108 = vunpack.c.l.b16 %v39
  %v109 = vunpack.c.l.b16 %v40
  %v110 = vunpack.c.l.b16 %v41
  %v111 = vunpack.c.l.b16 %v42
  %v112 = vunpack.c.l.b16 %v43
  %v113 = vpack.c.b16 %v90, %v89
  %v114 = vpack.c.b16 %v92, %v91
  %v115 = vpack.c.b16 %v94, %v93
  %v116 = vpack.c.b16 %v96, %v95
  %v117 = vpack.c.b16 %v98, %v97
  %v118 = vpack.c.b16 %v100, %v99
  %v119 = vpack.c.b16 %v102, %v101
  %v120 = vpack.c.b16 %v104, %v103
  %v121 = vpack.c.b16 %v106, %v105
  %v122 = vpack.c.b16 %v108, %v107
  %v123 = vpack.c.b16 %v110, %v109
  %v124 = vpack.c.b16 %v112, %v111
  %vm137 = vcmask 523264
  %v139 = vsel %vm137, %v63, 0
  %141 = vmatpush.bf16.msra.mxu0 %v120
  %142 = vmatpush.bf16.msra.mxu0 %v119
  %143 = vmatpush.bf16.msra.mxu0 %v118
  %144 = vmatpush.bf16.msra.mxu0 %v117
  %145 = vmatpush.bf16.msra.mxu0 %v116
  %146 = vmatpush.bf16.msra.mxu0 %v115
  %147 = vmatpush.bf16.msra.mxu0 %v114
  %148 = vmatpush.bf16.msra.mxu0 %v113
  %149 = vmatmul.bf16.gmra.mxu0 %v62
  %v150 = vpop.f32.mrf.mxu0
  %v151 = vadd.f32 %v49, %v150
  %v152 = vpop.f32.mrf.mxu0
  %v153 = vadd.f32 %v54, %v152
  %154 = vdwg.mxu0
  %155 = vmatpush.bf16.msra.mxu0 0
  %156 = vmatpush.bf16.msra.mxu0 0
  %157 = vmatpush.bf16.msra.mxu0 0
  %158 = vmatpush.bf16.msra.mxu0 0
  %159 = vmatpush.bf16.msra.mxu0 %v124
  %160 = vmatpush.bf16.msra.mxu0 %v123
  %161 = vmatpush.bf16.msra.mxu0 %v122
  %162 = vmatpush.bf16.msra.mxu0 %v121
  %163 = vmatmul.bf16.gmra.mxu0 %v139
  %v164 = vpop.f32.mrf.mxu0
  %v165 = vadd.f32 %v151, %v164
  %v166 = vpop.f32.mrf.mxu0
  %v167 = vadd.f32 %v153, %v166
  %168 = vdwg.mxu0
  %v169 = vmax.f32 %v165, 0.0
  %v170 = vmax.f32 %v167, 0.0
  %s171 = smul.u32 0, 24
  %v172 = vlaneseq
  %v173 = vand.u32 %v172, 127
  %v174 = vstv %s171
  %v175 = vadd.s32 %v174, %v173
  %vm176 = vcmp.lt.s32.totalorder %v175, 24
  %v177 = vsel %vm176, %v169, 0.0
  %v178 = vsel %vm176, %v170, 0.0
  %vm179 = vcmask 195584
  %180 = vst.msk [vmem:[%s3] sm:$0xff] %vm179, %v177
  %181 = vst.msk [vmem:[%s3 + $0x8] sm:$0xff] %vm179, %v178
  %v182 = vsel %vm179, %v177, 0.0
  %183 = vadd.xlane.f32.xlu0 %v182
  %v184 = vpop.xlane.xlu0 %183
  %v185 = vsel %vm179, %v178, 0.0
  %186 = vadd.xlane.f32.xlu0 %v185
  %v187 = vpop.xlane.xlu0 %186
  %vm188 = vcmask 7168
  %189 = vst.msk [vmem:[%s4] sm:$0xff] %vm188, %v184
  %190 = vst.msk [vmem:[%s4 + $0x8] sm:$0xff] %vm188, %v187
  %v191 = vmul.f32 %v177, %v177
  %v192 = vmul.f32 %v178, %v178
  %v193 = vsel %vm179, %v191, 0.0
  %194 = vadd.xlane.f32.xlu0 %v193
  %v195 = vpop.xlane.xlu0 %194
  %v196 = vsel %vm179, %v192, 0.0
  %197 = vadd.xlane.f32.xlu0 %v196
  %v198 = vpop.xlane.xlu0 %197
  %199 = vst.msk [vmem:[%s5] sm:$0xff] %vm188, %v195
  %200 = vst.msk [vmem:[%s5 + $0x8] sm:$0xff] %vm188, %v198
  // Predicated region
  $region14: #{generator_forward.20} parent=0 // pred_check
    _
  $region15: #{generator_forward.20} parent=0 // pred_check_branch
    %202 = sbr.rel (0) target = $region17
  $region16: #{generator_forward.20} parent=0 // pred_region
    _
  $region17: #{generator_forward.20} parent=0 // pred_fallthru
    _
  // Predicated region
  $region18: #{generator_forward.20} parent=0 // pred_check
    _
  $region19: #{generator_forward.20} parent=0 // pred_check_branch
    %204 = sbr.rel (0) target = $region21
  $region20: #{generator_forward.20} parent=0 // pred_region
    _
  $region21: #{generator_forward.20} parent=0 // pred_fallthru
    _
  // Predicated region
  $region22: #{generator_forward.20} parent=0 // pred_check
    _
  $region23: #{generator_forward.20} parent=0 // pred_check_branch
    %206 = sbr.rel (0) target = $region25
  $region24: #{generator_forward.20} parent=0 // pred_region
    _
  $region25: #{generator_forward.20} parent=0 // pred_fallthru
    _
  // Predicated region
  $region26: #{generator_forward.20} parent=0 // pred_check
    _
  $region27: #{generator_forward.20} parent=0 // pred_check_branch
    %208 = sbr.rel (0) target = $region29
  $region28: #{generator_forward.20} parent=0 // pred_region
    _
  $region29: #{generator_forward.20} parent=0 // pred_fallthru
    _
  // Predicated region
  $region30: #{generator_forward.20} parent=0 // pred_check
    _
  $region31: #{generator_forward.20} parent=0 // pred_check_branch
    %210 = sbr.rel (0) target = $region33
  $region32: #{generator_forward.20} parent=0 // pred_region
    _
  $region33: #{generator_forward.20} parent=0 // pred_fallthru
    _
  // Predicated region
  $region34: #{generator_forward.20} parent=0 // pred_check
    _
  $region35: #{generator_forward.20} parent=0 // pred_check_branch
    %212 = sbr.rel (0) target = $region37
  $region36: #{generator_forward.20} parent=0 // pred_region
    _
  $region37: #{generator_forward.20} parent=0 // pred_fallthru
    _

// kernel: generator_forward.18
$region0: #{generator_forward.18}
  #allocation0 [shape = 'u32[]', space=smem, size = 0x4, offset = 0x4, fixed_abs, tag = 'smem constant byte address 0x4 - core index']
  #allocation1 [shape = 'u32[72,128]{1,0:T(1,128)}', space=vmem, size = 0x9000, scoped, tag = 'internal scratch']
  %s0 = inlined_call_operand.vmem [shape: bf16[128,32], index: 0, kind: input, shape index: {}]
  %s1 = inlined_call_operand.vmem [shape: bf16[16,128], index: 1, kind: input, shape index: {}]
  %s2 = inlined_call_operand.vmem [shape: f32[16,1], index: 2, kind: input, shape index: {}]
  %s3 = inlined_call_operand.vmem [shape: f32[16,32], index: 3, kind: output, shape index: {0}]
  %s4 = inlined_call_operand.vmem [shape: f32[1,16,1], index: 4, kind: output, shape index: {1}]
  %s5 = inlined_call_operand.vmem [shape: f32[1,16,1], index: 5, kind: output, shape index: {2}]
  %6 = xla_tuple %s3, %s4, %s5
  %s7 = sld [smem:[#allocation0]]
  $region38: #{generator_forward.18} parent=0
    _
  %s9 = ssub.s32 1, %s7
  %s10 = scalar_select 0, %s9, %s7
  // Predicated region
  $region2: #{generator_forward.18} parent=0 // pred_check
    _
  $region3: #{generator_forward.18} parent=0 // pred_check_branch
    %12 = sbr.rel (0) target = $region5
  $region4: #{generator_forward.18} parent=0 // pred_region
    _
  $region5: #{generator_forward.18} parent=0 // pred_fallthru
    _
  // Predicated region
  $region6: #{generator_forward.18} parent=0 // pred_check
    _
  $region7: #{generator_forward.18} parent=0 // pred_check_branch
    %14 = sbr.rel (0) target = $region9
  $region8: #{generator_forward.18} parent=0 // pred_region
    _
  $region9: #{generator_forward.18} parent=0 // pred_fallthru
    _
  // Predicated region
  $region10: #{generator_forward.18} parent=0 // pred_check
    _
  $region11: #{generator_forward.18} parent=0 // pred_check_branch
    %16 = sbr.rel (0) target = $region13
  $region12: #{generator_forward.18} parent=0 // pred_region
    _
  $region13: #{generator_forward.18} parent=0 // pred_fallthru
    _
  %v17 = vld [vmem:[%s1] sm:$0xf]
  %v18 = vld [vmem:[%s1 + $0x4] sm:$0xf]
  %v19 = vld [vmem:[%s0] sm:$0xf]
  %v20 = vld [vmem:[%s0 + $0x4] sm:$0xf]
  %v21 = vld [vmem:[%s0 + $0x8] sm:$0xf]
  %v22 = vld [vmem:[%s0 + $0xc] sm:$0xf]
  %v23 = vld [vmem:[%s0 + $0x10] sm:$0xf]
  %v24 = vld [vmem:[%s0 + $0x14] sm:$0xf]
  %v25 = vld [vmem:[%s0 + $0x18] sm:$0xf]
  %v26 = vld [vmem:[%s0 + $0x1c] sm:$0xf]
  %v27 = vld [vmem:[%s0 + $0x20] sm:$0xf]
  %v28 = vld [vmem:[%s0 + $0x24] sm:$0xf]
  %v29 = vld [vmem:[%s0 + $0x28] sm:$0xf]
  %v30 = vld [vmem:[%s0 + $0x2c] sm:$0xf]
  %v31 = vld [vmem:[%s0 + $0x30] sm:$0xf]
  %v32 = vld [vmem:[%s0 + $0x34] sm:$0xf]
  %v33 = vld [vmem:[%s0 + $0x38] sm:$0xf]
  %v34 = vld [vmem:[%s0 + $0x3c] sm:$0xf]
  %v35 = vld [vmem:[%s2] sm:$0xff]
  %v36 = vld [vmem:[%s2 + $0x8] sm:$0xff]
  %38 = vset.pattern.permute.xlu0 0
  %39 = vperm.xlu0 %38, %v35
  %v40 = vpop.permute.xlu0 %39
  %43 = vset.pattern.permute.xlu0 0
  %44 = vperm.xlu0 %43, %v36
  %v45 = vpop.permute.xlu0 %44
  %v49 = vunpack.c.l.b16 %v17
  %v50 = vunpack.c.l.b16 %v18
  %v51 = vpack.c.b16 %v50, %v49
  %v69 = vunpack.c.l.b16 %v19
  %v70 = vunpack.c.l.b16 %v20
  %v71 = vunpack.c.l.b16 %v21
  %v72 = vunpack.c.l.b16 %v22
  %v73 = vunpack.c.l.b16 %v23
  %v74 = vunpack.c.l.b16 %v24
  %v75 = vunpack.c.l.b16 %v25
  %v76 = vunpack.c.l.b16 %v26
  %v77 = vunpack.c.l.b16 %v27
  %v78 = vunpack.c.l.b16 %v28
  %v79 = vunpack.c.l.b16 %v29
  %v80 = vunpack.c.l.b16 %v30
  %v81 = vunpack.c.l.b16 %v31
  %v82 = vunpack.c.l.b16 %v32
  %v83 = vunpack.c.l.b16 %v33
  %v84 = vunpack.c.l.b16 %v34
  %v85 = vpack.c.b16 %v70, %v69
  %v86 = vpack.c.b16 %v72, %v71
  %v87 = vpack.c.b16 %v74, %v73
  %v88 = vpack.c.b16 %v76, %v75
  %v89 = vpack.c.b16 %v78, %v77
  %v90 = vpack.c.b16 %v80, %v79
  %v91 = vpack.c.b16 %v82, %v81
  %v92 = vpack.c.b16 %v84, %v83
  %101 = vmatpush.bf16.msra.mxu0 %v92
  %102 = vmatpush.bf16.msra.mxu0 %v91
  %103 = vmatpush.bf16.msra.mxu0 %v90
  %104 = vmatpush.bf16.msra.mxu0 %v89
  %105 = vmatpush.bf16.msra.mxu0 %v88
  %106 = vmatpush.bf16.msra.mxu0 %v87
  %107 = vmatpush.bf16.msra.mxu0 %v86
  %108 = vmatpush.bf16.msra.mxu0 %v85
  %109 = vmatmul.bf16.gmra.mxu0 %v51
  %v110 = vpop.f32.mrf.mxu0
  %v111 = vadd.f32 %v40, %v110
  %v112 = vpop.f32.mrf.mxu0
  %v113 = vadd.f32 %v45, %v112
  %114 = vdwg.mxu0
  %v115 = vmax.f32 %v111, 0.0
  %v116 = vmax.f32 %v113, 0.0
  %s117 = smul.u32 0, 32
  %v118 = vlaneseq
  %v119 = vand.u32 %v118, 127
  %v120 = vstv %s117
  %v121 = vadd.s32 %v120, %v119
  %vm122 = vcmp.lt.s32.totalorder %v121, 32
  %v123 = vsel %vm122, %v115, 0.0
  %v124 = vsel %vm122, %v116, 0.0
  %vm125 = vcmask 261120
  %126 = vst.msk [vmem:[%s3] sm:$0xff] %vm125, %v123
  %127 = vst.msk [vmem:[%s3 + $0x8] sm:$0xff] %vm125, %v124
  %v128 = vsel %vm125, %v123, 0.0
  %129 = vadd.xlane.f32.xlu0 %v128
  %v130 = vpop.xlane.xlu0 %129
  %v131 = vsel %vm125, %v124, 0.0
  %132 = vadd.xlane.f32.xlu0 %v131
  %v133 = vpop.xlane.xlu0 %132
  %vm134 = vcmask 7168
  %135 = vst.msk [vmem:[%s4] sm:$0xff] %vm134, %v130
  %136 = vst.msk [vmem:[%s4 + $0x8] sm:$0xff] %vm134, %v133
  %v137 = vmul.f32 %v123, %v123
  %v138 = vmul.f32 %v124, %v124
  %v139 = vsel %vm125, %v137, 0.0
  %140 = vadd.xlane.f32.xlu0 %v139
  %v141 = vpop.xlane.xlu0 %140
  %v142 = vsel %vm125, %v138, 0.0
  %143 = vadd.xlane.f32.xlu0 %v142
  %v144 = vpop.xlane.xlu0 %143
  %145 = vst.msk [vmem:[%s5] sm:$0xff] %vm134, %v141
  %146 = vst.msk [vmem:[%s5 + $0x8] sm:$0xff] %vm134, %v144
  // Predicated region
  $region14: #{generator_forward.18} parent=0 // pred_check
    _
  $region15: #{generator_forward.18} parent=0 // pred_check_branch
    %148 = sbr.rel (0) target = $region17
  $region16: #{generator_forward.18} parent=0 // pred_region
    _
  $region17: #{generator_forward.18} parent=0 // pred_fallthru
    _
  // Predicated region
  $region18: #{generator_forward.18} parent=0 // pred_check
    _
  $region19: #{generator_forward.18} parent=0 // pred_check_branch
    %150 = sbr.rel (0) target = $region21
  $region20: #{generator_forward.18} parent=0 // pred_region
    _
  $region21: #{generator_forward.18} parent=0 // pred_fallthru
    _
  // Predicated region
  $region22: #{generator_forward.18} parent=0 // pred_check
    _
  $region23: #{generator_forward.18} parent=0 // pred_check_branch
    %152 = sbr.rel (0) target = $region25
  $region24: #{generator_forward.18} parent=0 // pred_region
    _
  $region25: #{generator_forward.18} parent=0 // pred_fallthru
    _
  // Predicated region
  $region26: #{generator_forward.18} parent=0 // pred_check
    _
  $region27: #{generator_forward.18} parent=0 // pred_check_branch
    %154 = sbr.rel (0) target = $region29
  $region28: #{generator_forward.18} parent=0 // pred_region
    _
  $region29: #{generator_forward.18} parent=0 // pred_fallthru
    _
  // Predicated region
  $region30: #{generator_forward.18} parent=0 // pred_check
    _
  $region31: #{generator_forward.18} parent=0 // pred_check_branch
    %156 = sbr.rel (0) target = $region33
  $region32: #{generator_forward.18} parent=0 // pred_region
    _
  $region33: #{generator_forward.18} parent=0 // pred_fallthru
    _
  // Predicated region
  $region34: #{generator_forward.18} parent=0 // pred_check
    _
  $region35: #{generator_forward.18} parent=0 // pred_check_branch
    %158 = sbr.rel (0) target = $region37
  $region36: #{generator_forward.18} parent=0 // pred_region
    _
  $region37: #{generator_forward.18} parent=0 // pred_fallthru
    _

// kernel: generator_forward.22
$region0: #{generator_forward.22}
  #allocation0 [shape = 'u32[]', space=smem, size = 0x4, offset = 0x4, fixed_abs, tag = 'smem constant byte address 0x4 - core index']
  #allocation1 [shape = 'u32[72,128]{1,0:T(1,128)}', space=vmem, size = 0x9000, scoped, tag = 'internal scratch']
  %s0 = inlined_call_operand.vmem [shape: f32[16,98], index: 0, kind: input, shape index: {}]
  %s1 = inlined_call_operand.vmem [shape: f32[16,1], index: 1, kind: input, shape index: {}]
  %s2 = inlined_call_operand.vmem [shape: f32[16,1], index: 2, kind: input, shape index: {}]
  %s3 = inlined_call_operand.vmem [shape: f32[16,98], index: 3, kind: output, shape index: {}]
  %s4 = sld [smem:[#allocation0]]
  $region22: #{generator_forward.22} parent=0
    _
  %s6 = ssub.s32 1, %s4
  %s7 = scalar_select 0, %s6, %s4
  // Predicated region
  $region2: #{generator_forward.22} parent=0 // pred_check
    _
  $region3: #{generator_forward.22} parent=0 // pred_check_branch
    %9 = sbr.rel (0) target = $region5
  $region4: #{generator_forward.22} parent=0 // pred_region
    _
  $region5: #{generator_forward.22} parent=0 // pred_fallthru
    _
  // Predicated region
  $region6: #{generator_forward.22} parent=0 // pred_check
    _
  $region7: #{generator_forward.22} parent=0 // pred_check_branch
    %11 = sbr.rel (0) target = $region9
  $region8: #{generator_forward.22} parent=0 // pred_region
    _
  $region9: #{generator_forward.22} parent=0 // pred_fallthru
    _
  // Predicated region
  $region10: #{generator_forward.22} parent=0 // pred_check
    _
  $region11: #{generator_forward.22} parent=0 // pred_check_branch
    %13 = sbr.rel (0) target = $region13
  $region12: #{generator_forward.22} parent=0 // pred_region
    _
  $region13: #{generator_forward.22} parent=0 // pred_fallthru
    _
  %v14 = vld [vmem:[%s0] sm:$0xff]
  %v15 = vld [vmem:[%s0 + $0x8] sm:$0xff]
  %v16 = vld [vmem:[%s1] sm:$0xff]
  %v17 = vld [vmem:[%s1 + $0x8] sm:$0xff]
  %19 = vset.pattern.permute.xlu0 0
  %20 = vperm.xlu0 %19, %v16
  %v21 = vpop.permute.xlu0 %20
  %24 = vset.pattern.permute.xlu0 0
  %25 = vperm.xlu0 %24, %v17
  %v26 = vpop.permute.xlu0 %25
  %v28 = vmul.f32 %v14, %v21
  %v29 = vmul.f32 %v15, %v26
  %v30 = vld [vmem:[%s2] sm:$0xff]
  %v31 = vld [vmem:[%s2 + $0x8] sm:$0xff]
  %33 = vset.pattern.permute.xlu0 0
  %34 = vperm.xlu0 %33, %v30
  %v35 = vpop.permute.xlu0 %34
  %38 = vset.pattern.permute.xlu0 0
  %39 = vperm.xlu0 %38, %v31
  %v40 = vpop.permute.xlu0 %39
  %v42 = vadd.f32 %v28, %v35
  %v43 = vadd.f32 %v29, %v40
  %vm44 = vcmask 801792
  %45 = vst.msk [vmem:[%s3] sm:$0xff] %vm44, %v42
  %46 = vst.msk [vmem:[%s3 + $0x8] sm:$0xff] %vm44, %v43
  // Predicated region
  $region14: #{generator_forward.22} parent=0 // pred_check
    _
  $region15: #{generator_forward.22} parent=0 // pred_check_branch
    %48 = sbr.rel (0) target = $region17
  $region16: #{generator_forward.22} parent=0 // pred_region
    _
  $region17: #{generator_forward.22} parent=0 // pred_fallthru
    _
  // Predicated region
  $region18: #{generator_forward.22} parent=0 // pred_check
    _
  $region19: #{generator_forward.22} parent=0 // pred_check_branch
    %50 = sbr.rel (0) target = $region21
  $region20: #{generator_forward.22} parent=0 // pred_region
    _
  $region21: #{generator_forward.22} parent=0 // pred_fallthru
    _

// kernel: generator_forward.26
$region0: #{generator_forward.26}
  #allocation0 [shape = 'u32[]', space=smem, size = 0x4, offset = 0x4, fixed_abs, tag = 'smem constant byte address 0x4 - core index']
  #allocation1 [shape = 'u32[72,128]{1,0:T(1,128)}', space=vmem, size = 0x9000, scoped, tag = 'internal scratch']
  %s0 = inlined_call_operand.vmem [shape: bf16[144,98], index: 0, kind: input, shape index: {}]
  %s1 = inlined_call_operand.vmem [shape: bf16[8,144], index: 1, kind: input, shape index: {}]
  %s2 = inlined_call_operand.vmem [shape: f32[8,1], index: 2, kind: input, shape index: {}]
  %s3 = inlined_call_operand.vmem [shape: f32[8,98], index: 3, kind: output, shape index: {0}]
  %s4 = inlined_call_operand.vmem [shape: f32[1,8,1], index: 4, kind: output, shape index: {1}]
  %s5 = inlined_call_operand.vmem [shape: f32[1,8,1], index: 5, kind: output, shape index: {2}]
  %6 = xla_tuple %s3, %s4, %s5
  %s7 = sld [smem:[#allocation0]]
  $region38: #{generator_forward.26} parent=0
    _
  %s9 = ssub.s32 1, %s7
  %s10 = scalar_select 0, %s9, %s7
  // Predicated region
  $region2: #{generator_forward.26} parent=0 // pred_check
    _
  $region3: #{generator_forward.26} parent=0 // pred_check_branch
    %12 = sbr.rel (0) target = $region5
  $region4: #{generator_forward.26} parent=0 // pred_region
    _
  $region5: #{generator_forward.26} parent=0 // pred_fallthru
    _
  // Predicated region
  $region6: #{generator_forward.26} parent=0 // pred_check
    _
  $region7: #{generator_forward.26} parent=0 // pred_check_branch
    %14 = sbr.rel (0) target = $region9
  $region8: #{generator_forward.26} parent=0 // pred_region
    _
  $region9: #{generator_forward.26} parent=0 // pred_fallthru
    _
  // Predicated region
  $region10: #{generator_forward.26} parent=0 // pred_check
    _
  $region11: #{generator_forward.26} parent=0 // pred_check_branch
    %16 = sbr.rel (0) target = $region13
  $region12: #{generator_forward.26} parent=0 // pred_region
    _
  $region13: #{generator_forward.26} parent=0 // pred_fallthru
    _
  %v18 = vld [vmem:[%s1] sm:$0xff]
  %v19 = vld [vmem:[%s0] sm:$0xf]
  %v20 = vld [vmem:[%s0 + $0x4] sm:$0xf]
  %v21 = vld [vmem:[%s0 + $0x8] sm:$0xf]
  %v22 = vld [vmem:[%s0 + $0xc] sm:$0xf]
  %v23 = vld [vmem:[%s0 + $0x10] sm:$0xf]
  %v24 = vld [vmem:[%s0 + $0x14] sm:$0xf]
  %v25 = vld [vmem:[%s0 + $0x18] sm:$0xf]
  %v26 = vld [vmem:[%s0 + $0x1c] sm:$0xf]
  %v27 = vld [vmem:[%s0 + $0x20] sm:$0xf]
  %v28 = vld [vmem:[%s0 + $0x24] sm:$0xf]
  %v29 = vld [vmem:[%s0 + $0x28] sm:$0xf]
  %v30 = vld [vmem:[%s0 + $0x2c] sm:$0xf]
  %v31 = vld [vmem:[%s0 + $0x30] sm:$0xf]
  %v32 = vld [vmem:[%s0 + $0x34] sm:$0xf]
  %v33 = vld [vmem:[%s0 + $0x38] sm:$0xf]
  %v34 = vld [vmem:[%s0 + $0x3c] sm:$0xf]
  %v35 = vld [vmem:[%s0 + $0x40] sm:$0xf]
  %v36 = vld [vmem:[%s0 + $0x44] sm:$0xf]
  %v37 = vld [vmem:[%s2] sm:$0xff]
  %39 = vset.pattern.permute.xlu0 0
  %40 = vperm.xlu0 %39, %v37
  %v41 = vpop.permute.xlu0 %40
  %v44 = vunpack.c.l.b16 %v18
  %v45 = vunpack.c.h.b16 %v18
  %v46 = vpack.c.b16 %v44, %v44
  %v47 = vpack.c.b16 %v45, %v45
  %v67 = vunpack.c.l.b16 %v19
  %v68 = vunpack.c.l.b16 %v20
  %v69 = vunpack.c.l.b16 %v21
  %v70 = vunpack.c.l.b16 %v22
  %v71 = vunpack.c.l.b16 %v23
  %v72 = vunpack.c.l.b16 %v24
  %v73 = vunpack.c.l.b16 %v25
  %v74 = vunpack.c.l.b16 %v26
  %v75 = vunpack.c.l.b16 %v27
  %v76 = vunpack.c.l.b16 %v28
  %v77 = vunpack.c.l.b16 %v29
  %v78 = vunpack.c.l.b16 %v30
  %v79 = vunpack.c.l.b16 %v31
  %v80 = vunpack.c.l.b16 %v32
  %v81 = vunpack.c.l.b16 %v33
  %v82 = vunpack.c.l.b16 %v34
  %v83 = vunpack.c.l.b16 %v35
  %v84 = vunpack.c.l.b16 %v36
  %v85 = vpack.c.b16 %v68, %v67
  %v86 = vpack.c.b16 %v70, %v69
  %v87 = vpack.c.b16 %v72, %v71
  %v88 = vpack.c.b16 %v74, %v73
  %v89 = vpack.c.b16 %v76, %v75
  %v90 = vpack.c.b16 %v78, %v77
  %v91 = vpack.c.b16 %v80, %v79
  %v92 = vpack.c.b16 %v82, %v81
  %v93 = vpack.c.b16 %v84, %v83
  %vm103 = vcmask 130048
  %v105 = vsel %vm103, %v47, 0
  %107 = vmatpush.bf16.msra.mxu0 %v92
  %108 = vmatpush.bf16.msra.mxu0 %v91
  %109 = vmatpush.bf16.msra.mxu0 %v90
  %110 = vmatpush.bf16.msra.mxu0 %v89
  %111 = vmatpush.bf16.msra.mxu0 %v88
  %112 = vmatpush.bf16.msra.mxu0 %v87
  %113 = vmatpush.bf16.msra.mxu0 %v86
  %114 = vmatpush.bf16.msra.mxu0 %v85
  %115 = vmatmul.bf16.gmra.mxu0 %v46
  %v116 = vpop.f32.mrf.mxu0
  %v117 = vadd.f32 %v41, %v116
  %v118 = vpop.f32.mrf.mxu0
  %119 = vdwg.mxu0
  %120 = vmatpush.bf16.msra.mxu0 0
  %121 = vmatpush.bf16.msra.mxu0 0
  %122 = vmatpush.bf16.msra.mxu0 0
  %123 = vmatpush.bf16.msra.mxu0 0
  %124 = vmatpush.bf16.msra.mxu0 0
  %125 = vmatpush.bf16.msra.mxu0 0
  %126 = vmatpush.bf16.msra.mxu0 0
  %127 = vmatpush.bf16.msra.mxu0 %v93
  %128 = vmatmul.bf16.gmra.mxu0 %v105
  %v129 = vpop.f32.mrf.mxu0
  %v130 = vadd.f32 %v117, %v129
  %v131 = vpop.f32.mrf.mxu0
  %132 = vdwg.mxu0
  %v133 = vmax.f32 %v130, 0.0
  %s134 = smul.u32 0, 98
  %v135 = vlaneseq
  %v136 = vand.u32 %v135, 127
  %v137 = vstv %s134
  %v138 = vadd.s32 %v137, %v136
  %vm139 = vcmp.lt.s32.totalorder %v138, 98
  %v140 = vsel %vm139, %v133, 0.0
  %vm141 = vcmask 801792
  %142 = vst.msk [vmem:[%s3] sm:$0xff] %vm141, %v140
  %v143 = vsel %vm141, %v140, 0.0
  %144 = vadd.xlane.f32.xlu0 %v143
  %v145 = vpop.xlane.xlu0 %144
  %vm146 = vcmask 7168
  %147 = vst.msk [vmem:[%s4] sm:$0xff] %vm146, %v145
  %v148 = vmul.f32 %v140, %v140
  %v149 = vsel %vm141, %v148, 0.0
  %150 = vadd.xlane.f32.xlu0 %v149
  %v151 = vpop.xlane.xlu0 %150
  %152 = vst.msk [vmem:[%s5] sm:$0xff] %vm146, %v151
  // Predicated region
  $region14: #{generator_forward.26} parent=0 // pred_check
    _
  $region15: #{generator_forward.26} parent=0 // pred_check_branch
    %154 = sbr.rel (0) target = $region17
  $region16: #{generator_forward.26} parent=0 // pred_region
    _
  $region17: #{generator_forward.26} parent=0 // pred_fallthru
    _
  // Predicated region
  $region18: #{generator_forward.26} parent=0 // pred_check
    _
  $region19: #{generator_forward.26} parent=0 // pred_check_branch
    %156 = sbr.rel (0) target = $region21
  $region20: #{generator_forward.26} parent=0 // pred_region
    _
  $region21: #{generator_forward.26} parent=0 // pred_fallthru
    _
  // Predicated region
  $region22: #{generator_forward.26} parent=0 // pred_check
    _
  $region23: #{generator_forward.26} parent=0 // pred_check_branch
    %158 = sbr.rel (0) target = $region25
  $region24: #{generator_forward.26} parent=0 // pred_region
    _
  $region25: #{generator_forward.26} parent=0 // pred_fallthru
    _
  // Predicated region
  $region26: #{generator_forward.26} parent=0 // pred_check
    _
  $region27: #{generator_forward.26} parent=0 // pred_check_branch
    %160 = sbr.rel (0) target = $region29
  $region28: #{generator_forward.26} parent=0 // pred_region
    _
  $region29: #{generator_forward.26} parent=0 // pred_fallthru
    _
  // Predicated region
  $region30: #{generator_forward.26} parent=0 // pred_check
    _
  $region31: #{generator_forward.26} parent=0 // pred_check_branch
    %162 = sbr.rel (0) target = $region33
  $region32: #{generator_forward.26} parent=0 // pred_region
    _
  $region33: #{generator_forward.26} parent=0 // pred_fallthru
    _
  // Predicated region
  $region34: #{generator_forward.26} parent=0 // pred_check
    _
  $region35: #{generator_forward.26} parent=0 // pred_check_branch
    %164 = sbr.rel (0) target = $region37
  $region36: #{generator_forward.26} parent=0 // pred_region
    _
  $region37: #{generator_forward.26} parent=0 // pred_fallthru
    _

// kernel: generator_forward.25
$region0: #{generator_forward.25}
  #allocation0 [shape = 'u32[]', space=smem, size = 0x4, offset = 0x4, fixed_abs, tag = 'smem constant byte address 0x4 - core index']
  #allocation1 [shape = 'u32[72,128]{1,0:T(1,128)}', space=vmem, size = 0x9000, scoped, tag = 'internal scratch']
  %s0 = inlined_call_operand.vmem [shape: bf16[96,112], index: 0, kind: input, shape index: {}]
  %s1 = inlined_call_operand.vmem [shape: bf16[8,96], index: 1, kind: input, shape index: {}]
  %s2 = inlined_call_operand.vmem [shape: f32[8,1], index: 2, kind: input, shape index: {}]
  %s3 = inlined_call_operand.vmem [shape: f32[8,112], index: 3, kind: output, shape index: {0}]
  %s4 = inlined_call_operand.vmem [shape: f32[1,8,1], index: 4, kind: output, shape index: {1}]
  %s5 = inlined_call_operand.vmem [shape: f32[1,8,1], index: 5, kind: output, shape index: {2}]
  %6 = xla_tuple %s3, %s4, %s5
  %s7 = sld [smem:[#allocation0]]
  $region38: #{generator_forward.25} parent=0
    _
  %s9 = ssub.s32 1, %s7
  %s10 = scalar_select 0, %s9, %s7
  // Predicated region
  $region2: #{generator_forward.25} parent=0 // pred_check
    _
  $region3: #{generator_forward.25} parent=0 // pred_check_branch
    %12 = sbr.rel (0) target = $region5
  $region4: #{generator_forward.25} parent=0 // pred_region
    _
  $region5: #{generator_forward.25} parent=0 // pred_fallthru
    _
  // Predicated region
  $region6: #{generator_forward.25} parent=0 // pred_check
    _
  $region7: #{generator_forward.25} parent=0 // pred_check_branch
    %14 = sbr.rel (0) target = $region9
  $region8: #{generator_forward.25} parent=0 // pred_region
    _
  $region9: #{generator_forward.25} parent=0 // pred_fallthru
    _
  // Predicated region
  $region10: #{generator_forward.25} parent=0 // pred_check
    _
  $region11: #{generator_forward.25} parent=0 // pred_check_branch
    %16 = sbr.rel (0) target = $region13
  $region12: #{generator_forward.25} parent=0 // pred_region
    _
  $region13: #{generator_forward.25} parent=0 // pred_fallthru
    _
  %v18 = vld [vmem:[%s1] sm:$0xf]
  %v19 = vld [vmem:[%s0] sm:$0xf]
  %v20 = vld [vmem:[%s0 + $0x4] sm:$0xf]
  %v21 = vld [vmem:[%s0 + $0x8] sm:$0xf]
  %v22 = vld [vmem:[%s0 + $0xc] sm:$0xf]
  %v23 = vld [vmem:[%s0 + $0x10] sm:$0xf]
  %v24 = vld [vmem:[%s0 + $0x14] sm:$0xf]
  %v25 = vld [vmem:[%s0 + $0x18] sm:$0xf]
  %v26 = vld [vmem:[%s0 + $0x1c] sm:$0xf]
  %v27 = vld [vmem:[%s0 + $0x20] sm:$0xf]
  %v28 = vld [vmem:[%s0 + $0x24] sm:$0xf]
  %v29 = vld [vmem:[%s0 + $0x28] sm:$0xf]
  %v30 = vld [vmem:[%s0 + $0x2c] sm:$0xf]
  %v31 = vld [vmem:[%s2] sm:$0xff]
  %33 = vset.pattern.permute.xlu0 0
  %34 = vperm.xlu0 %33, %v31
  %v35 = vpop.permute.xlu0 %34
  %v49 = vunpack.c.l.b16 %v19
  %v50 = vunpack.c.l.b16 %v20
  %v51 = vunpack.c.l.b16 %v21
  %v52 = vunpack.c.l.b16 %v22
  %v53 = vunpack.c.l.b16 %v23
  %v54 = vunpack.c.l.b16 %v24
  %v55 = vunpack.c.l.b16 %v25
  %v56 = vunpack.c.l.b16 %v26
  %v57 = vunpack.c.l.b16 %v27
  %v58 = vunpack.c.l.b16 %v28
  %v59 = vunpack.c.l.b16 %v29
  %v60 = vunpack.c.l.b16 %v30
  %v61 = vpack.c.b16 %v50, %v49
  %v62 = vpack.c.b16 %v52, %v51
  %v63 = vpack.c.b16 %v54, %v53
  %v64 = vpack.c.b16 %v56, %v55
  %v65 = vpack.c.b16 %v58, %v57
  %v66 = vpack.c.b16 %v60, %v59
  %vm73 = vcmask 785408
  %v75 = vsel %vm73, %v18, 0
  %77 = vmatpush.bf16.msra.mxu0 0
  %78 = vmatpush.bf16.msra.mxu0 0
  %79 = vmatpush.bf16.msra.mxu0 %v66
  %80 = vmatpush.bf16.msra.mxu0 %v65
  %81 = vmatpush.bf16.msra.mxu0 %v64
  %82 = vmatpush.bf16.msra.mxu0 %v63
  %83 = vmatpush.bf16.msra.mxu0 %v62
  %84 = vmatpush.bf16.msra.mxu0 %v61
  %85 = vmatmul.bf16.gmra.mxu0 %v75
  %v86 = vpop.f32.mrf.mxu0
  %v87 = vadd.f32 %v35, %v86
  %v88 = vpop.f32.mrf.mxu0
  %89 = vdwg.mxu0
  %v90 = vmax.f32 %v87, 0.0
  %s91 = smul.u32 0, 112
  %v92 = vlaneseq
  %v93 = vand.u32 %v92, 127
  %v94 = vstv %s91
  %v95 = vadd.s32 %v94, %v93
  %vm96 = vcmp.lt.s32.totalorder %v95, 112
  %v97 = vsel %vm96, %v90, 0.0
  %vm98 = vcmask 916480
  %99 = vst.msk [vmem:[%s3] sm:$0xff] %vm98, %v97
  %v100 = vsel %vm98, %v97, 0.0
  %101 = vadd.xlane.f32.xlu0 %v100
  %v102 = vpop.xlane.xlu0 %101
  %vm103 = vcmask 7168
  %104 = vst.msk [vmem:[%s4] sm:$0xff] %vm103, %v102
  %v105 = vmul.f32 %v97, %v97
  %v106 = vsel %vm98, %v105, 0.0
  %107 = vadd.xlane.f32.xlu0 %v106
  %v108 = vpop.xlane.xlu0 %107
  %109 = vst.msk [vmem:[%s5] sm:$0xff] %vm103, %v108
  // Predicated region
  $region14: #{generator_forward.25} parent=0 // pred_check
    _
  $region15: #{generator_forward.25} parent=0 // pred_check_branch
    %111 = sbr.rel (0) target = $region17
  $region16: #{generator_forward.25} parent=0 // pred_region
    _
  $region17: #{generator_forward.25} parent=0 // pred_fallthru
    _
  // Predicated region
  $region18: #{generator_forward.25} parent=0 // pred_check
    _
  $region19: #{generator_forward.25} parent=0 // pred_check_branch
    %113 = sbr.rel (0) target = $region21
  $region20: #{generator_forward.25} parent=0 // pred_region
    _
  $region21: #{generator_forward.25} parent=0 // pred_fallthru
    _
  // Predicated region
  $region22: #{generator_forward.25} parent=0 // pred_check
    _
  $region23: #{generator_forward.25} parent=0 // pred_check_branch
    %115 = sbr.rel (0) target = $region25
  $region24: #{generator_forward.25} parent=0 // pred_region
    _
  $region25: #{generator_forward.25} parent=0 // pred_fallthru
    _
  // Predicated region
  $region26: #{generator_forward.25} parent=0 // pred_check
    _
  $region27: #{generator_forward.25} parent=0 // pred_check_branch
    %117 = sbr.rel (0) target = $region29
  $region28: #{generator_forward.25} parent=0 // pred_region
    _
  $region29: #{generator_forward.25} parent=0 // pred_fallthru
    _
  // Predicated region
  $region30: #{generator_forward.25} parent=0 // pred_check
    _
  $region31: #{generator_forward.25} parent=0 // pred_check_branch
    %119 = sbr.rel (0) target = $region33
  $region32: #{generator_forward.25} parent=0 // pred_region
    _
  $region33: #{generator_forward.25} parent=0 // pred_fallthru
    _
  // Predicated region
  $region34: #{generator_forward.25} parent=0 // pred_check
    _
  $region35: #{generator_forward.25} parent=0 // pred_check_branch
    %121 = sbr.rel (0) target = $region37
  $region36: #{generator_forward.25} parent=0 // pred_region
    _
  $region37: #{generator_forward.25} parent=0 // pred_fallthru
    _

// kernel: generator_forward.23
$region0: #{generator_forward.23}
  #allocation0 [shape = 'u32[]', space=smem, size = 0x4, offset = 0x4, fixed_abs, tag = 'smem constant byte address 0x4 - core index']
  #allocation1 [shape = 'u32[72,128]{1,0:T(1,128)}', space=vmem, size = 0x9000, scoped, tag = 'internal scratch']
  %s0 = inlined_call_operand.vmem [shape: bf16[64,128], index: 0, kind: input, shape index: {}]
  %s1 = inlined_call_operand.vmem [shape: bf16[8,64], index: 1, kind: input, shape index: {}]
  %s2 = inlined_call_operand.vmem [shape: f32[8,1], index: 2, kind: input, shape index: {}]
  %s3 = inlined_call_operand.vmem [shape: f32[8,128], index: 3, kind: output, shape index: {0}]
  %s4 = inlined_call_operand.vmem [shape: f32[1,8,1], index: 4, kind: output, shape index: {1}]
  %s5 = inlined_call_operand.vmem [shape: f32[1,8,1], index: 5, kind: output, shape index: {2}]
  %6 = xla_tuple %s3, %s4, %s5
  %s7 = sld [smem:[#allocation0]]
  $region38: #{generator_forward.23} parent=0
    _
  %s9 = ssub.s32 1, %s7
  %s10 = scalar_select 0, %s9, %s7
  // Predicated region
  $region2: #{generator_forward.23} parent=0 // pred_check
    _
  $region3: #{generator_forward.23} parent=0 // pred_check_branch
    %12 = sbr.rel (0) target = $region5
  $region4: #{generator_forward.23} parent=0 // pred_region
    _
  $region5: #{generator_forward.23} parent=0 // pred_fallthru
    _
  // Predicated region
  $region6: #{generator_forward.23} parent=0 // pred_check
    _
  $region7: #{generator_forward.23} parent=0 // pred_check_branch
    %14 = sbr.rel (0) target = $region9
  $region8: #{generator_forward.23} parent=0 // pred_region
    _
  $region9: #{generator_forward.23} parent=0 // pred_fallthru
    _
  // Predicated region
  $region10: #{generator_forward.23} parent=0 // pred_check
    _
  $region11: #{generator_forward.23} parent=0 // pred_check_branch
    %16 = sbr.rel (0) target = $region13
  $region12: #{generator_forward.23} parent=0 // pred_region
    _
  $region13: #{generator_forward.23} parent=0 // pred_fallthru
    _
  %v18 = vld [vmem:[%s1] sm:$0xf]
  %v19 = vld [vmem:[%s0] sm:$0xf]
  %v20 = vld [vmem:[%s0 + $0x4] sm:$0xf]
  %v21 = vld [vmem:[%s0 + $0x8] sm:$0xf]
  %v22 = vld [vmem:[%s0 + $0xc] sm:$0xf]
  %v23 = vld [vmem:[%s0 + $0x10] sm:$0xf]
  %v24 = vld [vmem:[%s0 + $0x14] sm:$0xf]
  %v25 = vld [vmem:[%s0 + $0x18] sm:$0xf]
  %v26 = vld [vmem:[%s0 + $0x1c] sm:$0xf]
  %v27 = vld [vmem:[%s2] sm:$0xff]
  %29 = vset.pattern.permute.xlu0 0
  %30 = vperm.xlu0 %29, %v27
  %v31 = vpop.permute.xlu0 %30
  %v41 = vunpack.c.l.b16 %v19
  %v42 = vunpack.c.l.b16 %v20
  %v43 = vunpack.c.l.b16 %v21
  %v44 = vunpack.c.l.b16 %v22
  %v45 = vunpack.c.l.b16 %v23
  %v46 = vunpack.c.l.b16 %v24
  %v47 = vunpack.c.l.b16 %v25
  %v48 = vunpack.c.l.b16 %v26
  %v49 = vpack.c.b16 %v42, %v41
  %v50 = vpack.c.b16 %v44, %v43
  %v51 = vpack.c.b16 %v46, %v45
  %v52 = vpack.c.b16 %v48, %v47
  %vm57 = vcmask 523264
  %v59 = vsel %vm57, %v18, 0
  %61 = vmatpush.bf16.msra.mxu0 0
  %62 = vmatpush.bf16.msra.mxu0 0
  %63 = vmatpush.bf16.msra.mxu0 0
  %64 = vmatpush.bf16.msra.mxu0 0
  %65 = vmatpush.bf16.msra.mxu0 %v52
  %66 = vmatpush.bf16.msra.mxu0 %v51
  %67 = vmatpush.bf16.msra.mxu0 %v50
  %68 = vmatpush.bf16.msra.mxu0 %v49
  %69 = vmatmul.bf16.gmra.mxu0 %v59
  %v70 = vpop.f32.mrf.mxu0
  %v71 = vadd.f32 %v31, %v70
  %v72 = vpop.f32.mrf.mxu0
  %73 = vdwg.mxu0
  %v74 = vmax.f32 %v71, 0.0
  %s75 = smul.u32 0, 128
  %v76 = vlaneseq
  %v77 = vand.u32 %v76, 127
  %v78 = vstv %s75
  %v79 = vadd.s32 %v78, %v77
  %vm80 = vcmp.lt.s32.totalorder %v79, 128
  %v81 = vsel %vm80, %v74, 0.0
  %82 = vst [vmem:[%s3] sm:$0xff] %v81
  %83 = vadd.xlane.f32.xlu0 %v81
  %v84 = vpop.xlane.xlu0 %83
  %vm85 = vcmask 7168
  %86 = vst.msk [vmem:[%s4] sm:$0xff] %vm85, %v84
  %v87 = vmul.f32 %v81, %v81
  %88 = vadd.xlane.f32.xlu0 %v87
  %v89 = vpop.xlane.xlu0 %88
  %90 = vst.msk [vmem:[%s5] sm:$0xff] %vm85, %v89
  // Predicated region
  $region14: #{generator_forward.23} parent=0 // pred_check
    _
  $region15: #{generator_forward.23} parent=0 // pred_check_branch
    %92 = sbr.rel (0) target = $region17
  $region16: #{generator_forward.23} parent=0 // pred_region
    _
  $region17: #{generator_forward.23} parent=0 // pred_fallthru
    _
  // Predicated region
  $region18: #{generator_forward.23} parent=0 // pred_check
    _
  $region19: #{generator_forward.23} parent=0 // pred_check_branch
    %94 = sbr.rel (0) target = $region21
  $region20: #{generator_forward.23} parent=0 // pred_region
    _
  $region21: #{generator_forward.23} parent=0 // pred_fallthru
    _
  // Predicated region
  $region22: #{generator_forward.23} parent=0 // pred_check
    _
  $region23: #{generator_forward.23} parent=0 // pred_check_branch
    %96 = sbr.rel (0) target = $region25
  $region24: #{generator_forward.23} parent=0 // pred_region
    _
  $region25: #{generator_forward.23} parent=0 // pred_fallthru
    _
  // Predicated region
  $region26: #{generator_forward.23} parent=0 // pred_check
    _
  $region27: #{generator_forward.23} parent=0 // pred_check_branch
    %98 = sbr.rel (0) target = $region29
  $region28: #{generator_forward.23} parent=0 // pred_region
    _
  $region29: #{generator_forward.23} parent=0 // pred_fallthru
    _
  // Predicated region
  $region30: #{generator_forward.23} parent=0 // pred_check
    _
  $region31: #{generator_forward.23} parent=0 // pred_check_branch
    %100 = sbr.rel (0) target = $region33
  $region32: #{generator_forward.23} parent=0 // pred_region
    _
  $region33: #{generator_forward.23} parent=0 // pred_fallthru
    _
  // Predicated region
  $region34: #{generator_forward.23} parent=0 // pred_check
    _
  $region35: #{generator_forward.23} parent=0 // pred_check_branch
    %102 = sbr.rel (0) target = $region37
  $region36: #{generator_forward.23} parent=0 // pred_region
    _
  $region37: #{generator_forward.23} parent=0 // pred_fallthru
    _

// kernel: generator_forward.27
$region0: #{generator_forward.27}
  #allocation0 [shape = 'u32[]', space=smem, size = 0x4, offset = 0x4, fixed_abs, tag = 'smem constant byte address 0x4 - core index']
  #allocation1 [shape = 'u32[72,128]{1,0:T(1,128)}', space=vmem, size = 0x9000, scoped, tag = 'internal scratch']
  %s0 = inlined_call_operand.vmem [shape: f32[8,450], index: 0, kind: input, shape index: {}]
  %s1 = inlined_call_operand.vmem [shape: f32[8,1], index: 1, kind: input, shape index: {}]
  %s2 = inlined_call_operand.vmem [shape: f32[8,1], index: 2, kind: input, shape index: {}]
  %s3 = inlined_call_operand.vmem [shape: f32[8,450], index: 3, kind: output, shape index: {}]
  %s4 = sld [smem:[#allocation0]]
  $region22: #{generator_forward.27} parent=0
    _
  %s6 = ssub.s32 1, %s4
  %s7 = scalar_select 0, %s6, %s4
  // Predicated region
  $region2: #{generator_forward.27} parent=0 // pred_check
    _
  $region3: #{generator_forward.27} parent=0 // pred_check_branch
    %9 = sbr.rel (0) target = $region5
  $region4: #{generator_forward.27} parent=0 // pred_region
    _
  $region5: #{generator_forward.27} parent=0 // pred_fallthru
    _
  // Predicated region
  $region6: #{generator_forward.27} parent=0 // pred_check
    _
  $region7: #{generator_forward.27} parent=0 // pred_check_branch
    %11 = sbr.rel (0) target = $region9
  $region8: #{generator_forward.27} parent=0 // pred_region
    _
  $region9: #{generator_forward.27} parent=0 // pred_fallthru
    _
  // Predicated region
  $region10: #{generator_forward.27} parent=0 // pred_check
    _
  $region11: #{generator_forward.27} parent=0 // pred_check_branch
    %13 = sbr.rel (0) target = $region13
  $region12: #{generator_forward.27} parent=0 // pred_region
    _
  $region13: #{generator_forward.27} parent=0 // pred_fallthru
    _
  %v14 = vld [vmem:[%s0] sm:$0xff]
  %v15 = vld [vmem:[%s0 + $0x8] sm:$0xff]
  %v16 = vld [vmem:[%s0 + $0x10] sm:$0xff]
  %v17 = vld [vmem:[%s0 + $0x18] sm:$0xff]
  %v18 = vld [vmem:[%s1] sm:$0xff]
  %20 = vset.pattern.permute.xlu0 0
  %21 = vperm.xlu0 %20, %v18
  %v22 = vpop.permute.xlu0 %21
  %v24 = vmul.f32 %v14, %v22
  %v25 = vmul.f32 %v15, %v22
  %v26 = vmul.f32 %v16, %v22
  %v27 = vmul.f32 %v17, %v22
  %v28 = vld [vmem:[%s2] sm:$0xff]
  %30 = vset.pattern.permute.xlu0 0
  %31 = vperm.xlu0 %30, %v28
  %v32 = vpop.permute.xlu0 %31
  %v34 = vadd.f32 %v24, %v32
  %v35 = vadd.f32 %v25, %v32
  %v36 = vadd.f32 %v26, %v32
  %v37 = vadd.f32 %v27, %v32
  %38 = vst [vmem:[%s3] sm:$0xff] %v34
  %39 = vst [vmem:[%s3 + $0x8] sm:$0xff] %v35
  %40 = vst [vmem:[%s3 + $0x10] sm:$0xff] %v36
  %vm41 = vcmask 539648
  %42 = vst.msk [vmem:[%s3 + $0x18] sm:$0xff] %vm41, %v37
  // Predicated region
  $region14: #{generator_forward.27} parent=0 // pred_check
    _
  $region15: #{generator_forward.27} parent=0 // pred_check_branch
    %44 = sbr.rel (0) target = $region17
  $region16: #{generator_forward.27} parent=0 // pred_region
    _
  $region17: #{generator_forward.27} parent=0 // pred_fallthru
    _
  // Predicated region
  $region18: #{generator_forward.27} parent=0 // pred_check
    _
  $region19: #{generator_forward.27} parent=0 // pred_check_branch
    %46 = sbr.rel (0) target = $region21
  $region20: #{generator_forward.27} parent=0 // pred_region
    _
  $region21: #{generator_forward.27} parent=0 // pred_fallthru
    _

// kernel: generator_forward.31
$region0: #{generator_forward.31}
  #allocation0 [shape = 'u32[]', space=smem, size = 0x4, offset = 0x4, fixed_abs, tag = 'smem constant byte address 0x4 - core index']
  #allocation1 [shape = 'u32[72,128]{1,0:T(1,128)}', space=vmem, size = 0x9000, scoped, tag = 'internal scratch']
  %s0 = inlined_call_operand.vmem [shape: bf16[72,512], index: 0, kind: input, shape index: {}]
  %s1 = inlined_call_operand.vmem [shape: bf16[4,72], index: 1, kind: input, shape index: {}]
  %s2 = inlined_call_operand.vmem [shape: f32[4,1], index: 2, kind: input, shape index: {}]
  %s3 = inlined_call_operand.vmem [shape: f32[4,512], index: 3, kind: output, shape index: {0}]
  %s4 = inlined_call_operand.vmem [shape: f32[1,4,1], index: 4, kind: output, shape index: {1}]
  %s5 = inlined_call_operand.vmem [shape: f32[1,4,1], index: 5, kind: output, shape index: {2}]
  %6 = xla_tuple %s3, %s4, %s5
  %s7 = sld [smem:[#allocation0]]
  $region38: #{generator_forward.31} parent=0
    _
  %s9 = ssub.s32 1, %s7
  %s10 = scalar_select 0, %s9, %s7
  // Predicated region
  $region2: #{generator_forward.31} parent=0 // pred_check
    _
  $region3: #{generator_forward.31} parent=0 // pred_check_branch
    %12 = sbr.rel (0) target = $region5
  $region4: #{generator_forward.31} parent=0 // pred_region
    _
  $region5: #{generator_forward.31} parent=0 // pred_fallthru
    _
  // Predicated region
  $region6: #{generator_forward.31} parent=0 // pred_check
    _
  $region7: #{generator_forward.31} parent=0 // pred_check_branch
    %14 = sbr.rel (0) target = $region9
  $region8: #{generator_forward.31} parent=0 // pred_region
    _
  $region9: #{generator_forward.31} parent=0 // pred_fallthru
    _
  // Predicated region
  $region10: #{generator_forward.31} parent=0 // pred_check
    _
  $region11: #{generator_forward.31} parent=0 // pred_check_branch
    %16 = sbr.rel (0) target = $region13
  $region12: #{generator_forward.31} parent=0 // pred_region
    _
  $region13: #{generator_forward.31} parent=0 // pred_fallthru
    _
  %v18 = vld [vmem:[%s1] sm:$0x3]
  %v19 = vld [vmem:[%s0] sm:$0xff]
  %v20 = vld [vmem:[%s0 + $0x8] sm:$0xff]
  %v21 = vld [vmem:[%s0 + $0x10] sm:$0xff]
  %v22 = vld [vmem:[%s0 + $0x18] sm:$0xff]
  %v23 = vld [vmem:[%s0 + $0x20] sm:$0xff]
  %v24 = vld [vmem:[%s0 + $0x28] sm:$0xff]
  %v25 = vld [vmem:[%s0 + $0x30] sm:$0xff]
  %v26 = vld [vmem:[%s0 + $0x38] sm:$0xff]
  %v27 = vld [vmem:[%s0 + $0x40] sm:$0xff]
  %v28 = vld [vmem:[%s0 + $0x48] sm:$0xff]
  %v29 = vld [vmem:[%s0 + $0x50] sm:$0xff]
  %v30 = vld [vmem:[%s0 + $0x58] sm:$0xff]
  %v31 = vld [vmem:[%s0 + $0x60] sm:$0xff]
  %v32 = vld [vmem:[%s0 + $0x68] sm:$0xff]
  %v33 = vld [vmem:[%s0 + $0x70] sm:$0xff]
  %v34 = vld [vmem:[%s0 + $0x78] sm:$0xff]
  %v35 = vld [vmem:[%s0 + $0x80] sm:$0xff]
  %v36 = vld [vmem:[%s0 + $0x88] sm:$0xff]
  %v37 = vld [vmem:[%s2] sm:$0xf]
  %39 = vset.pattern.permute.xlu0 0
  %40 = vperm.xlu0 %39, %v37
  %v41 = vpop.permute.xlu0 %40
  %v61 = vunpack.c.l.b16 %v19
  %v62 = vunpack.c.h.b16 %v19
  %v63 = vunpack.c.l.b16 %v20
  %v64 = vunpack.c.h.b16 %v20
  %v65 = vunpack.c.l.b16 %v21
  %v66 = vunpack.c.h.b16 %v21
  %v67 = vunpack.c.l.b16 %v22
  %v68 = vunpack.c.h.b16 %v22
  %v69 = vunpack.c.l.b16 %v23
  %v70 = vunpack.c.h.b16 %v23
  %v71 = vunpack.c.l.b16 %v24
  %v72 = vunpack.c.h.b16 %v24
  %v73 = vunpack.c.l.b16 %v25
  %v74 = vunpack.c.h.b16 %v25
  %v75 = vunpack.c.l.b16 %v26
  %v76 = vunpack.c.h.b16 %v26
  %v77 = vunpack.c.l.b16 %v27
  %v78 = vunpack.c.h.b16 %v27
  %v79 = vunpack.c.l.b16 %v28
  %v80 = vunpack.c.h.b16 %v28
  %v81 = vunpack.c.l.b16 %v29
  %v82 = vunpack.c.h.b16 %v29
  %v83 = vunpack.c.l.b16 %v30
  %v84 = vunpack.c.h.b16 %v30
  %v85 = vunpack.c.l.b16 %v31
  %v86 = vunpack.c.h.b16 %v31
  %v87 = vunpack.c.l.b16 %v32
  %v88 = vunpack.c.h.b16 %v32
  %v89 = vunpack.c.l.b16 %v33
  %v90 = vunpack.c.h.b16 %v33
  %v91 = vunpack.c.l.b16 %v34
  %v92 = vunpack.c.h.b16 %v34
  %v93 = vunpack.c.l.b16 %v35
  %v94 = vunpack.c.h.b16 %v35
  %v95 = vunpack.c.l.b16 %v36
  %v96 = vunpack.c.h.b16 %v36
  %v97 = vpack.c.b16 %v65, %v61
  %v98 = vpack.c.b16 %v66, %v62
  %v99 = vpack.c.b16 %v67, %v63
  %v100 = vpack.c.b16 %v68, %v64
  %v101 = vpack.c.b16 %v73, %v69
  %v102 = vpack.c.b16 %v74, %v70
  %v103 = vpack.c.b16 %v75, %v71
  %v104 = vpack.c.b16 %v76, %v72
  %v105 = vpack.c.b16 %v81, %v77
  %v106 = vpack.c.b16 %v82, %v78
  %v107 = vpack.c.b16 %v83, %v79
  %v108 = vpack.c.b16 %v84, %v80
  %v109 = vpack.c.b16 %v89, %v85
  %v110 = vpack.c.b16 %v90, %v86
  %v111 = vpack.c.b16 %v91, %v87
  %v112 = vpack.c.b16 %v92, %v88
  %v113 = vpack.c.b16 %v93, %v93
  %v114 = vpack.c.b16 %v94, %v94
  %v115 = vpack.c.b16 %v95, %v95
  %v116 = vpack.c.b16 %v96, %v96
  %vm133 = vcmask 588800
  %v135 = vsel %vm133, %v18, 0
  %vm137 = vcmask 1043456
  %v139 = vsel %vm137, %v113, 0
  %v142 = vsel %vm137, %v114, 0
  %v145 = vsel %vm137, %v115, 0
  %v148 = vsel %vm137, %v116, 0
  %150 = vmatpush.bf16.msra.mxu0 0
  %151 = vmatpush.bf16.msra.mxu0 0
  %152 = vmatpush.bf16.msra.mxu0 0
  %153 = vmatpush.bf16.msra.mxu0 %v139
  %154 = vmatpush.bf16.msra.mxu0 %v109
  %155 = vmatpush.bf16.msra.mxu0 %v105
  %156 = vmatpush.bf16.msra.mxu0 %v101
  %157 = vmatpush.bf16.msra.mxu0 %v97
  %158 = vmatmul.bf16.gmra.mxu0 %v135
  %v159 = vpop.f32.mrf.mxu0
  %v160 = vadd.f32 %v41, %v159
  %v161 = vpop.f32.mrf.mxu0
  %162 = vdwg.mxu0
  %163 = vmatpush.bf16.msra.mxu0 0
  %164 = vmatpush.bf16.msra.mxu0 0
  %165 = vmatpush.bf16.msra.mxu0 0
  %166 = vmatpush.bf16.msra.mxu0 %v142
  %167 = vmatpush.bf16.msra.mxu0 %v110
  %168 = vmatpush.bf16.msra.mxu0 %v106
  %169 = vmatpush.bf16.msra.mxu0 %v102
  %170 = vmatpush.bf16.msra.mxu0 %v98
  %171 = vmatmul.bf16.gmra.mxu0 %v135
  %v172 = vpop.f32.mrf.mxu0
  %v173 = vadd.f32 %v41, %v172
  %v174 = vpop.f32.mrf.mxu0
  %175 = vdwg.mxu0
  %176 = vmatpush.bf16.msra.mxu0 0
  %177 = vmatpush.bf16.msra.mxu0 0
  %178 = vmatpush.bf16.msra.mxu0 0
  %179 = vmatpush.bf16.msra.mxu0 %v145
  %180 = vmatpush.bf16.msra.mxu0 %v111
  %181 = vmatpush.bf16.msra.mxu0 %v107
  %182 = vmatpush.bf16.msra.mxu0 %v103
  %183 = vmatpush.bf16.msra.mxu0 %v99
  %184 = vmatmul.bf16.gmra.mxu0 %v135
  %v185 = vpop.f32.mrf.mxu0
  %v186 = vadd.f32 %v41, %v185
  %v187 = vpop.f32.mrf.mxu0
  %188 = vdwg.mxu0
  %189 = vmatpush.bf16.msra.mxu0 0
  %190 = vmatpush.bf16.msra.mxu0 0
  %191 = vmatpush.bf16.msra.mxu0 0
  %192 = vmatpush.bf16.msra.mxu0 %v148
  %193 = vmatpush.bf16.msra.mxu0 %v112
  %194 = vmatpush.bf16.msra.mxu0 %v108
  %195 = vmatpush.bf16.msra.mxu0 %v104
  %196 = vmatpush.bf16.msra.mxu0 %v100
  %197 = vmatmul.bf16.gmra.mxu0 %v135
  %v198 = vpop.f32.mrf.mxu0
  %v199 = vadd.f32 %v41, %v198
  %v200 = vpop.f32.mrf.mxu0
  %201 = vdwg.mxu0
  %v202 = vmax.f32 %v160, 0.0
  %v203 = vmax.f32 %v173, 0.0
  %v204 = vmax.f32 %v186, 0.0
  %v205 = vmax.f32 %v199, 0.0
  %s206 = smul.u32 0, 512
  %v207 = vlaneseq
  %v208 = vand.u32 %v207, 127
  %v209 = vadd.s32 %v208, 128
  %v210 = vadd.s32 %v208, 256
  %v211 = vadd.s32 %v208, 384
  %v212 = vstv %s206
  %v213 = vadd.s32 %v212, %v208
  %v214 = vadd.s32 %v212, %v209
  %v215 = vadd.s32 %v212, %v210
  %v216 = vadd.s32 %v212, %v211
  %vm217 = vcmp.lt.s32.totalorder %v213, 512
  %vm218 = vcmp.lt.s32.totalorder %v214, 512
  %vm219 = vcmp.lt.s32.totalorder %v215, 512
  %vm220 = vcmp.lt.s32.totalorder %v216, 512
  %v221 = vsel %vm217, %v202, 0.0
  %v222 = vsel %vm218, %v203, 0.0
  %v223 = vsel %vm219, %v204, 0.0
  %v224 = vsel %vm220, %v205, 0.0
  %v229 = vrot.slane %v222, 4
  %v230 = vrot.slane %v224, 4
  %v231 = vsel %vm137, %v221, %v229
  %v232 = vsel %vm137, %v223, %v230
  %235 = vst [vmem:[%s3] sm:$0xff] %v231
  %236 = vst [vmem:[%s3 + $0x8] sm:$0xff] %v232
  %v237 = vsel %vm137, %v221, 0.0
  %v238 = vsel %vm137, %v222, 0.0
  %v239 = vadd.f32 %v237, %v238
  %v240 = vsel %vm137, %v223, 0.0
  %v241 = vadd.f32 %v239, %v240
  %v242 = vsel %vm137, %v224, 0.0
  %v243 = vadd.f32 %v241, %v242
  %244 = vadd.xlane.f32.xlu0 %v243
  %v245 = vpop.xlane.xlu0 %244
  %vm246 = vcmask 3072
  %247 = vst.msk [vmem:[%s4] sm:$0xf] %vm246, %v245
  %v248 = vmul.f32 %v221, %v221
  %v249 = vmul.f32 %v222, %v222
  %v250 = vmul.f32 %v223, %v223
  %v251 = vmul.f32 %v224, %v224
  %v252 = vsel %vm137, %v248, 0.0
  %v253 = vsel %vm137, %v249, 0.0
  %v254 = vadd.f32 %v252, %v253
  %v255 = vsel %vm137, %v250, 0.0
  %v256 = vadd.f32 %v254, %v255
  %v257 = vsel %vm137, %v251, 0.0
  %v258 = vadd.f32 %v256, %v257
  %259 = vadd.xlane.f32.xlu0 %v258
  %v260 = vpop.xlane.xlu0 %259
  %261 = vst.msk [vmem:[%s5] sm:$0xf] %vm246, %v260
  // Predicated region
  $region14: #{generator_forward.31} parent=0 // pred_check
    _
  $region15: #{generator_forward.31} parent=0 // pred_check_branch
    %263 = sbr.rel (0) target = $region17
  $region16: #{generator_forward.31} parent=0 // pred_region
    _
  $region17: #{generator_forward.31} parent=0 // pred_fallthru
    _
  // Predicated region
  $region18: #{generator_forward.31} parent=0 // pred_check
    _
  $region19: #{generator_forward.31} parent=0 // pred_check_branch
    %265 = sbr.rel (0) target = $region21
  $region20: #{generator_forward.31} parent=0 // pred_region
    _
  $region21: #{generator_forward.31} parent=0 // pred_fallthru
    _
  // Predicated region
  $region22: #{generator_forward.31} parent=0 // pred_check
    _
  $region23: #{generator_forward.31} parent=0 // pred_check_branch
    %267 = sbr.rel (0) target = $region25
  $region24: #{generator_forward.31} parent=0 // pred_region
    _
  $region25: #{generator_forward.31} parent=0 // pred_fallthru
    _
  // Predicated region
  $region26: #{generator_forward.31} parent=0 // pred_check
    _
  $region27: #{generator_forward.31} parent=0 // pred_check_branch
    %269 = sbr.rel (0) target = $region29
  $region28: #{generator_forward.31} parent=0 // pred_region
    _
  $region29: #{generator_forward.31} parent=0 // pred_fallthru
    _
  // Predicated region
  $region30: #{generator_forward.31} parent=0 // pred_check
    _
  $region31: #{generator_forward.31} parent=0 // pred_check_branch
    %271 = sbr.rel (0) target = $region33
  $region32: #{generator_forward.31} parent=0 // pred_region
    _
  $region33: #{generator_forward.31} parent=0 // pred_fallthru
    _
  // Predicated region
  $region34: #{generator_forward.31} parent=0 // pred_check
    _
  $region35: #{generator_forward.31} parent=0 // pred_check_branch
    %273 = sbr.rel (0) target = $region37
  $region36: #{generator_forward.31} parent=0 // pred_region
    _
  $region37: #{generator_forward.31} parent=0 // pred_fallthru
    _

// kernel: generator_forward.30
$region0: #{generator_forward.30}
  #allocation0 [shape = 'u32[]', space=smem, size = 0x4, offset = 0x4, fixed_abs, tag = 'smem constant byte address 0x4 - core index']
  #allocation1 [shape = 'u32[72,128]{1,0:T(1,128)}', space=vmem, size = 0x9000, scoped, tag = 'internal scratch']
  %s0 = inlined_call_operand.vmem [shape: bf16[48,512], index: 0, kind: input, shape index: {}]
  %s1 = inlined_call_operand.vmem [shape: bf16[4,48], index: 1, kind: input, shape index: {}]
  %s2 = inlined_call_operand.vmem [shape: f32[4,1], index: 2, kind: input, shape index: {}]
  %s3 = inlined_call_operand.vmem [shape: f32[4,512], index: 3, kind: output, shape index: {0}]
  %s4 = inlined_call_operand.vmem [shape: f32[1,4,1], index: 4, kind: output, shape index: {1}]
  %s5 = inlined_call_operand.vmem [shape: f32[1,4,1], index: 5, kind: output, shape index: {2}]
  %6 = xla_tuple %s3, %s4, %s5
  %s7 = sld [smem:[#allocation0]]
  $region38: #{generator_forward.30} parent=0
    _
  %s9 = ssub.s32 1, %s7
  %s10 = scalar_select 0, %s9, %s7
  // Predicated region
  $region2: #{generator_forward.30} parent=0 // pred_check
    _
  $region3: #{generator_forward.30} parent=0 // pred_check_branch
    %12 = sbr.rel (0) target = $region5
  $region4: #{generator_forward.30} parent=0 // pred_region
    _
  $region5: #{generator_forward.30} parent=0 // pred_fallthru
    _
  // Predicated region
  $region6: #{generator_forward.30} parent=0 // pred_check
    _
  $region7: #{generator_forward.30} parent=0 // pred_check_branch
    %14 = sbr.rel (0) target = $region9
  $region8: #{generator_forward.30} parent=0 // pred_region
    _
  $region9: #{generator_forward.30} parent=0 // pred_fallthru
    _
  // Predicated region
  $region10: #{generator_forward.30} parent=0 // pred_check
    _
  $region11: #{generator_forward.30} parent=0 // pred_check_branch
    %16 = sbr.rel (0) target = $region13
  $region12: #{generator_forward.30} parent=0 // pred_region
    _
  $region13: #{generator_forward.30} parent=0 // pred_fallthru
    _
  %v18 = vld [vmem:[%s1] sm:$0x3]
  %v19 = vld [vmem:[%s0] sm:$0xff]
  %v20 = vld [vmem:[%s0 + $0x8] sm:$0xff]
  %v21 = vld [vmem:[%s0 + $0x10] sm:$0xff]
  %v22 = vld [vmem:[%s0 + $0x18] sm:$0xff]
  %v23 = vld [vmem:[%s0 + $0x20] sm:$0xff]
  %v24 = vld [vmem:[%s0 + $0x28] sm:$0xff]
  %v25 = vld [vmem:[%s0 + $0x30] sm:$0xff]
  %v26 = vld [vmem:[%s0 + $0x38] sm:$0xff]
  %v27 = vld [vmem:[%s0 + $0x40] sm:$0xff]
  %v28 = vld [vmem:[%s0 + $0x48] sm:$0xff]
  %v29 = vld [vmem:[%s0 + $0x50] sm:$0xff]
  %v30 = vld [vmem:[%s0 + $0x58] sm:$0xff]
  %v31 = vld [vmem:[%s2] sm:$0xf]
  %33 = vset.pattern.permute.xlu0 0
  %34 = vperm.xlu0 %33, %v31
  %v35 = vpop.permute.xlu0 %34
  %v49 = vunpack.c.l.b16 %v19
  %v50 = vunpack.c.h.b16 %v19
  %v51 = vunpack.c.l.b16 %v20
  %v52 = vunpack.c.h.b16 %v20
  %v53 = vunpack.c.l.b16 %v21
  %v54 = vunpack.c.h.b16 %v21
  %v55 = vunpack.c.l.b16 %v22
  %v56 = vunpack.c.h.b16 %v22
  %v57 = vunpack.c.l.b16 %v23
  %v58 = vunpack.c.h.b16 %v23
  %v59 = vunpack.c.l.b16 %v24
  %v60 = vunpack.c.h.b16 %v24
  %v61 = vunpack.c.l.b16 %v25
  %v62 = vunpack.c.h.b16 %v25
  %v63 = vunpack.c.l.b16 %v26
  %v64 = vunpack.c.h.b16 %v26
  %v65 = vunpack.c.l.b16 %v27
  %v66 = vunpack.c.h.b16 %v27
  %v67 = vunpack.c.l.b16 %v28
  %v68 = vunpack.c.h.b16 %v28
  %v69 = vunpack.c.l.b16 %v29
  %v70 = vunpack.c.h.b16 %v29
  %v71 = vunpack.c.l.b16 %v30
  %v72 = vunpack.c.h.b16 %v30
  %v73 = vpack.c.b16 %v53, %v49
  %v74 = vpack.c.b16 %v54, %v50
  %v75 = vpack.c.b16 %v55, %v51
  %v76 = vpack.c.b16 %v56, %v52
  %v77 = vpack.c.b16 %v61, %v57
  %v78 = vpack.c.b16 %v62, %v58
  %v79 = vpack.c.b16 %v63, %v59
  %v80 = vpack.c.b16 %v64, %v60
  %v81 = vpack.c.b16 %v69, %v65
  %v82 = vpack.c.b16 %v70, %v66
  %v83 = vpack.c.b16 %v71, %v67
  %v84 = vpack.c.b16 %v72, %v68
  %vm97 = vcmask 392192
  %v99 = vsel %vm97, %v18, 0
  %101 = vmatpush.bf16.msra.mxu0 0
  %102 = vmatpush.bf16.msra.mxu0 0
  %103 = vmatpush.bf16.msra.mxu0 0
  %104 = vmatpush.bf16.msra.mxu0 0
  %105 = vmatpush.bf16.msra.mxu0 0
  %106 = vmatpush.bf16.msra.mxu0 %v81
  %107 = vmatpush.bf16.msra.mxu0 %v77
  %108 = vmatpush.bf16.msra.mxu0 %v73
  %109 = vmatmul.bf16.gmra.mxu0 %v99
  %v110 = vpop.f32.mrf.mxu0
  %v111 = vadd.f32 %v35, %v110
  %v112 = vpop.f32.mrf.mxu0
  %113 = vdwg.mxu0
  %114 = vmatpush.bf16.msra.mxu0 0
  %115 = vmatpush.bf16.msra.mxu0 0
  %116 = vmatpush.bf16.msra.mxu0 0
  %117 = vmatpush.bf16.msra.mxu0 0
  %118 = vmatpush.bf16.msra.mxu0 0
  %119 = vmatpush.bf16.msra.mxu0 %v82
  %120 = vmatpush.bf16.msra.mxu0 %v78
  %121 = vmatpush.bf16.msra.mxu0 %v74
  %122 = vmatmul.bf16.gmra.mxu0 %v99
  %v123 = vpop.f32.mrf.mxu0
  %v124 = vadd.f32 %v35, %v123
  %v125 = vpop.f32.mrf.mxu0
  %126 = vdwg.mxu0
  %127 = vmatpush.bf16.msra.mxu0 0
  %128 = vmatpush.bf16.msra.mxu0 0
  %129 = vmatpush.bf16.msra.mxu0 0
  %130 = vmatpush.bf16.msra.mxu0 0
  %131 = vmatpush.bf16.msra.mxu0 0
  %132 = vmatpush.bf16.msra.mxu0 %v83
  %133 = vmatpush.bf16.msra.mxu0 %v79
  %134 = vmatpush.bf16.msra.mxu0 %v75
  %135 = vmatmul.bf16.gmra.mxu0 %v99
  %v136 = vpop.f32.mrf.mxu0
  %v137 = vadd.f32 %v35, %v136
  %v138 = vpop.f32.mrf.mxu0
  %139 = vdwg.mxu0
  %140 = vmatpush.bf16.msra.mxu0 0
  %141 = vmatpush.bf16.msra.mxu0 0
  %142 = vmatpush.bf16.msra.mxu0 0
  %143 = vmatpush.bf16.msra.mxu0 0
  %144 = vmatpush.bf16.msra.mxu0 0
  %145 = vmatpush.bf16.msra.mxu0 %v84
  %146 = vmatpush.bf16.msra.mxu0 %v80
  %147 = vmatpush.bf16.msra.mxu0 %v76
  %148 = vmatmul.bf16.gmra.mxu0 %v99
  %v149 = vpop.f32.mrf.mxu0
  %v150 = vadd.f32 %v35, %v149
  %v151 = vpop.f32.mrf.mxu0
  %152 = vdwg.mxu0
  %v153 = vmax.f32 %v111, 0.0
  %v154 = vmax.f32 %v124, 0.0
  %v155 = vmax.f32 %v137, 0.0
  %v156 = vmax.f32 %v150, 0.0
  %s157 = smul.u32 0, 512
  %v158 = vlaneseq
  %v159 = vand.u32 %v158, 127
  %v160 = vadd.s32 %v159, 128
  %v161 = vadd.s32 %v159, 256
  %v162 = vadd.s32 %v159, 384
  %v163 = vstv %s157
  %v164 = vadd.s32 %v163, %v159
  %v165 = vadd.s32 %v163, %v160
  %v166 = vadd.s32 %v163, %v161
  %v167 = vadd.s32 %v163, %v162
  %vm168 = vcmp.lt.s32.totalorder %v164, 512
  %vm169 = vcmp.lt.s32.totalorder %v165, 512
  %vm170 = vcmp.lt.s32.totalorder %v166, 512
  %vm171 = vcmp.lt.s32.totalorder %v167, 512
  %v172 = vsel %vm168, %v153, 0.0
  %v173 = vsel %vm169, %v154, 0.0
  %v174 = vsel %vm170, %v155, 0.0
  %v175 = vsel %vm171, %v156, 0.0
  %v180 = vrot.slane %v173, 4
  %v181 = vrot.slane %v175, 4
  %vm182 = vcmask 1043456
  %v183 = vsel %vm182, %v172, %v180
  %v184 = vsel %vm182, %v174, %v181
  %187 = vst [vmem:[%s3] sm:$0xff] %v183
  %188 = vst [vmem:[%s3 + $0x8] sm:$0xff] %v184
  %v189 = vsel %vm182, %v172, 0.0
  %v190 = vsel %vm182, %v173, 0.0
  %v191 = vadd.f32 %v189, %v190
  %v192 = vsel %vm182, %v174, 0.0
  %v193 = vadd.f32 %v191, %v192
  %v194 = vsel %vm182, %v175, 0.0
  %v195 = vadd.f32 %v193, %v194
  %196 = vadd.xlane.f32.xlu0 %v195
  %v197 = vpop.xlane.xlu0 %196
  %vm198 = vcmask 3072
  %199 = vst.msk [vmem:[%s4] sm:$0xf] %vm198, %v197
  %v200 = vmul.f32 %v172, %v172
  %v201 = vmul.f32 %v173, %v173
  %v202 = vmul.f32 %v174, %v174
  %v203 = vmul.f32 %v175, %v175
  %v204 = vsel %vm182, %v200, 0.0
  %v205 = vsel %vm182, %v201, 0.0
  %v206 = vadd.f32 %v204, %v205
  %v207 = vsel %vm182, %v202, 0.0
  %v208 = vadd.f32 %v206, %v207
  %v209 = vsel %vm182, %v203, 0.0
  %v210 = vadd.f32 %v208, %v209
  %211 = vadd.xlane.f32.xlu0 %v210
  %v212 = vpop.xlane.xlu0 %211
  %213 = vst.msk [vmem:[%s5] sm:$0xf] %vm198, %v212
  // Predicated region
  $region14: #{generator_forward.30} parent=0 // pred_check
    _
  $region15: #{generator_forward.30} parent=0 // pred_check_branch
    %215 = sbr.rel (0) target = $region17
  $region16: #{generator_forward.30} parent=0 // pred_region
    _
  $region17: #{generator_forward.30} parent=0 // pred_fallthru
    _
  // Predicated region
  $region18: #{generator_forward.30} parent=0 // pred_check
    _
  $region19: #{generator_forward.30} parent=0 // pred_check_branch
    %217 = sbr.rel (0) target = $region21
  $region20: #{generator_forward.30} parent=0 // pred_region
    _
  $region21: #{generator_forward.30} parent=0 // pred_fallthru
    _
  // Predicated region
  $region22: #{generator_forward.30} parent=0 // pred_check
    _
  $region23: #{generator_forward.30} parent=0 // pred_check_branch
    %219 = sbr.rel (0) target = $region25
  $region24: #{generator_forward.30} parent=0 // pred_region
    _
  $region25: #{generator_forward.30} parent=0 // pred_fallthru
    _
  // Predicated region
  $region26: #{generator_forward.30} parent=0 // pred_check
    _
  $region27: #{generator_forward.30} parent=0 // pred_check_branch
    %221 = sbr.rel (0) target = $region29
  $region28: #{generator_forward.30} parent=0 // pred_region
    _
  $region29: #{generator_forward.30} parent=0 // pred_fallthru
    _
  // Predicated region
  $region30: #{generator_forward.30} parent=0 // pred_check
    _
  $region31: #{generator_forward.30} parent=0 // pred_check_branch
    %223 = sbr.rel (0) target = $region33
  $region32: #{generator_forward.30} parent=0 // pred_region
    _
  $region33: #{generator_forward.30} parent=0 // pred_fallthru
    _
  // Predicated region
  $region34: #{generator_forward.30} parent=0 // pred_check
    _
  $region35: #{generator_forward.30} parent=0 // pred_check_branch
    %225 = sbr.rel (0) target = $region37
  $region36: #{generator_forward.30} parent=0 // pred_region
    _
  $region37: #{generator_forward.30} parent=0 // pred_fallthru
    _

// kernel: generator_forward.28
$region0: #{generator_forward.28}
  #allocation0 [shape = 'u32[]', space=smem, size = 0x4, offset = 0x4, fixed_abs, tag = 'smem constant byte address 0x4 - core index']
  #allocation1 [shape = 'u32[72,128]{1,0:T(1,128)}', space=vmem, size = 0x9000, scoped, tag = 'internal scratch']
  %s0 = inlined_call_operand.vmem [shape: bf16[32,512], index: 0, kind: input, shape index: {}]
  %s1 = inlined_call_operand.vmem [shape: bf16[4,32], index: 1, kind: input, shape index: {}]
  %s2 = inlined_call_operand.vmem [shape: f32[4,1], index: 2, kind: input, shape index: {}]
  %s3 = inlined_call_operand.vmem [shape: f32[4,512], index: 3, kind: output, shape index: {0}]
  %s4 = inlined_call_operand.vmem [shape: f32[1,4,1], index: 4, kind: output, shape index: {1}]
  %s5 = inlined_call_operand.vmem [shape: f32[1,4,1], index: 5, kind: output, shape index: {2}]
  %6 = xla_tuple %s3, %s4, %s5
  %s7 = sld [smem:[#allocation0]]
  $region38: #{generator_forward.28} parent=0
    _
  %s9 = ssub.s32 1, %s7
  %s10 = scalar_select 0, %s9, %s7
  // Predicated region
  $region2: #{generator_forward.28} parent=0 // pred_check
    _
  $region3: #{generator_forward.28} parent=0 // pred_check_branch
    %12 = sbr.rel (0) target = $region5
  $region4: #{generator_forward.28} parent=0 // pred_region
    _
  $region5: #{generator_forward.28} parent=0 // pred_fallthru
    _
  // Predicated region
  $region6: #{generator_forward.28} parent=0 // pred_check
    _
  $region7: #{generator_forward.28} parent=0 // pred_check_branch
    %14 = sbr.rel (0) target = $region9
  $region8: #{generator_forward.28} parent=0 // pred_region
    _
  $region9: #{generator_forward.28} parent=0 // pred_fallthru
    _
  // Predicated region
  $region10: #{generator_forward.28} parent=0 // pred_check
    _
  $region11: #{generator_forward.28} parent=0 // pred_check_branch
    %16 = sbr.rel (0) target = $region13
  $region12: #{generator_forward.28} parent=0 // pred_region
    _
  $region13: #{generator_forward.28} parent=0 // pred_fallthru
    _
  %v18 = vld [vmem:[%s1] sm:$0x3]
  %v19 = vld [vmem:[%s0] sm:$0xff]
  %v20 = vld [vmem:[%s0 + $0x8] sm:$0xff]
  %v21 = vld [vmem:[%s0 + $0x10] sm:$0xff]
  %v22 = vld [vmem:[%s0 + $0x18] sm:$0xff]
  %v23 = vld [vmem:[%s0 + $0x20] sm:$0xff]
  %v24 = vld [vmem:[%s0 + $0x28] sm:$0xff]
  %v25 = vld [vmem:[%s0 + $0x30] sm:$0xff]
  %v26 = vld [vmem:[%s0 + $0x38] sm:$0xff]
  %v27 = vld [vmem:[%s2] sm:$0xf]
  %29 = vset.pattern.permute.xlu0 0
  %30 = vperm.xlu0 %29, %v27
  %v31 = vpop.permute.xlu0 %30
  %v41 = vunpack.c.l.b16 %v19
  %v42 = vunpack.c.h.b16 %v19
  %v43 = vunpack.c.l.b16 %v20
  %v44 = vunpack.c.h.b16 %v20
  %v45 = vunpack.c.l.b16 %v21
  %v46 = vunpack.c.h.b16 %v21
  %v47 = vunpack.c.l.b16 %v22
  %v48 = vunpack.c.h.b16 %v22
  %v49 = vunpack.c.l.b16 %v23
  %v50 = vunpack.c.h.b16 %v23
  %v51 = vunpack.c.l.b16 %v24
  %v52 = vunpack.c.h.b16 %v24
  %v53 = vunpack.c.l.b16 %v25
  %v54 = vunpack.c.h.b16 %v25
  %v55 = vunpack.c.l.b16 %v26
  %v56 = vunpack.c.h.b16 %v26
  %v57 = vpack.c.b16 %v45, %v41
  %v58 = vpack.c.b16 %v46, %v42
  %v59 = vpack.c.b16 %v47, %v43
  %v60 = vpack.c.b16 %v48, %v44
  %v61 = vpack.c.b16 %v53, %v49
  %v62 = vpack.c.b16 %v54, %v50
  %v63 = vpack.c.b16 %v55, %v51
  %v64 = vpack.c.b16 %v56, %v52
  %vm73 = vcmask 261120
  %v75 = vsel %vm73, %v18, 0
  %77 = vmatpush.bf16.msra.mxu0 0
  %78 = vmatpush.bf16.msra.mxu0 0
  %79 = vmatpush.bf16.msra.mxu0 0
  %80 = vmatpush.bf16.msra.mxu0 0
  %81 = vmatpush.bf16.msra.mxu0 0
  %82 = vmatpush.bf16.msra.mxu0 0
  %83 = vmatpush.bf16.msra.mxu0 %v61
  %84 = vmatpush.bf16.msra.mxu0 %v57
  %85 = vmatmul.bf16.gmra.mxu0 %v75
  %v86 = vpop.f32.mrf.mxu0
  %v87 = vadd.f32 %v31, %v86
  %v88 = vpop.f32.mrf.mxu0
  %89 = vdwg.mxu0
  %90 = vmatpush.bf16.msra.mxu0 0
  %91 = vmatpush.bf16.msra.mxu0 0
  %92 = vmatpush.bf16.msra.mxu0 0
  %93 = vmatpush.bf16.msra.mxu0 0
  %94 = vmatpush.bf16.msra.mxu0 0
  %95 = vmatpush.bf16.msra.mxu0 0
  %96 = vmatpush.bf16.msra.mxu0 %v62
  %97 = vmatpush.bf16.msra.mxu0 %v58
  %98 = vmatmul.bf16.gmra.mxu0 %v75
  %v99 = vpop.f32.mrf.mxu0
  %v100 = vadd.f32 %v31, %v99
  %v101 = vpop.f32.mrf.mxu0
  %102 = vdwg.mxu0
  %103 = vmatpush.bf16.msra.mxu0 0
  %104 = vmatpush.bf16.msra.mxu0 0
  %105 = vmatpush.bf16.msra.mxu0 0
  %106 = vmatpush.bf16.msra.mxu0 0
  %107 = vmatpush.bf16.msra.mxu0 0
  %108 = vmatpush.bf16.msra.mxu0 0
  %109 = vmatpush.bf16.msra.mxu0 %v63
  %110 = vmatpush.bf16.msra.mxu0 %v59
  %111 = vmatmul.bf16.gmra.mxu0 %v75
  %v112 = vpop.f32.mrf.mxu0
  %v113 = vadd.f32 %v31, %v112
  %v114 = vpop.f32.mrf.mxu0
  %115 = vdwg.mxu0
  %116 = vmatpush.bf16.msra.mxu0 0
  %117 = vmatpush.bf16.msra.mxu0 0
  %118 = vmatpush.bf16.msra.mxu0 0
  %119 = vmatpush.bf16.msra.mxu0 0
  %120 = vmatpush.bf16.msra.mxu0 0
  %121 = vmatpush.bf16.msra.mxu0 0
  %122 = vmatpush.bf16.msra.mxu0 %v64
  %123 = vmatpush.bf16.msra.mxu0 %v60
  %124 = vmatmul.bf16.gmra.mxu0 %v75
  %v125 = vpop.f32.mrf.mxu0
  %v126 = vadd.f32 %v31, %v125
  %v127 = vpop.f32.mrf.mxu0
  %128 = vdwg.mxu0
  %v129 = vmax.f32 %v87, 0.0
  %v130 = vmax.f32 %v100, 0.0
  %v131 = vmax.f32 %v113, 0.0
  %v132 = vmax.f32 %v126, 0.0
  %s133 = smul.u32 0, 512
  %v134 = vlaneseq
  %v135 = vand.u32 %v134, 127
  %v136 = vadd.s32 %v135, 128
  %v137 = vadd.s32 %v135, 256
  %v138 = vadd.s32 %v135, 384
  %v139 = vstv %s133
  %v140 = vadd.s32 %v139, %v135
  %v141 = vadd.s32 %v139, %v136
  %v142 = vadd.s32 %v139, %v137
  %v143 = vadd.s32 %v139, %v138
  %vm144 = vcmp.lt.s32.totalorder %v140, 512
  %vm145 = vcmp.lt.s32.totalorder %v141, 512
  %vm146 = vcmp.lt.s32.totalorder %v142, 512
  %vm147 = vcmp.lt.s32.totalorder %v143, 512
  %v148 = vsel %vm144, %v129, 0.0
  %v149 = vsel %vm145, %v130, 0.0
  %v150 = vsel %vm146, %v131, 0.0
  %v151 = vsel %vm147, %v132, 0.0
  %v156 = vrot.slane %v149, 4
  %v157 = vrot.slane %v151, 4
  %vm158 = vcmask 1043456
  %v159 = vsel %vm158, %v148, %v156
  %v160 = vsel %vm158, %v150, %v157
  %163 = vst [vmem:[%s3] sm:$0xff] %v159
  %164 = vst [vmem:[%s3 + $0x8] sm:$0xff] %v160
  %v165 = vsel %vm158, %v148, 0.0
  %v166 = vsel %vm158, %v149, 0.0
  %v167 = vadd.f32 %v165, %v166
  %v168 = vsel %vm158, %v150, 0.0
  %v169 = vadd.f32 %v167, %v168
  %v170 = vsel %vm158, %v151, 0.0
  %v171 = vadd.f32 %v169, %v170
  %172 = vadd.xlane.f32.xlu0 %v171
  %v173 = vpop.xlane.xlu0 %172
  %vm174 = vcmask 3072
  %175 = vst.msk [vmem:[%s4] sm:$0xf] %vm174, %v173
  %v176 = vmul.f32 %v148, %v148
  %v177 = vmul.f32 %v149, %v149
  %v178 = vmul.f32 %v150, %v150
  %v179 = vmul.f32 %v151, %v151
  %v180 = vsel %vm158, %v176, 0.0
  %v181 = vsel %vm158, %v177, 0.0
  %v182 = vadd.f32 %v180, %v181
  %v183 = vsel %vm158, %v178, 0.0
  %v184 = vadd.f32 %v182, %v183
  %v185 = vsel %vm158, %v179, 0.0
  %v186 = vadd.f32 %v184, %v185
  %187 = vadd.xlane.f32.xlu0 %v186
  %v188 = vpop.xlane.xlu0 %187
  %189 = vst.msk [vmem:[%s5] sm:$0xf] %vm174, %v188
  // Predicated region
  $region14: #{generator_forward.28} parent=0 // pred_check
    _
  $region15: #{generator_forward.28} parent=0 // pred_check_branch
    %191 = sbr.rel (0) target = $region17
  $region16: #{generator_forward.28} parent=0 // pred_region
    _
  $region17: #{generator_forward.28} parent=0 // pred_fallthru
    _
  // Predicated region
  $region18: #{generator_forward.28} parent=0 // pred_check
    _
  $region19: #{generator_forward.28} parent=0 // pred_check_branch
    %193 = sbr.rel (0) target = $region21
  $region20: #{generator_forward.28} parent=0 // pred_region
    _
  $region21: #{generator_forward.28} parent=0 // pred_fallthru
    _
  // Predicated region
  $region22: #{generator_forward.28} parent=0 // pred_check
    _
  $region23: #{generator_forward.28} parent=0 // pred_check_branch
    %195 = sbr.rel (0) target = $region25
  $region24: #{generator_forward.28} parent=0 // pred_region
    _
  $region25: #{generator_forward.28} parent=0 // pred_fallthru
    _
  // Predicated region
  $region26: #{generator_forward.28} parent=0 // pred_check
    _
  $region27: #{generator_forward.28} parent=0 // pred_check_branch
    %197 = sbr.rel (0) target = $region29
  $region28: #{generator_forward.28} parent=0 // pred_region
    _
  $region29: #{generator_forward.28} parent=0 // pred_fallthru
    _
  // Predicated region
  $region30: #{generator_forward.28} parent=0 // pred_check
    _
  $region31: #{generator_forward.28} parent=0 // pred_check_branch
    %199 = sbr.rel (0) target = $region33
  $region32: #{generator_forward.28} parent=0 // pred_region
    _
  $region33: #{generator_forward.28} parent=0 // pred_fallthru
    _
  // Predicated region
  $region34: #{generator_forward.28} parent=0 // pred_check
    _
  $region35: #{generator_forward.28} parent=0 // pred_check_branch
    %201 = sbr.rel (0) target = $region37
  $region36: #{generator_forward.28} parent=0 // pred_region
    _
  $region37: #{generator_forward.28} parent=0 // pred_fallthru
    _

// kernel: generator_forward.32
$region0: #{generator_forward.32}
  #allocation0 [shape = 'u32[]', space=smem, size = 0x4, offset = 0x4, fixed_abs, tag = 'smem constant byte address 0x4 - core index']
  #allocation1 [shape = 'u32[72,128]{1,0:T(1,128)}', space=vmem, size = 0x9000, scoped, tag = 'internal scratch']
  %s0 = inlined_call_operand.vmem [shape: f32[4,2048], index: 0, kind: input, shape index: {}]
  %s1 = inlined_call_operand.vmem [shape: f32[4,1], index: 1, kind: input, shape index: {}]
  %s2 = inlined_call_operand.vmem [shape: f32[4,1], index: 2, kind: input, shape index: {}]
  %s3 = inlined_call_operand.vmem [shape: f32[4,2048], index: 3, kind: output, shape index: {}]
  %s4 = sld [smem:[#allocation0]]
  $region45: #{generator_forward.32} parent=0
    _
  %s6 = ssub.s32 1, %s4
  %s7 = scalar_select 0, %s6, %s4
  loop: start=0, step=1, limit=4
  $region2: #{generator_forward.32} parent=0 // loop_pre_header
    _
  $region3: #{generator_forward.32} parent=0 // loop_header
    %s9 = sphi 0, %s13
    %p10 = scmp.ge.s32.totalorder %s9, 4
    %s19 = sphi 0, %s21
    %s22 = sphi 0, %s19
    %s23 = sphi 0, %s22
    %s39 = sphi 0, %s23
    %s43 = sphi 0, %s43
    %s45 = sphi 0, %s43
    %s46 = sphi 0, %s45
    %s60 = sphi 0, %s46
    %s64 = sphi 0, %s64
    %s66 = sphi 0, %s64
    %s67 = sphi 0, %s66
    %s81 = sphi 0, %s67
    %s87 = sphi 0, %s89
    %s90 = sphi 0, %s87
    %s91 = sphi 0, %s90
    %s107 = sphi 0, %s91
  $region4: #{generator_forward.32} parent=0 // loop_header_branch
    %12 = sbr.rel (%p10) target = $region8
  $region5: #{generator_forward.32} parent=0 // loop_body
    %s14 = ssub.s32 %s9, 1
    %s15 = ssub.s32 %s9, 2
    %s16 = sadd.s32 %s9, 1
    %s17 = ssub.s32 %s9, %s16
    %p18 = scmp.eq.s32.totalorder %s17, 0
    %s20 = sadd.s32 %s19, 1
    %s21 = scalar_select %p18, %s19, %s20
    %p24 = pneg %p18
    %p25 = scmp.eq.s32.totalorder %s9, 1
    %p26 = por %p24, %p25
    %p27 = scmp.ne.s32.totalorder %s19, %s22
    %p28 = scmp.eq.s32.totalorder %s9, 0
    %p29 = por %p27, %p28
    %p30 = scmp.ne.s32.totalorder %s19, %s22
    %p31 = scmp.eq.s32.totalorder %s14, 1
    %p32 = por %p30, %p31
    %p33 = scmp.ne.s32.totalorder %s22, %s23
    %p34 = scmp.eq.s32.totalorder %s14, 0
    %p35 = por %p33, %p34
    %p36 = scmp.ne.s32.totalorder %s22, %s23
    %p37 = scmp.eq.s32.totalorder %s15, 1
    %p38 = por %p36, %p37
    %p40 = scmp.ne.s32.totalorder %s23, %s39
    %p41 = scmp.eq.s32.totalorder %s15, 0
    %p42 = por %p40, %p41
    %s44 = sadd.s32 %s43, 1
    %p47 = scmp.eq.s32.totalorder %s9, 1
    %p48 = scmp.ne.s32.totalorder %s43, %s45
    %p49 = scmp.eq.s32.totalorder %s9, 0
    %p50 = por %p48, %p49
    %p51 = scmp.ne.s32.totalorder %s43, %s45
    %p52 = scmp.eq.s32.totalorder %s14, 1
    %p53 = por %p51, %p52
    %p54 = scmp.ne.s32.totalorder %s45, %s46
    %p55 = scmp.eq.s32.totalorder %s14, 0
    %p56 = por %p54, %p55
    %p57 = scmp.ne.s32.totalorder %s45, %s46
    %p58 = scmp.eq.s32.totalorder %s15, 1
    %p59 = por %p57, %p58
    %p61 = scmp.ne.s32.totalorder %s46, %s60
    %p62 = scmp.eq.s32.totalorder %s15, 0
    %p63 = por %p61, %p62
    %s65 = sadd.s32 %s64, 1
    %p68 = scmp.eq.s32.totalorder %s9, 1
    %p69 = scmp.ne.s32.totalorder %s64, %s66
    %p70 = scmp.eq.s32.totalorder %s9, 0
    %p71 = por %p69, %p70
    %p72 = scmp.ne.s32.totalorder %s64, %s66
    %p73 = scmp.eq.s32.totalorder %s14, 1
    %p74 = por %p72, %p73
    %p75 = scmp.ne.s32.totalorder %s66, %s67
    %p76 = scmp.eq.s32.totalorder %s14, 0
    %p77 = por %p75, %p76
    %p78 = scmp.ne.s32.totalorder %s66, %s67
    %p79 = scmp.eq.s32.totalorder %s15, 1
    %p80 = por %p78, %p79
    %p82 = scmp.ne.s32.totalorder %s67, %s81
    %p83 = scmp.eq.s32.totalorder %s15, 0
    %p84 = por %p82, %p83
    %s85 = ssub.s32 %s9, %s16
    %p86 = scmp.eq.s32.totalorder %s85, 0
    %s88 = sadd.s32 %s87, 1
    %s89 = scalar_select %p86, %s87, %s88
    %p92 = pneg %p86
    %p93 = scmp.eq.s32.totalorder %s9, 1
    %p94 = por %p92, %p93
    %p95 = scmp.ne.s32.totalorder %s87, %s90
    %p96 = scmp.eq.s32.totalorder %s9, 0
    %p97 = por %p95, %p96
    %p98 = scmp.ne.s32.totalorder %s87, %s90
    %p99 = scmp.eq.s32.totalorder %s14, 1
    %p100 = por %p98, %p99
    %p101 = scmp.ne.s32.totalorder %s90, %s91
    %p102 = scmp.eq.s32.totalorder %s14, 0
    %p103 = por %p101, %p102
    %p104 = scmp.ne.s32.totalorder %s90, %s91
    %p105 = scmp.eq.s32.totalorder %s15, 1
    %p106 = por %p104, %p105
    %p108 = scmp.ne.s32.totalorder %s91, %s107
    %p109 = scmp.eq.s32.totalorder %s15, 0
    %p110 = por %p108, %p109
    %p111 = scmp.le.s32.totalorder 1, %s9
    %p112 = scmp.lt.s32.totalorder %s9, 3
    %p113 = pnand %p111, %p112
    %p114 = pneg %p113
    // Predicated region
    $region9: #{generator_forward.32} parent=5 // pred_check
      _
    $region10: #{generator_forward.32} parent=5 // pred_check_branch
      %116 = sbr.rel (%p113) target = $region12
    $region11: #{generator_forward.32} parent=5 // pred_region
      %s117 = ssub.s32 %s9, 1
      // Predicated region
      $region13: #{generator_forward.32} parent=11 // pred_check
        %p118 = pneg %p56
      $region14: #{generator_forward.32} parent=11 // pred_check_branch
        %120 = sbr.rel (%p118) target = $region16
      $region15: #{generator_forward.32} parent=11 // pred_region
        _
      $region16: #{generator_forward.32} parent=11 // pred_fallthru
        _
      // Predicated region
      $region17: #{generator_forward.32} parent=11 // pred_check
        %p121 = pneg %p77
      $region18: #{generator_forward.32} parent=11 // pred_check_branch
        %123 = sbr.rel (%p121) target = $region20
      $region19: #{generator_forward.32} parent=11 // pred_region
        _
      $region20: #{generator_forward.32} parent=11 // pred_fallthru
        _
    $region12: #{generator_forward.32} parent=5 // pred_fallthru
      _
    %p124 = scmp.lt.s32.totalorder %s9, 2
    // Predicated region
    $region21: #{generator_forward.32} parent=5 // pred_check
      %p125 = pneg %p124
    $region22: #{generator_forward.32} parent=5 // pred_check_branch
      %127 = sbr.rel (%p125) target = $region24
    $region23: #{generator_forward.32} parent=5 // pred_region
      // Predicated region
      $region25: #{generator_forward.32} parent=23 // pred_check
        %p128 = pneg %p29
      $region26: #{generator_forward.32} parent=23 // pred_check_branch
        %130 = sbr.rel (%p128) target = $region28
      $region27: #{generator_forward.32} parent=23 // pred_region
        %s131 = smul.u32 8, %s9
        %p132 = scmp.lt.s32.totalorder %s131, 15
        %s133 = scalar_select %p132, %s131, 15
        %s134 = smul.addr %s133, 4
        %s135 = scalar_lea.vmem %s0, %s134
        %s136 = smul.u32 8, %s9
      $region28: #{generator_forward.32} parent=23 // pred_fallthru
        _
    $region24: #{generator_forward.32} parent=5 // pred_fallthru
      _
    %p137 = scmp.le.s32.totalorder 1, %s9
    %p138 = scmp.lt.s32.totalorder %s9, 3
    %p139 = pnand %p137, %p138
    %p140 = pneg %p139
    // Predicated region
    $region29: #{generator_forward.32} parent=5 // pred_check
      _
    $region30: #{generator_forward.32} parent=5 // pred_check_branch
      %142 = sbr.rel (%p139) target = $region32
    $region31: #{generator_forward.32} parent=5 // pred_region
      %s143 = ssub.s32 %s9, 1
      %s144 = smul.u32 8, %s14
      %p145 = scmp.lt.s32.totalorder %s144, 15
      %s146 = scalar_select %p145, %s144, 15
      %s147 = smul.addr %s146, 4
      %s148 = scalar_lea.vmem %s0, %s147
      %p149 = pneg %p35
      %p150 = pneg %p32
      %p151 = pneg %p56
      %p152 = pneg %p53
      %p153 = pneg %p77
      %p154 = pneg %p74
      %p155 = pneg %p103
      %p156 = pneg %p100
      %s157 = smul.u32 8, %s14
      %p158 = scmp.lt.s32.totalorder %s157, 15
      %s159 = scalar_select %p158, %s157, 15
      %s160 = smul.addr %s159, 4
      %s161 = scalar_lea.vmem %s3, %s160
      %s162 = smul.u32 8, %s14
      %p163 = scmp.lt.s32.totalorder %s162, 15
      %s164 = scalar_select %p163, %s162, 15
      %s165 = smul.addr %s164, 4
      %s166 = scalar_lea.vmem %s0, %s165
      %s167 = smul.u32 8, %s14
      %s168 = smul.u32 8, %s14
      %p169 = scmp.lt.s32.totalorder %s168, 15
      %s170 = scalar_select %p169, %s168, 15
      %s171 = smul.addr %s170, 4
      %s172 = scalar_lea.vmem %s3, %s171
      %s173 = smul.u32 8, %s14
      %v174 = vld [vmem:[%s166] sm:$0xff]
      %v175 = vld [vmem:[%s166 + $0x8] sm:$0xff]
      %v176 = vld [vmem:[%s166 + $0x10] sm:$0xff]
      %v177 = vld [vmem:[%s166 + $0x18] sm:$0xff]
      %v178 = vld [vmem:[%s1] sm:$0xf]
      %180 = vset.pattern.permute.xlu0 0
      %181 = vperm.xlu0 %180, %v178
      %v182 = vpop.permute.xlu0 %181
      %v184 = vunpack.c.l.s4 839922192
      %v185 = vunpack.c.0.s8 %v184
      %v186 = vperm.slane %v182, %v185
      %v188 = vmul.f32 %v174, %v186
      %v189 = vmul.f32 %v175, %v186
      %v190 = vmul.f32 %v176, %v186
      %v191 = vmul.f32 %v177, %v186
      %v192 = vld [vmem:[%s2] sm:$0xf]
      %194 = vset.pattern.permute.xlu0 0
      %195 = vperm.xlu0 %194, %v192
      %v196 = vpop.permute.xlu0 %195
      %v198 = vunpack.c.l.s4 839922192
      %v199 = vunpack.c.0.s8 %v198
      %v200 = vperm.slane %v196, %v199
      %v202 = vadd.f32 %v188, %v200
      %v203 = vadd.f32 %v189, %v200
      %v204 = vadd.f32 %v190, %v200
      %v205 = vadd.f32 %v191, %v200
      %206 = vst [vmem:[%s172] sm:$0xff] %v202
      %207 = vst [vmem:[%s172 + $0x8] sm:$0xff] %v203
      %208 = vst [vmem:[%s172 + $0x10] sm:$0xff] %v204
      %209 = vst [vmem:[%s172 + $0x18] sm:$0xff] %v205
      %s210 = smul.u32 8, %s14
      %p211 = scmp.lt.s32.totalorder %s210, 15
      %s212 = scalar_select %p211, %s210, 15
      %s213 = smul.addr %s212, 4
      %s214 = scalar_lea.vmem %s3, %s213
      // Predicated region
      $region33: #{generator_forward.32} parent=31 // pred_check
        %p215 = pneg %p100
      $region34: #{generator_forward.32} parent=31 // pred_check_branch
        %217 = sbr.rel (%p215) target = $region36
      $region35: #{generator_forward.32} parent=31 // pred_region
        %s218 = smul.u32 8, %s14
      $region36: #{generator_forward.32} parent=31 // pred_fallthru
        _
    $region32: #{generator_forward.32} parent=5 // pred_fallthru
      _
    %p219 = scmp.le.s32.totalorder 2, %s9
    // Predicated region
    $region37: #{generator_forward.32} parent=5 // pred_check
      %p220 = pneg %p219
    $region38: #{generator_forward.32} parent=5 // pred_check_branch
      %222 = sbr.rel (%p220) target = $region40
    $region39: #{generator_forward.32} parent=5 // pred_region
      %s223 = ssub.s32 %s9, 2
      // Predicated region
      $region41: #{generator_forward.32} parent=39 // pred_check
        %p224 = pneg %p106
      $region42: #{generator_forward.32} parent=39 // pred_check_branch
        %226 = sbr.rel (%p224) target = $region44
      $region43: #{generator_forward.32} parent=39 // pred_region
        %s227 = smul.u32 8, %s15
        %p228 = scmp.lt.s32.totalorder %s227, 15
        %s229 = scalar_select %p228, %s227, 15
        %s230 = smul.addr %s229, 4
        %s231 = scalar_lea.vmem %s3, %s230
      $region44: #{generator_forward.32} parent=39 // pred_fallthru
        _
    $region40: #{generator_forward.32} parent=5 // pred_fallthru
      _
  $region6: #{generator_forward.32} parent=0 // loop_footer
    %s13 = sadd.s32 1, %s9
  $region7: #{generator_forward.32} parent=0 // loop_footer_branch
    %8 = sbr.rel target = $region3
  $region8: #{generator_forward.32} parent=0 // loop_exit
    _

// kernel: generator_forward.33
$region0: #{generator_forward.33}
  #allocation0 [shape = 'u32[]', space=smem, size = 0x4, offset = 0x4, fixed_abs, tag = 'smem constant byte address 0x4 - core index']
  #allocation1 [shape = 'u32[72,128]{1,0:T(1,128)}', space=vmem, size = 0x9000, scoped, tag = 'internal scratch']
  %s0 = inlined_call_operand.vmem [shape: bf16[196,2048], index: 0, kind: input, shape index: {}]
  %s1 = inlined_call_operand.vmem [shape: bf16[8,196], index: 1, kind: input, shape index: {}]
  %s2 = inlined_call_operand.vmem [shape: f32[8,1], index: 2, kind: input, shape index: {}]
  %s3 = inlined_call_operand.vmem [shape: f32[8,2048], index: 3, kind: output, shape index: {}]
  %s4 = sld [smem:[#allocation0]]
  $region68: #{generator_forward.33} parent=0
    _
  %s6 = ssub.s32 1, %s4
  %s7 = scalar_select 0, %s6, %s4
  $region1: #{generator_forward.33} parent=0
    #allocation2 [shape = 'u8[819200]{0}', space=vmem, size = 0xc8000, scoped, tag = 'input window, operand 0']
    loop: start=0, step=1, limit=4
    $region2: #{generator_forward.33} parent=1 // loop_pre_header
      _
    $region3: #{generator_forward.33} parent=1 // loop_header
      %s9 = sphi 0, %s13
      %p10 = scmp.ge.s32.totalorder %s9, 4
      %s19 = sphi 0, %s21
      %s22 = sphi 0, %s19
      %s23 = sphi 0, %s22
      %s39 = sphi 0, %s23
      %s43 = sphi 0, %s43
      %s45 = sphi 0, %s43
      %s46 = sphi 0, %s45
      %s60 = sphi 0, %s46
      %s64 = sphi 0, %s64
      %s66 = sphi 0, %s64
      %s67 = sphi 0, %s66
      %s81 = sphi 0, %s67
      %s87 = sphi 0, %s89
      %s90 = sphi 0, %s87
      %s91 = sphi 0, %s90
      %s107 = sphi 0, %s91
    $region4: #{generator_forward.33} parent=1 // loop_header_branch
      %12 = sbr.rel (%p10) target = $region8
    $region5: #{generator_forward.33} parent=1 // loop_body
      %s14 = ssub.s32 %s9, 1
      %s15 = ssub.s32 %s9, 2
      %s16 = sadd.s32 %s9, 1
      %s17 = ssub.s32 %s9, %s16
      %p18 = scmp.eq.s32.totalorder %s17, 0
      %s20 = sadd.s32 %s19, 1
      %s21 = scalar_select %p18, %s19, %s20
      %p24 = pneg %p18
      %p25 = scmp.eq.s32.totalorder %s9, 1
      %p26 = por %p24, %p25
      %p27 = scmp.ne.s32.totalorder %s19, %s22
      %p28 = scmp.eq.s32.totalorder %s9, 0
      %p29 = por %p27, %p28
      %p30 = scmp.ne.s32.totalorder %s19, %s22
      %p31 = scmp.eq.s32.totalorder %s14, 1
      %p32 = por %p30, %p31
      %p33 = scmp.ne.s32.totalorder %s22, %s23
      %p34 = scmp.eq.s32.totalorder %s14, 0
      %p35 = por %p33, %p34
      %p36 = scmp.ne.s32.totalorder %s22, %s23
      %p37 = scmp.eq.s32.totalorder %s15, 1
      %p38 = por %p36, %p37
      %p40 = scmp.ne.s32.totalorder %s23, %s39
      %p41 = scmp.eq.s32.totalorder %s15, 0
      %p42 = por %p40, %p41
      %s44 = sadd.s32 %s43, 1
      %p47 = scmp.eq.s32.totalorder %s9, 1
      %p48 = scmp.ne.s32.totalorder %s43, %s45
      %p49 = scmp.eq.s32.totalorder %s9, 0
      %p50 = por %p48, %p49
      %p51 = scmp.ne.s32.totalorder %s43, %s45
      %p52 = scmp.eq.s32.totalorder %s14, 1
      %p53 = por %p51, %p52
      %p54 = scmp.ne.s32.totalorder %s45, %s46
      %p55 = scmp.eq.s32.totalorder %s14, 0
      %p56 = por %p54, %p55
      %p57 = scmp.ne.s32.totalorder %s45, %s46
      %p58 = scmp.eq.s32.totalorder %s15, 1
      %p59 = por %p57, %p58
      %p61 = scmp.ne.s32.totalorder %s46, %s60
      %p62 = scmp.eq.s32.totalorder %s15, 0
      %p63 = por %p61, %p62
      %s65 = sadd.s32 %s64, 1
      %p68 = scmp.eq.s32.totalorder %s9, 1
      %p69 = scmp.ne.s32.totalorder %s64, %s66
      %p70 = scmp.eq.s32.totalorder %s9, 0
      %p71 = por %p69, %p70
      %p72 = scmp.ne.s32.totalorder %s64, %s66
      %p73 = scmp.eq.s32.totalorder %s14, 1
      %p74 = por %p72, %p73
      %p75 = scmp.ne.s32.totalorder %s66, %s67
      %p76 = scmp.eq.s32.totalorder %s14, 0
      %p77 = por %p75, %p76
      %p78 = scmp.ne.s32.totalorder %s66, %s67
      %p79 = scmp.eq.s32.totalorder %s15, 1
      %p80 = por %p78, %p79
      %p82 = scmp.ne.s32.totalorder %s67, %s81
      %p83 = scmp.eq.s32.totalorder %s15, 0
      %p84 = por %p82, %p83
      %s85 = ssub.s32 %s9, %s16
      %p86 = scmp.eq.s32.totalorder %s85, 0
      %s88 = sadd.s32 %s87, 1
      %s89 = scalar_select %p86, %s87, %s88
      %p92 = pneg %p86
      %p93 = scmp.eq.s32.totalorder %s9, 1
      %p94 = por %p92, %p93
      %p95 = scmp.ne.s32.totalorder %s87, %s90
      %p96 = scmp.eq.s32.totalorder %s9, 0
      %p97 = por %p95, %p96
      %p98 = scmp.ne.s32.totalorder %s87, %s90
      %p99 = scmp.eq.s32.totalorder %s14, 1
      %p100 = por %p98, %p99
      %p101 = scmp.ne.s32.totalorder %s90, %s91
      %p102 = scmp.eq.s32.totalorder %s14, 0
      %p103 = por %p101, %p102
      %p104 = scmp.ne.s32.totalorder %s90, %s91
      %p105 = scmp.eq.s32.totalorder %s15, 1
      %p106 = por %p104, %p105
      %p108 = scmp.ne.s32.totalorder %s91, %s107
      %p109 = scmp.eq.s32.totalorder %s15, 0
      %p110 = por %p108, %p109
      %p111 = scmp.le.s32.totalorder 1, %s9
      %p112 = scmp.lt.s32.totalorder %s9, 3
      %p113 = pnand %p111, %p112
      %p114 = pneg %p113
      // Predicated region
      $region9: #{generator_forward.33} parent=5 // pred_check
        _
      $region10: #{generator_forward.33} parent=5 // pred_check_branch
        %116 = sbr.rel (%p113) target = $region12
      $region11: #{generator_forward.33} parent=5 // pred_region
        %s117 = ssub.s32 %s9, 1
        // Predicated region
        $region13: #{generator_forward.33} parent=11 // pred_check
          %p118 = pneg %p56
        $region14: #{generator_forward.33} parent=11 // pred_check_branch
          %120 = sbr.rel (%p118) target = $region16
        $region15: #{generator_forward.33} parent=11 // pred_region
          _
        $region16: #{generator_forward.33} parent=11 // pred_fallthru
          _
        // Predicated region
        $region17: #{generator_forward.33} parent=11 // pred_check
          %p121 = pneg %p77
        $region18: #{generator_forward.33} parent=11 // pred_check_branch
          %123 = sbr.rel (%p121) target = $region20
        $region19: #{generator_forward.33} parent=11 // pred_region
          _
        $region20: #{generator_forward.33} parent=11 // pred_fallthru
          _
      $region12: #{generator_forward.33} parent=5 // pred_fallthru
        _
      %p124 = scmp.lt.s32.totalorder %s9, 2
      // Predicated region
      $region21: #{generator_forward.33} parent=5 // pred_check
        %p125 = pneg %p124
      $region22: #{generator_forward.33} parent=5 // pred_check_branch
        %127 = sbr.rel (%p125) target = $region24
      $region23: #{generator_forward.33} parent=5 // pred_region
        // Predicated region
        $region25: #{generator_forward.33} parent=23 // pred_check
          %p128 = pneg %p29
        $region26: #{generator_forward.33} parent=23 // pred_check_branch
          %130 = sbr.rel (%p128) target = $region28
        $region27: #{generator_forward.33} parent=23 // pred_region
          %s131 = sand.u32 %s19, 1
          %s132 = sand.u32 %s19, 1
          %s133 = smul.addr %s132, 800
          %s134 = scalar_lea.vmem [#allocation2], %s133
          %s135 = smul.u32 8, %s9
          %s136 = smul.addr %s135, 4
          %s137 = scalar_lea.vmem %s0, %s136
          // Predicated region
          $region29: #{generator_forward.33} parent=27 // pred_check
            _
          $region30: #{generator_forward.33} parent=27 // pred_check_branch
            %139 = sbr.rel (0) target = $region32
          $region31: #{generator_forward.33} parent=27 // pred_region
            // Predicated region
            $region33: #{generator_forward.33} parent=31 // pred_check
              _
            $region34: #{generator_forward.33} parent=31 // pred_check_branch
              %141 = sbr.rel (0) target = $region36
            $region35: #{generator_forward.33} parent=31 // pred_region
              loop: start=0, step=1, limit=1
              $region37: #{generator_forward.33} parent=35 // loop_pre_header
                _
              $region38: #{generator_forward.33} parent=35 // loop_header
                %s143 = sphi 0, %s147
                %p144 = scmp.ge.s32.totalorder %s143, 1
                %s148 = sphi %s137, %s137
                %s149 = sphi %s134, %s134
              $region39: #{generator_forward.33} parent=35 // loop_header_branch
                %146 = sbr.rel (%p144) target = $region43
              $region40: #{generator_forward.33} parent=35 // loop_body
                %v150 = vld [vmem:[%s148] sm:$0xff]
                %151 = vst [vmem:[%s149] sm:$0xff] %v150
                %v152 = vld [vmem:[%s148 + $0x8] sm:$0xff]
                %153 = vst [vmem:[%s149 + $0x8] sm:$0xff] %v152
                %v154 = vld [vmem:[%s148 + $0x10] sm:$0xff]
                %155 = vst [vmem:[%s149 + $0x10] sm:$0xff] %v154
                %v156 = vld [vmem:[%s148 + $0x18] sm:$0xff]
                %157 = vst [vmem:[%s149 + $0x18] sm:$0xff] %v156
                %v158 = vld [vmem:[%s148 + $0x40] sm:$0xff]
                %159 = vst [vmem:[%s149 + $0x20] sm:$0xff] %v158
                %v160 = vld [vmem:[%s148 + $0x48] sm:$0xff]
                %161 = vst [vmem:[%s149 + $0x28] sm:$0xff] %v160
                %v162 = vld [vmem:[%s148 + $0x50] sm:$0xff]
                %163 = vst [vmem:[%s149 + $0x30] sm:$0xff] %v162
                %v164 = vld [vmem:[%s148 + $0x58] sm:$0xff]
                %165 = vst [vmem:[%s149 + $0x38] sm:$0xff] %v164
                %v166 = vld [vmem:[%s148 + $0x80] sm:$0xff]
                %167 = vst [vmem:[%s149 + $0x40] sm:$0xff] %v166
                %v168 = vld [vmem:[%s148 + $0x88] sm:$0xff]
                %169 = vst [vmem:[%s149 + $0x48] sm:$0xff] %v168
                %v170 = vld [vmem:[%s148 + $0x90] sm:$0xff]
                %171 = vst [vmem:[%s149 + $0x50] sm:$0xff] %v170
                %v172 = vld [vmem:[%s148 + $0x98] sm:$0xff]
                %173 = vst [vmem:[%s149 + $0x58] sm:$0xff] %v172
                %v174 = vld [vmem:[%s148 + $0xc0] sm:$0xff]
                %175 = vst [vmem:[%s149 + $0x60] sm:$0xff] %v174
                %v176 = vld [vmem:[%s148 + $0xc8] sm:$0xff]
                %177 = vst [vmem:[%s149 + $0x68] sm:$0xff] %v176
                %v178 = vld [vmem:[%s148 + $0xd0] sm:$0xff]
                %179 = vst [vmem:[%s149 + $0x70] sm:$0xff] %v178
                %v180 = vld [vmem:[%s148 + $0xd8] sm:$0xff]
                %181 = vst [vmem:[%s149 + $0x78] sm:$0xff] %v180
                %v182 = vld [vmem:[%s148 + $0x100] sm:$0xff]
                %183 = vst [vmem:[%s149 + $0x80] sm:$0xff] %v182
                %v184 = vld [vmem:[%s148 + $0x108] sm:$0xff]
                %185 = vst [vmem:[%s149 + $0x88] sm:$0xff] %v184
                %v186 = vld [vmem:[%s148 + $0x110] sm:$0xff]
                %187 = vst [vmem:[%s149 + $0x90] sm:$0xff] %v186
                %v188 = vld [vmem:[%s148 + $0x118] sm:$0xff]
                %189 = vst [vmem:[%s149 + $0x98] sm:$0xff] %v188
                %v190 = vld [vmem:[%s148 + $0x140] sm:$0xff]
                %191 = vst [vmem:[%s149 + $0xa0] sm:$0xff] %v190
                %v192 = vld [vmem:[%s148 + $0x148] sm:$0xff]
                %193 = vst [vmem:[%s149 + $0xa8] sm:$0xff] %v192
                %v194 = vld [vmem:[%s148 + $0x150] sm:$0xff]
                %195 = vst [vmem:[%s149 + $0xb0] sm:$0xff] %v194
                %v196 = vld [vmem:[%s148 + $0x158] sm:$0xff]
                %197 = vst [vmem:[%s149 + $0xb8] sm:$0xff] %v196
                %v198 = vld [vmem:[%s148 + $0x180] sm:$0xff]
                %199 = vst [vmem:[%s149 + $0xc0] sm:$0xff] %v198
                %v200 = vld [vmem:[%s148 + $0x188] sm:$0xff]
                %201 = vst [vmem:[%s149 + $0xc8] sm:$0xff] %v200
                %v202 = vld [vmem:[%s148 + $0x190] sm:$0xff]
                %203 = vst [vmem:[%s149 + $0xd0] sm:$0xff] %v202
                %v204 = vld [vmem:[%s148 + $0x198] sm:$0xff]
                %205 = vst [vmem:[%s149 + $0xd8] sm:$0xff] %v204
                %v206 = vld [vmem:[%s148 + $0x1c0] sm:$0xff]
                %207 = vst [vmem:[%s149 + $0xe0] sm:$0xff] %v206
                %v208 = vld [vmem:[%s148 + $0x1c8] sm:$0xff]
                %209 = vst [vmem:[%s149 + $0xe8] sm:$0xff] %v208
                %v210 = vld [vmem:[%s148 + $0x1d0] sm:$0xff]
                %211 = vst [vmem:[%s149 + $0xf0] sm:$0xff] %v210
                %v212 = vld [vmem:[%s148 + $0x1d8] sm:$0xff]
                %213 = vst [vmem:[%s149 + $0xf8] sm:$0xff] %v212
                %v214 = vld [vmem:[%s148 + $0x200] sm:$0xff]
                %215 = vst [vmem:[%s149 + $0x100] sm:$0xff] %v214
                %v216 = vld [vmem:[%s148 + $0x208] sm:$0xff]
                %217 = vst [vmem:[%s149 + $0x108] sm:$0xff] %v216
                %v218 = vld [vmem:[%s148 + $0x210] sm:$0xff]
                %219 = vst [vmem:[%s149 + $0x110] sm:$0xff] %v218
                %v220 = vld [vmem:[%s148 + $0x218] sm:$0xff]
                %221 = vst [vmem:[%s149 + $0x118] sm:$0xff] %v220
                %v222 = vld [vmem:[%s148 + $0x240] sm:$0xff]
                %223 = vst [vmem:[%s149 + $0x120] sm:$0xff] %v222
                %v224 = vld [vmem:[%s148 + $0x248] sm:$0xff]
                %225 = vst [vmem:[%s149 + $0x128] sm:$0xff] %v224
                %v226 = vld [vmem:[%s148 + $0x250] sm:$0xff]
                %227 = vst [vmem:[%s149 + $0x130] sm:$0xff] %v226
                %v228 = vld [vmem:[%s148 + $0x258] sm:$0xff]
                %229 = vst [vmem:[%s149 + $0x138] sm:$0xff] %v228
                %v230 = vld [vmem:[%s148 + $0x280] sm:$0xff]
                %231 = vst [vmem:[%s149 + $0x140] sm:$0xff] %v230
                %v232 = vld [vmem:[%s148 + $0x288] sm:$0xff]
                %233 = vst [vmem:[%s149 + $0x148] sm:$0xff] %v232
                %v234 = vld [vmem:[%s148 + $0x290] sm:$0xff]
                %235 = vst [vmem:[%s149 + $0x150] sm:$0xff] %v234
                %v236 = vld [vmem:[%s148 + $0x298] sm:$0xff]
                %237 = vst [vmem:[%s149 + $0x158] sm:$0xff] %v236
                %v238 = vld [vmem:[%s148 + $0x2c0] sm:$0xff]
                %239 = vst [vmem:[%s149 + $0x160] sm:$0xff] %v238
                %v240 = vld [vmem:[%s148 + $0x2c8] sm:$0xff]
                %241 = vst [vmem:[%s149 + $0x168] sm:$0xff] %v240
                %v242 = vld [vmem:[%s148 + $0x2d0] sm:$0xff]
                %243 = vst [vmem:[%s149 + $0x170] sm:$0xff] %v242
                %v244 = vld [vmem:[%s148 + $0x2d8] sm:$0xff]
                %245 = vst [vmem:[%s149 + $0x178] sm:$0xff] %v244
                %v246 = vld [vmem:[%s148 + $0x300] sm:$0xff]
                %247 = vst [vmem:[%s149 + $0x180] sm:$0xff] %v246
                %v248 = vld [vmem:[%s148 + $0x308] sm:$0xff]
                %249 = vst [vmem:[%s149 + $0x188] sm:$0xff] %v248
                %v250 = vld [vmem:[%s148 + $0x310] sm:$0xff]
                %251 = vst [vmem:[%s149 + $0x190] sm:$0xff] %v250
                %v252 = vld [vmem:[%s148 + $0x318] sm:$0xff]
                %253 = vst [vmem:[%s149 + $0x198] sm:$0xff] %v252
                %v254 = vld [vmem:[%s148 + $0x340] sm:$0xff]
                %255 = vst [vmem:[%s149 + $0x1a0] sm:$0xff] %v254
                %v256 = vld [vmem:[%s148 + $0x348] sm:$0xff]
                %257 = vst [vmem:[%s149 + $0x1a8] sm:$0xff] %v256
                %v258 = vld [vmem:[%s148 + $0x350] sm:$0xff]
                %259 = vst [vmem:[%s149 + $0x1b0] sm:$0xff] %v258
                %v260 = vld [vmem:[%s148 + $0x358] sm:$0xff]
                %261 = vst [vmem:[%s149 + $0x1b8] sm:$0xff] %v260
                %v262 = vld [vmem:[%s148 + $0x380] sm:$0xff]
                %263 = vst [vmem:[%s149 + $0x1c0] sm:$0xff] %v262
                %v264 = vld [vmem:[%s148 + $0x388] sm:$0xff]
                %265 = vst [vmem:[%s149 + $0x1c8] sm:$0xff] %v264
                %v266 = vld [vmem:[%s148 + $0x390] sm:$0xff]
                %267 = vst [vmem:[%s149 + $0x1d0] sm:$0xff] %v266
                %v268 = vld [vmem:[%s148 + $0x398] sm:$0xff]
                %269 = vst [vmem:[%s149 + $0x1d8] sm:$0xff] %v268
                %v270 = vld [vmem:[%s148 + $0x3c0] sm:$0xff]
                %271 = vst [vmem:[%s149 + $0x1e0] sm:$0xff] %v270
                %v272 = vld [vmem:[%s148 + $0x3c8] sm:$0xff]
                %273 = vst [vmem:[%s149 + $0x1e8] sm:$0xff] %v272
                %v274 = vld [vmem:[%s148 + $0x3d0] sm:$0xff]
                %275 = vst [vmem:[%s149 + $0x1f0] sm:$0xff] %v274
                %v276 = vld [vmem:[%s148 + $0x3d8] sm:$0xff]
                %277 = vst [vmem:[%s149 + $0x1f8] sm:$0xff] %v276
                %v278 = vld [vmem:[%s148 + $0x400] sm:$0xff]
                %279 = vst [vmem:[%s149 + $0x200] sm:$0xff] %v278
                %v280 = vld [vmem:[%s148 + $0x408] sm:$0xff]
                %281 = vst [vmem:[%s149 + $0x208] sm:$0xff] %v280
                %v282 = vld [vmem:[%s148 + $0x410] sm:$0xff]
                %283 = vst [vmem:[%s149 + $0x210] sm:$0xff] %v282
                %v284 = vld [vmem:[%s148 + $0x418] sm:$0xff]
                %285 = vst [vmem:[%s149 + $0x218] sm:$0xff] %v284
                %v286 = vld [vmem:[%s148 + $0x440] sm:$0xff]
                %287 = vst [vmem:[%s149 + $0x220] sm:$0xff] %v286
                %v288 = vld [vmem:[%s148 + $0x448] sm:$0xff]
                %289 = vst [vmem:[%s149 + $0x228] sm:$0xff] %v288
                %v290 = vld [vmem:[%s148 + $0x450] sm:$0xff]
                %291 = vst [vmem:[%s149 + $0x230] sm:$0xff] %v290
                %v292 = vld [vmem:[%s148 + $0x458] sm:$0xff]
                %293 = vst [vmem:[%s149 + $0x238] sm:$0xff] %v292
                %v294 = vld [vmem:[%s148 + $0x480] sm:$0xff]
                %295 = vst [vmem:[%s149 + $0x240] sm:$0xff] %v294
                %v296 = vld [vmem:[%s148 + $0x488] sm:$0xff]
                %297 = vst [vmem:[%s149 + $0x248] sm:$0xff] %v296
                %v298 = vld [vmem:[%s148 + $0x490] sm:$0xff]
                %299 = vst [vmem:[%s149 + $0x250] sm:$0xff] %v298
                %v300 = vld [vmem:[%s148 + $0x498] sm:$0xff]
                %301 = vst [vmem:[%s149 + $0x258] sm:$0xff] %v300
                %v302 = vld [vmem:[%s148 + $0x4c0] sm:$0xff]
                %303 = vst [vmem:[%s149 + $0x260] sm:$0xff] %v302
                %v304 = vld [vmem:[%s148 + $0x4c8] sm:$0xff]
                %305 = vst [vmem:[%s149 + $0x268] sm:$0xff] %v304
                %v306 = vld [vmem:[%s148 + $0x4d0] sm:$0xff]
                %307 = vst [vmem:[%s149 + $0x270] sm:$0xff] %v306
                %v308 = vld [vmem:[%s148 + $0x4d8] sm:$0xff]
                %309 = vst [vmem:[%s149 + $0x278] sm:$0xff] %v308
                %v310 = vld [vmem:[%s148 + $0x500] sm:$0xff]
                %311 = vst [vmem:[%s149 + $0x280] sm:$0xff] %v310
                %v312 = vld [vmem:[%s148 + $0x508] sm:$0xff]
                %313 = vst [vmem:[%s149 + $0x288] sm:$0xff] %v312
                %v314 = vld [vmem:[%s148 + $0x510] sm:$0xff]
                %315 = vst [vmem:[%s149 + $0x290] sm:$0xff] %v314
                %v316 = vld [vmem:[%s148 + $0x518] sm:$0xff]
                %317 = vst [vmem:[%s149 + $0x298] sm:$0xff] %v316
                %v318 = vld [vmem:[%s148 + $0x540] sm:$0xff]
                %319 = vst [vmem:[%s149 + $0x2a0] sm:$0xff] %v318
                %v320 = vld [vmem:[%s148 + $0x548] sm:$0xff]
                %321 = vst [vmem:[%s149 + $0x2a8] sm:$0xff] %v320
                %v322 = vld [vmem:[%s148 + $0x550] sm:$0xff]
                %323 = vst [vmem:[%s149 + $0x2b0] sm:$0xff] %v322
                %v324 = vld [vmem:[%s148 + $0x558] sm:$0xff]
                %325 = vst [vmem:[%s149 + $0x2b8] sm:$0xff] %v324
                %v326 = vld [vmem:[%s148 + $0x580] sm:$0xff]
                %327 = vst [vmem:[%s149 + $0x2c0] sm:$0xff] %v326
                %v328 = vld [vmem:[%s148 + $0x588] sm:$0xff]
                %329 = vst [vmem:[%s149 + $0x2c8] sm:$0xff] %v328
                %v330 = vld [vmem:[%s148 + $0x590] sm:$0xff]
                %331 = vst [vmem:[%s149 + $0x2d0] sm:$0xff] %v330
                %v332 = vld [vmem:[%s148 + $0x598] sm:$0xff]
                %333 = vst [vmem:[%s149 + $0x2d8] sm:$0xff] %v332
                %v334 = vld [vmem:[%s148 + $0x5c0] sm:$0xff]
                %335 = vst [vmem:[%s149 + $0x2e0] sm:$0xff] %v334
                %v336 = vld [vmem:[%s148 + $0x5c8] sm:$0xff]
                %337 = vst [vmem:[%s149 + $0x2e8] sm:$0xff] %v336
                %v338 = vld [vmem:[%s148 + $0x5d0] sm:$0xff]
                %339 = vst [vmem:[%s149 + $0x2f0] sm:$0xff] %v338
                %v340 = vld [vmem:[%s148 + $0x5d8] sm:$0xff]
                %341 = vst [vmem:[%s149 + $0x2f8] sm:$0xff] %v340
                %v342 = vld [vmem:[%s148 + $0x600] sm:$0xff]
                %343 = vst [vmem:[%s149 + $0x300] sm:$0xff] %v342
                %v344 = vld [vmem:[%s148 + $0x608] sm:$0xff]
                %345 = vst [vmem:[%s149 + $0x308] sm:$0xff] %v344
                %v346 = vld [vmem:[%s148 + $0x610] sm:$0xff]
                %347 = vst [vmem:[%s149 + $0x310] sm:$0xff] %v346
                %v348 = vld [vmem:[%s148 + $0x618] sm:$0xff]
                %349 = vst [vmem:[%s149 + $0x318] sm:$0xff] %v348
              $region41: #{generator_forward.33} parent=35 // loop_footer
                %s147 = sadd.s32 1, %s143
              $region42: #{generator_forward.33} parent=35 // loop_footer_branch
                %142 = sbr.rel target = $region38
              $region43: #{generator_forward.33} parent=35 // loop_exit
                _
            $region36: #{generator_forward.33} parent=31 // pred_fallthru
              _
            // Predicated region
            $region44: #{generator_forward.33} parent=31 // pred_check
              _
            $region45: #{generator_forward.33} parent=31 // pred_check_branch
              %351 = sbr.rel target = $region47
            $region46: #{generator_forward.33} parent=31 // pred_region
              _
            $region47: #{generator_forward.33} parent=31 // pred_fallthru
              _
          $region32: #{generator_forward.33} parent=27 // pred_fallthru
            _
          %352 = vnop
        $region28: #{generator_forward.33} parent=23 // pred_fallthru
          _
      $region24: #{generator_forward.33} parent=5 // pred_fallthru
        _
      %p353 = scmp.le.s32.totalorder 1, %s9
      %p354 = scmp.lt.s32.totalorder %s9, 3
      %p355 = pnand %p353, %p354
      %p356 = pneg %p355
      // Predicated region
      $region48: #{generator_forward.33} parent=5 // pred_check
        _
      $region49: #{generator_forward.33} parent=5 // pred_check_branch
        %358 = sbr.rel (%p355) target = $region51
      $region50: #{generator_forward.33} parent=5 // pred_region
        %s359 = ssub.s32 %s9, 1
        %s360 = sand.u32 %s22, 1
        %s361 = sand.u32 %s22, 1
        %s362 = smul.addr %s361, 800
        %s363 = scalar_lea.vmem [#allocation2], %s362
        // Predicated region
        $region52: #{generator_forward.33} parent=50 // pred_check
          %p364 = pneg %p35
        $region53: #{generator_forward.33} parent=50 // pred_check_branch
          %366 = sbr.rel (%p364) target = $region55
        $region54: #{generator_forward.33} parent=50 // pred_region
          _
        $region55: #{generator_forward.33} parent=50 // pred_fallthru
          _
        %s367 = sand.u32 %s22, 1
        %s368 = sand.u32 %s22, 1
        %s369 = smul.addr %s368, 800
        %s370 = scalar_lea.vmem [#allocation2], %s369
        %p371 = pneg %p35
        %p372 = pneg %p32
        %p373 = pneg %p56
        %p374 = pneg %p53
        %p375 = pneg %p77
        %p376 = pneg %p74
        %p377 = pneg %p103
        %p378 = pneg %p100
        %s379 = smul.u32 8, %s14
        %p380 = scmp.lt.s32.totalorder %s379, 15
        %s381 = scalar_select %p380, %s379, 15
        %s382 = smul.addr %s381, 8
        %s383 = scalar_lea.vmem %s3, %s382
        %s384 = smul.u32 8, %s14
        %s385 = smul.u32 8, %s14
        %p386 = scmp.lt.s32.totalorder %s385, 15
        %s387 = scalar_select %p386, %s385, 15
        %s388 = smul.addr %s387, 8
        %s389 = scalar_lea.vmem %s3, %s388
        %s390 = smul.u32 8, %s14
        %v392 = vld [vmem:[%s1] sm:$0xff]
        %v393 = vld [vmem:[%s363] sm:$0xff]
        %v394 = vld [vmem:[%s363 + $0x8] sm:$0xff]
        %v395 = vld [vmem:[%s363 + $0x10] sm:$0xff]
        %v396 = vld [vmem:[%s363 + $0x18] sm:$0xff]
        %v397 = vld [vmem:[%s363 + $0x20] sm:$0xff]
        %v398 = vld [vmem:[%s363 + $0x28] sm:$0xff]
        %v399 = vld [vmem:[%s363 + $0x30] sm:$0xff]
        %v400 = vld [vmem:[%s363 + $0x38] sm:$0xff]
        %v401 = vld [vmem:[%s363 + $0x40] sm:$0xff]
        %v402 = vld [vmem:[%s363 + $0x48] sm:$0xff]
        %v403 = vld [vmem:[%s363 + $0x50] sm:$0xff]
        %v404 = vld [vmem:[%s363 + $0x58] sm:$0xff]
        %v405 = vld [vmem:[%s363 + $0x60] sm:$0xff]
        %v406 = vld [vmem:[%s363 + $0x68] sm:$0xff]
        %v407 = vld [vmem:[%s363 + $0x70] sm:$0xff]
        %v408 = vld [vmem:[%s363 + $0x78] sm:$0xff]
        %v409 = vld [vmem:[%s363 + $0x80] sm:$0xff]
        %v410 = vld [vmem:[%s363 + $0x88] sm:$0xff]
        %v411 = vld [vmem:[%s363 + $0x90] sm:$0xff]
        %v412 = vld [vmem:[%s363 + $0x98] sm:$0xff]
        %v413 = vld [vmem:[%s363 + $0xa0] sm:$0xff]
        %v414 = vld [vmem:[%s363 + $0xa8] sm:$0xff]
        %v415 = vld [vmem:[%s363 + $0xb0] sm:$0xff]
        %v416 = vld [vmem:[%s363 + $0xb8] sm:$0xff]
        %v417 = vld [vmem:[%s363 + $0xc0] sm:$0xff]
        %v418 = vld [vmem:[%s363 + $0xc8] sm:$0xff]
        %v419 = vld [vmem:[%s363 + $0xd0] sm:$0xff]
        %v420 = vld [vmem:[%s363 + $0xd8] sm:$0xff]
        %v421 = vld [vmem:[%s363 + $0xe0] sm:$0xff]
        %v422 = vld [vmem:[%s363 + $0xe8] sm:$0xff]
        %v423 = vld [vmem:[%s363 + $0xf0] sm:$0xff]
        %v424 = vld [vmem:[%s363 + $0xf8] sm:$0xff]
        %v425 = vld [vmem:[%s363 + $0x100] sm:$0xff]
        %v426 = vld [vmem:[%s363 + $0x108] sm:$0xff]
        %v427 = vld [vmem:[%s363 + $0x110] sm:$0xff]
        %v428 = vld [vmem:[%s363 + $0x118] sm:$0xff]
        %v429 = vld [vmem:[%s363 + $0x120] sm:$0xff]
        %v430 = vld [vmem:[%s363 + $0x128] sm:$0xff]
        %v431 = vld [vmem:[%s363 + $0x130] sm:$0xff]
        %v432 = vld [vmem:[%s363 + $0x138] sm:$0xff]
        %v433 = vld [vmem:[%s363 + $0x140] sm:$0xff]
        %v434 = vld [vmem:[%s363 + $0x148] sm:$0xff]
        %v435 = vld [vmem:[%s363 + $0x150] sm:$0xff]
        %v436 = vld [vmem:[%s363 + $0x158] sm:$0xff]
        %v437 = vld [vmem:[%s363 + $0x160] sm:$0xff]
        %v438 = vld [vmem:[%s363 + $0x168] sm:$0xff]
        %v439 = vld [vmem:[%s363 + $0x170] sm:$0xff]
        %v440 = vld [vmem:[%s363 + $0x178] sm:$0xff]
        %v441 = vld [vmem:[%s363 + $0x180] sm:$0xff]
        %v442 = vld [vmem:[%s363 + $0x188] sm:$0xff]
        %v443 = vld [vmem:[%s363 + $0x190] sm:$0xff]
        %v444 = vld [vmem:[%s363 + $0x198] sm:$0xff]
        %v445 = vld [vmem:[%s363 + $0x1a0] sm:$0xff]
        %v446 = vld [vmem:[%s363 + $0x1a8] sm:$0xff]
        %v447 = vld [vmem:[%s363 + $0x1b0] sm:$0xff]
        %v448 = vld [vmem:[%s363 + $0x1b8] sm:$0xff]
        %v449 = vld [vmem:[%s363 + $0x1c0] sm:$0xff]
        %v450 = vld [vmem:[%s363 + $0x1c8] sm:$0xff]
        %v451 = vld [vmem:[%s363 + $0x1d0] sm:$0xff]
        %v452 = vld [vmem:[%s363 + $0x1d8] sm:$0xff]
        %v453 = vld [vmem:[%s363 + $0x1e0] sm:$0xff]
        %v454 = vld [vmem:[%s363 + $0x1e8] sm:$0xff]
        %v455 = vld [vmem:[%s363 + $0x1f0] sm:$0xff]
        %v456 = vld [vmem:[%s363 + $0x1f8] sm:$0xff]
        %v457 = vld [vmem:[%s363 + $0x200] sm:$0xff]
        %v458 = vld [vmem:[%s363 + $0x208] sm:$0xff]
        %v459 = vld [vmem:[%s363 + $0x210] sm:$0xff]
        %v460 = vld [vmem:[%s363 + $0x218] sm:$0xff]
        %v461 = vld [vmem:[%s363 + $0x220] sm:$0xff]
        %v462 = vld [vmem:[%s363 + $0x228] sm:$0xff]
        %v463 = vld [vmem:[%s363 + $0x230] sm:$0xff]
        %v464 = vld [vmem:[%s363 + $0x238] sm:$0xff]
        %v465 = vld [vmem:[%s363 + $0x240] sm:$0xff]
        %v466 = vld [vmem:[%s363 + $0x248] sm:$0xff]
        %v467 = vld [vmem:[%s363 + $0x250] sm:$0xff]
        %v468 = vld [vmem:[%s363 + $0x258] sm:$0xff]
        %v469 = vld [vmem:[%s363 + $0x260] sm:$0xff]
        %v470 = vld [vmem:[%s363 + $0x268] sm:$0xff]
        %v471 = vld [vmem:[%s363 + $0x270] sm:$0xff]
        %v472 = vld [vmem:[%s363 + $0x278] sm:$0xff]
        %v473 = vld [vmem:[%s363 + $0x280] sm:$0xff]
        %v474 = vld [vmem:[%s363 + $0x288] sm:$0xff]
        %v475 = vld [vmem:[%s363 + $0x290] sm:$0xff]
        %v476 = vld [vmem:[%s363 + $0x298] sm:$0xff]
        %v477 = vld [vmem:[%s363 + $0x2a0] sm:$0xff]
        %v478 = vld [vmem:[%s363 + $0x2a8] sm:$0xff]
        %v479 = vld [vmem:[%s363 + $0x2b0] sm:$0xff]
        %v480 = vld [vmem:[%s363 + $0x2b8] sm:$0xff]
        %v481 = vld [vmem:[%s363 + $0x2c0] sm:$0xff]
        %v482 = vld [vmem:[%s363 + $0x2c8] sm:$0xff]
        %v483 = vld [vmem:[%s363 + $0x2d0] sm:$0xff]
        %v484 = vld [vmem:[%s363 + $0x2d8] sm:$0xff]
        %v485 = vld [vmem:[%s363 + $0x2e0] sm:$0xff]
        %v486 = vld [vmem:[%s363 + $0x2e8] sm:$0xff]
        %v487 = vld [vmem:[%s363 + $0x2f0] sm:$0xff]
        %v488 = vld [vmem:[%s363 + $0x2f8] sm:$0xff]
        %v489 = vld [vmem:[%s363 + $0x300] sm:$0x33]
        %v490 = vld [vmem:[%s363 + $0x308] sm:$0x33]
        %v491 = vld [vmem:[%s363 + $0x310] sm:$0x33]
        %v492 = vld [vmem:[%s363 + $0x318] sm:$0x33]
        %v493 = vld [vmem:[%s2] sm:$0xff]
        %495 = vset.pattern.permute.xlu0 0
        %496 = vperm.xlu0 %495, %v493
        %v497 = vpop.permute.xlu0 %496
        %v500 = vunpack.c.l.b16 %v392
        %v501 = vunpack.c.h.b16 %v392
        %v502 = vpack.c.b16 %v500, %v500
        %v503 = vpack.c.b16 %v501, %v501
        %v605 = vunpack.c.l.b16 %v393
        %v606 = vunpack.c.h.b16 %v393
        %v607 = vunpack.c.l.b16 %v394
        %v608 = vunpack.c.h.b16 %v394
        %v609 = vunpack.c.l.b16 %v395
        %v610 = vunpack.c.h.b16 %v395
        %v611 = vunpack.c.l.b16 %v396
        %v612 = vunpack.c.h.b16 %v396
        %v613 = vunpack.c.l.b16 %v397
        %v614 = vunpack.c.h.b16 %v397
        %v615 = vunpack.c.l.b16 %v398
        %v616 = vunpack.c.h.b16 %v398
        %v617 = vunpack.c.l.b16 %v399
        %v618 = vunpack.c.h.b16 %v399
        %v619 = vunpack.c.l.b16 %v400
        %v620 = vunpack.c.h.b16 %v400
        %v621 = vunpack.c.l.b16 %v401
        %v622 = vunpack.c.h.b16 %v401
        %v623 = vunpack.c.l.b16 %v402
        %v624 = vunpack.c.h.b16 %v402
        %v625 = vunpack.c.l.b16 %v403
        %v626 = vunpack.c.h.b16 %v403
        %v627 = vunpack.c.l.b16 %v404
        %v628 = vunpack.c.h.b16 %v404
        %v629 = vunpack.c.l.b16 %v405
        %v630 = vunpack.c.h.b16 %v405
        %v631 = vunpack.c.l.b16 %v406
        %v632 = vunpack.c.h.b16 %v406
        %v633 = vunpack.c.l.b16 %v407
        %v634 = vunpack.c.h.b16 %v407
        %v635 = vunpack.c.l.b16 %v408
        %v636 = vunpack.c.h.b16 %v408
        %v637 = vunpack.c.l.b16 %v409
        %v638 = vunpack.c.h.b16 %v409
        %v639 = vunpack.c.l.b16 %v410
        %v640 = vunpack.c.h.b16 %v410
        %v641 = vunpack.c.l.b16 %v411
        %v642 = vunpack.c.h.b16 %v411
        %v643 = vunpack.c.l.b16 %v412
        %v644 = vunpack.c.h.b16 %v412
        %v645 = vunpack.c.l.b16 %v413
        %v646 = vunpack.c.h.b16 %v413
        %v647 = vunpack.c.l.b16 %v414
        %v648 = vunpack.c.h.b16 %v414
        %v649 = vunpack.c.l.b16 %v415
        %v650 = vunpack.c.h.b16 %v415
        %v651 = vunpack.c.l.b16 %v416
        %v652 = vunpack.c.h.b16 %v416
        %v653 = vunpack.c.l.b16 %v417
        %v654 = vunpack.c.h.b16 %v417
        %v655 = vunpack.c.l.b16 %v418
        %v656 = vunpack.c.h.b16 %v418
        %v657 = vunpack.c.l.b16 %v419
        %v658 = vunpack.c.h.b16 %v419
        %v659 = vunpack.c.l.b16 %v420
        %v660 = vunpack.c.h.b16 %v420
        %v661 = vunpack.c.l.b16 %v421
        %v662 = vunpack.c.h.b16 %v421
        %v663 = vunpack.c.l.b16 %v422
        %v664 = vunpack.c.h.b16 %v422
        %v665 = vunpack.c.l.b16 %v423
        %v666 = vunpack.c.h.b16 %v423
        %v667 = vunpack.c.l.b16 %v424
        %v668 = vunpack.c.h.b16 %v424
        %v669 = vunpack.c.l.b16 %v425
        %v670 = vunpack.c.h.b16 %v425
        %v671 = vunpack.c.l.b16 %v426
        %v672 = vunpack.c.h.b16 %v426
        %v673 = vunpack.c.l.b16 %v427
        %v674 = vunpack.c.h.b16 %v427
        %v675 = vunpack.c.l.b16 %v428
        %v676 = vunpack.c.h.b16 %v428
        %v677 = vunpack.c.l.b16 %v429
        %v678 = vunpack.c.h.b16 %v429
        %v679 = vunpack.c.l.b16 %v430
        %v680 = vunpack.c.h.b16 %v430
        %v681 = vunpack.c.l.b16 %v431
        %v682 = vunpack.c.h.b16 %v431
        %v683 = vunpack.c.l.b16 %v432
        %v684 = vunpack.c.h.b16 %v432
        %v685 = vunpack.c.l.b16 %v433
        %v686 = vunpack.c.h.b16 %v433
        %v687 = vunpack.c.l.b16 %v434
        %v688 = vunpack.c.h.b16 %v434
        %v689 = vunpack.c.l.b16 %v435
        %v690 = vunpack.c.h.b16 %v435
        %v691 = vunpack.c.l.b16 %v436
        %v692 = vunpack.c.h.b16 %v436
        %v693 = vunpack.c.l.b16 %v437
        %v694 = vunpack.c.h.b16 %v437
        %v695 = vunpack.c.l.b16 %v438
        %v696 = vunpack.c.h.b16 %v438
        %v697 = vunpack.c.l.b16 %v439
        %v698 = vunpack.c.h.b16 %v439
        %v699 = vunpack.c.l.b16 %v440
        %v700 = vunpack.c.h.b16 %v440
        %v701 = vunpack.c.l.b16 %v441
        %v702 = vunpack.c.h.b16 %v441
        %v703 = vunpack.c.l.b16 %v442
        %v704 = vunpack.c.h.b16 %v442
        %v705 = vunpack.c.l.b16 %v443
        %v706 = vunpack.c.h.b16 %v443
        %v707 = vunpack.c.l.b16 %v444
        %v708 = vunpack.c.h.b16 %v444
        %v709 = vunpack.c.l.b16 %v445
        %v710 = vunpack.c.h.b16 %v445
        %v711 = vunpack.c.l.b16 %v446
        %v712 = vunpack.c.h.b16 %v446
        %v713 = vunpack.c.l.b16 %v447
        %v714 = vunpack.c.h.b16 %v447
        %v715 = vunpack.c.l.b16 %v448
        %v716 = vunpack.c.h.b16 %v448
        %v717 = vunpack.c.l.b16 %v449
        %v718 = vunpack.c.h.b16 %v449
        %v719 = vunpack.c.l.b16 %v450
        %v720 = vunpack.c.h.b16 %v450
        %v721 = vunpack.c.l.b16 %v451
        %v722 = vunpack.c.h.b16 %v451
        %v723 = vunpack.c.l.b16 %v452
        %v724 = vunpack.c.h.b16 %v452
        %v725 = vunpack.c.l.b16 %v453
        %v726 = vunpack.c.h.b16 %v453
        %v727 = vunpack.c.l.b16 %v454
        %v728 = vunpack.c.h.b16 %v454
        %v729 = vunpack.c.l.b16 %v455
        %v730 = vunpack.c.h.b16 %v455
        %v731 = vunpack.c.l.b16 %v456
        %v732 = vunpack.c.h.b16 %v456
        %v733 = vunpack.c.l.b16 %v457
        %v734 = vunpack.c.h.b16 %v457
        %v735 = vunpack.c.l.b16 %v458
        %v736 = vunpack.c.h.b16 %v458
        %v737 = vunpack.c.l.b16 %v459
        %v738 = vunpack.c.h.b16 %v459
        %v739 = vunpack.c.l.b16 %v460
        %v740 = vunpack.c.h.b16 %v460
        %v741 = vunpack.c.l.b16 %v461
        %v742 = vunpack.c.h.b16 %v461
        %v743 = vunpack.c.l.b16 %v462
        %v744 = vunpack.c.h.b16 %v462
        %v745 = vunpack.c.l.b16 %v463
        %v746 = vunpack.c.h.b16 %v463
        %v747 = vunpack.c.l.b16 %v464
        %v748 = vunpack.c.h.b16 %v464
        %v749 = vunpack.c.l.b16 %v465
        %v750 = vunpack.c.h.b16 %v465
        %v751 = vunpack.c.l.b16 %v466
        %v752 = vunpack.c.h.b16 %v466
        %v753 = vunpack.c.l.b16 %v467
        %v754 = vunpack.c.h.b16 %v467
        %v755 = vunpack.c.l.b16 %v468
        %v756 = vunpack.c.h.b16 %v468
        %v757 = vunpack.c.l.b16 %v469
        %v758 = vunpack.c.h.b16 %v469
        %v759 = vunpack.c.l.b16 %v470
        %v760 = vunpack.c.h.b16 %v470
        %v761 = vunpack.c.l.b16 %v471
        %v762 = vunpack.c.h.b16 %v471
        %v763 = vunpack.c.l.b16 %v472
        %v764 = vunpack.c.h.b16 %v472
        %v765 = vunpack.c.l.b16 %v473
        %v766 = vunpack.c.h.b16 %v473
        %v767 = vunpack.c.l.b16 %v474
        %v768 = vunpack.c.h.b16 %v474
        %v769 = vunpack.c.l.b16 %v475
        %v770 = vunpack.c.h.b16 %v475
        %v771 = vunpack.c.l.b16 %v476
        %v772 = vunpack.c.h.b16 %v476
        %v773 = vunpack.c.l.b16 %v477
        %v774 = vunpack.c.h.b16 %v477
        %v775 = vunpack.c.l.b16 %v478
        %v776 = vunpack.c.h.b16 %v478
        %v777 = vunpack.c.l.b16 %v479
        %v778 = vunpack.c.h.b16 %v479
        %v779 = vunpack.c.l.b16 %v480
        %v780 = vunpack.c.h.b16 %v480
        %v781 = vunpack.c.l.b16 %v481
        %v782 = vunpack.c.h.b16 %v481
        %v783 = vunpack.c.l.b16 %v482
        %v784 = vunpack.c.h.b16 %v482
        %v785 = vunpack.c.l.b16 %v483
        %v786 = vunpack.c.h.b16 %v483
        %v787 = vunpack.c.l.b16 %v484
        %v788 = vunpack.c.h.b16 %v484
        %v789 = vunpack.c.l.b16 %v485
        %v790 = vunpack.c.h.b16 %v485
        %v791 = vunpack.c.l.b16 %v486
        %v792 = vunpack.c.h.b16 %v486
        %v793 = vunpack.c.l.b16 %v487
        %v794 = vunpack.c.h.b16 %v487
        %v795 = vunpack.c.l.b16 %v488
        %v796 = vunpack.c.h.b16 %v488
        %v797 = vunpack.c.l.b16 %v489
        %v798 = vunpack.c.h.b16 %v489
        %v799 = vunpack.c.l.b16 %v490
        %v800 = vunpack.c.h.b16 %v490
        %v801 = vunpack.c.l.b16 %v491
        %v802 = vunpack.c.h.b16 %v491
        %v803 = vunpack.c.l.b16 %v492
        %v804 = vunpack.c.h.b16 %v492
        %v805 = vpack.c.b16 %v613, %v605
        %v806 = vpack.c.b16 %v614, %v606
        %v807 = vpack.c.b16 %v615, %v607
        %v808 = vpack.c.b16 %v616, %v608
        %v809 = vpack.c.b16 %v617, %v609
        %v810 = vpack.c.b16 %v618, %v610
        %v811 = vpack.c.b16 %v619, %v611
        %v812 = vpack.c.b16 %v620, %v612
        %v813 = vpack.c.b16 %v629, %v621
        %v814 = vpack.c.b16 %v630, %v622
        %v815 = vpack.c.b16 %v631, %v623
        %v816 = vpack.c.b16 %v632, %v624
        %v817 = vpack.c.b16 %v633, %v625
        %v818 = vpack.c.b16 %v634, %v626
        %v819 = vpack.c.b16 %v635, %v627
        %v820 = vpack.c.b16 %v636, %v628
        %v821 = vpack.c.b16 %v645, %v637
        %v822 = vpack.c.b16 %v646, %v638
        %v823 = vpack.c.b16 %v647, %v639
        %v824 = vpack.c.b16 %v648, %v640
        %v825 = vpack.c.b16 %v649, %v641
        %v826 = vpack.c.b16 %v650, %v642
        %v827 = vpack.c.b16 %v651, %v643
        %v828 = vpack.c.b16 %v652, %v644
        %v829 = vpack.c.b16 %v661, %v653
        %v830 = vpack.c.b16 %v662, %v654
        %v831 = vpack.c.b16 %v663, %v655
        %v832 = vpack.c.b16 %v664, %v656
        %v833 = vpack.c.b16 %v665, %v657
        %v834 = vpack.c.b16 %v666, %v658
        %v835 = vpack.c.b16 %v667, %v659
        %v836 = vpack.c.b16 %v668, %v660
        %v837 = vpack.c.b16 %v677, %v669
        %v838 = vpack.c.b16 %v678, %v670
        %v839 = vpack.c.b16 %v679, %v671
        %v840 = vpack.c.b16 %v680, %v672
        %v841 = vpack.c.b16 %v681, %v673
        %v842 = vpack.c.b16 %v682, %v674
        %v843 = vpack.c.b16 %v683, %v675
        %v844 = vpack.c.b16 %v684, %v676
        %v845 = vpack.c.b16 %v693, %v685
        %v846 = vpack.c.b16 %v694, %v686
        %v847 = vpack.c.b16 %v695, %v687
        %v848 = vpack.c.b16 %v696, %v688
        %v849 = vpack.c.b16 %v697, %v689
        %v850 = vpack.c.b16 %v698, %v690
        %v851 = vpack.c.b16 %v699, %v691
        %v852 = vpack.c.b16 %v700, %v692
        %v853 = vpack.c.b16 %v709, %v701
        %v854 = vpack.c.b16 %v710, %v702
        %v855 = vpack.c.b16 %v711, %v703
        %v856 = vpack.c.b16 %v712, %v704
        %v857 = vpack.c.b16 %v713, %v705
        %v858 = vpack.c.b16 %v714, %v706
        %v859 = vpack.c.b16 %v715, %v707
        %v860 = vpack.c.b16 %v716, %v708
        %v861 = vpack.c.b16 %v725, %v717
        %v862 = vpack.c.b16 %v726, %v718
        %v863 = vpack.c.b16 %v727, %v719
        %v864 = vpack.c.b16 %v728, %v720
        %v865 = vpack.c.b16 %v729, %v721
        %v866 = vpack.c.b16 %v730, %v722
        %v867 = vpack.c.b16 %v731, %v723
        %v868 = vpack.c.b16 %v732, %v724
        %v869 = vpack.c.b16 %v741, %v733
        %v870 = vpack.c.b16 %v742, %v734
        %v871 = vpack.c.b16 %v743, %v735
        %v872 = vpack.c.b16 %v744, %v736
        %v873 = vpack.c.b16 %v745, %v737
        %v874 = vpack.c.b16 %v746, %v738
        %v875 = vpack.c.b16 %v747, %v739
        %v876 = vpack.c.b16 %v748, %v740
        %v877 = vpack.c.b16 %v757, %v749
        %v878 = vpack.c.b16 %v758, %v750
        %v879 = vpack.c.b16 %v759, %v751
        %v880 = vpack.c.b16 %v760, %v752
        %v881 = vpack.c.b16 %v761, %v753
        %v882 = vpack.c.b16 %v762, %v754
        %v883 = vpack.c.b16 %v763, %v755
        %v884 = vpack.c.b16 %v764, %v756
        %v885 = vpack.c.b16 %v773, %v765
        %v886 = vpack.c.b16 %v774, %v766
        %v887 = vpack.c.b16 %v775, %v767
        %v888 = vpack.c.b16 %v776, %v768
        %v889 = vpack.c.b16 %v777, %v769
        %v890 = vpack.c.b16 %v778, %v770
        %v891 = vpack.c.b16 %v779, %v771
        %v892 = vpack.c.b16 %v780, %v772
        %v893 = vpack.c.b16 %v789, %v781
        %v894 = vpack.c.b16 %v790, %v782
        %v895 = vpack.c.b16 %v791, %v783
        %v896 = vpack.c.b16 %v792, %v784
        %v897 = vpack.c.b16 %v793, %v785
        %v898 = vpack.c.b16 %v794, %v786
        %v899 = vpack.c.b16 %v795, %v787
        %v900 = vpack.c.b16 %v796, %v788
        %v901 = vpack.c.b16 %v797, %v797
        %v902 = vpack.c.b16 %v798, %v798
        %v903 = vpack.c.b16 %v799, %v799
        %v904 = vpack.c.b16 %v800, %v800
        %v905 = vpack.c.b16 %v801, %v801
        %v906 = vpack.c.b16 %v802, %v802
        %v907 = vpack.c.b16 %v803, %v803
        %v908 = vpack.c.b16 %v804, %v804
        %vm1005 = vcmask 556032
        %v1007 = vsel %vm1005, %v503, 0
        %vm1009 = vcmask 1041408
        %v1011 = vsel %vm1009, %v901, 0
        %v1014 = vsel %vm1009, %v902, 0
        %v1017 = vsel %vm1009, %v903, 0
        %v1020 = vsel %vm1009, %v904, 0
        %v1023 = vsel %vm1009, %v905, 0
        %v1026 = vsel %vm1009, %v906, 0
        %v1029 = vsel %vm1009, %v907, 0
        %v1032 = vsel %vm1009, %v908, 0
        %1034 = vmatpush.bf16.msra.mxu0 %v861
        %1035 = vmatpush.bf16.msra.mxu0 %v853
        %1036 = vmatpush.bf16.msra.mxu0 %v845
        %1037 = vmatpush.bf16.msra.mxu0 %v837
        %1038 = vmatpush.bf16.msra.mxu0 %v829
        %1039 = vmatpush.bf16.msra.mxu0 %v821
        %1040 = vmatpush.bf16.msra.mxu0 %v813
        %1041 = vmatpush.bf16.msra.mxu0 %v805
        %1042 = vmatmul.bf16.gmra.mxu0 %v502
        %v1043 = vpop.f32.mrf.mxu0
        %v1044 = vadd.f32 %v497, %v1043
        %v1045 = vpop.f32.mrf.mxu0
        %1046 = vdwg.mxu0
        %1047 = vmatpush.bf16.msra.mxu0 0
        %1048 = vmatpush.bf16.msra.mxu0 0
        %1049 = vmatpush.bf16.msra.mxu0 0
        %1050 = vmatpush.bf16.msra.mxu0 %v1011
        %1051 = vmatpush.bf16.msra.mxu0 %v893
        %1052 = vmatpush.bf16.msra.mxu0 %v885
        %1053 = vmatpush.bf16.msra.mxu0 %v877
        %1054 = vmatpush.bf16.msra.mxu0 %v869
        %1055 = vmatmul.bf16.gmra.mxu0 %v1007
        %v1056 = vpop.f32.mrf.mxu0
        %v1057 = vadd.f32 %v1044, %v1056
        %v1058 = vpop.f32.mrf.mxu0
        %1059 = vdwg.mxu0
        %1060 = vmatpush.bf16.msra.mxu0 %v862
        %1061 = vmatpush.bf16.msra.mxu0 %v854
        %1062 = vmatpush.bf16.msra.mxu0 %v846
        %1063 = vmatpush.bf16.msra.mxu0 %v838
        %1064 = vmatpush.bf16.msra.mxu0 %v830
        %1065 = vmatpush.bf16.msra.mxu0 %v822
        %1066 = vmatpush.bf16.msra.mxu0 %v814
        %1067 = vmatpush.bf16.msra.mxu0 %v806
        %1068 = vmatmul.bf16.gmra.mxu0 %v502
        %v1069 = vpop.f32.mrf.mxu0
        %v1070 = vadd.f32 %v497, %v1069
        %v1071 = vpop.f32.mrf.mxu0
        %1072 = vdwg.mxu0
        %1073 = vmatpush.bf16.msra.mxu0 0
        %1074 = vmatpush.bf16.msra.mxu0 0
        %1075 = vmatpush.bf16.msra.mxu0 0
        %1076 = vmatpush.bf16.msra.mxu0 %v1014
        %1077 = vmatpush.bf16.msra.mxu0 %v894
        %1078 = vmatpush.bf16.msra.mxu0 %v886
        %1079 = vmatpush.bf16.msra.mxu0 %v878
        %1080 = vmatpush.bf16.msra.mxu0 %v870
        %1081 = vmatmul.bf16.gmra.mxu0 %v1007
        %v1082 = vpop.f32.mrf.mxu0
        %v1083 = vadd.f32 %v1070, %v1082
        %v1084 = vpop.f32.mrf.mxu0
        %1085 = vdwg.mxu0
        %1086 = vmatpush.bf16.msra.mxu0 %v863
        %1087 = vmatpush.bf16.msra.mxu0 %v855
        %1088 = vmatpush.bf16.msra.mxu0 %v847
        %1089 = vmatpush.bf16.msra.mxu0 %v839
        %1090 = vmatpush.bf16.msra.mxu0 %v831
        %1091 = vmatpush.bf16.msra.mxu0 %v823
        %1092 = vmatpush.bf16.msra.mxu0 %v815
        %1093 = vmatpush.bf16.msra.mxu0 %v807
        %1094 = vmatmul.bf16.gmra.mxu0 %v502
        %v1095 = vpop.f32.mrf.mxu0
        %v1096 = vadd.f32 %v497, %v1095
        %v1097 = vpop.f32.mrf.mxu0
        %1098 = vdwg.mxu0
        %1099 = vmatpush.bf16.msra.mxu0 0
        %1100 = vmatpush.bf16.msra.mxu0 0
        %1101 = vmatpush.bf16.msra.mxu0 0
        %1102 = vmatpush.bf16.msra.mxu0 %v1017
        %1103 = vmatpush.bf16.msra.mxu0 %v895
        %1104 = vmatpush.bf16.msra.mxu0 %v887
        %1105 = vmatpush.bf16.msra.mxu0 %v879
        %1106 = vmatpush.bf16.msra.mxu0 %v871
        %1107 = vmatmul.bf16.gmra.mxu0 %v1007
        %v1108 = vpop.f32.mrf.mxu0
        %v1109 = vadd.f32 %v1096, %v1108
        %v1110 = vpop.f32.mrf.mxu0
        %1111 = vdwg.mxu0
        %1112 = vmatpush.bf16.msra.mxu0 %v864
        %1113 = vmatpush.bf16.msra.mxu0 %v856
        %1114 = vmatpush.bf16.msra.mxu0 %v848
        %1115 = vmatpush.bf16.msra.mxu0 %v840
        %1116 = vmatpush.bf16.msra.mxu0 %v832
        %1117 = vmatpush.bf16.msra.mxu0 %v824
        %1118 = vmatpush.bf16.msra.mxu0 %v816
        %1119 = vmatpush.bf16.msra.mxu0 %v808
        %1120 = vmatmul.bf16.gmra.mxu0 %v502
        %v1121 = vpop.f32.mrf.mxu0
        %v1122 = vadd.f32 %v497, %v1121
        %v1123 = vpop.f32.mrf.mxu0
        %1124 = vdwg.mxu0
        %1125 = vmatpush.bf16.msra.mxu0 0
        %1126 = vmatpush.bf16.msra.mxu0 0
        %1127 = vmatpush.bf16.msra.mxu0 0
        %1128 = vmatpush.bf16.msra.mxu0 %v1020
        %1129 = vmatpush.bf16.msra.mxu0 %v896
        %1130 = vmatpush.bf16.msra.mxu0 %v888
        %1131 = vmatpush.bf16.msra.mxu0 %v880
        %1132 = vmatpush.bf16.msra.mxu0 %v872
        %1133 = vmatmul.bf16.gmra.mxu0 %v1007
        %v1134 = vpop.f32.mrf.mxu0
        %v1135 = vadd.f32 %v1122, %v1134
        %v1136 = vpop.f32.mrf.mxu0
        %1137 = vdwg.mxu0
        %1138 = vmatpush.bf16.msra.mxu0 %v865
        %1139 = vmatpush.bf16.msra.mxu0 %v857
        %1140 = vmatpush.bf16.msra.mxu0 %v849
        %1141 = vmatpush.bf16.msra.mxu0 %v841
        %1142 = vmatpush.bf16.msra.mxu0 %v833
        %1143 = vmatpush.bf16.msra.mxu0 %v825
        %1144 = vmatpush.bf16.msra.mxu0 %v817
        %1145 = vmatpush.bf16.msra.mxu0 %v809
        %1146 = vmatmul.bf16.gmra.mxu0 %v502
        %v1147 = vpop.f32.mrf.mxu0
        %v1148 = vadd.f32 %v497, %v1147
        %v1149 = vpop.f32.mrf.mxu0
        %1150 = vdwg.mxu0
        %1151 = vmatpush.bf16.msra.mxu0 0
        %1152 = vmatpush.bf16.msra.mxu0 0
        %1153 = vmatpush.bf16.msra.mxu0 0
        %1154 = vmatpush.bf16.msra.mxu0 %v1023
        %1155 = vmatpush.bf16.msra.mxu0 %v897
        %1156 = vmatpush.bf16.msra.mxu0 %v889
        %1157 = vmatpush.bf16.msra.mxu0 %v881
        %1158 = vmatpush.bf16.msra.mxu0 %v873
        %1159 = vmatmul.bf16.gmra.mxu0 %v1007
        %v1160 = vpop.f32.mrf.mxu0
        %v1161 = vadd.f32 %v1148, %v1160
        %v1162 = vpop.f32.mrf.mxu0
        %1163 = vdwg.mxu0
        %1164 = vmatpush.bf16.msra.mxu0 %v866
        %1165 = vmatpush.bf16.msra.mxu0 %v858
        %1166 = vmatpush.bf16.msra.mxu0 %v850
        %1167 = vmatpush.bf16.msra.mxu0 %v842
        %1168 = vmatpush.bf16.msra.mxu0 %v834
        %1169 = vmatpush.bf16.msra.mxu0 %v826
        %1170 = vmatpush.bf16.msra.mxu0 %v818
        %1171 = vmatpush.bf16.msra.mxu0 %v810
        %1172 = vmatmul.bf16.gmra.mxu0 %v502
        %v1173 = vpop.f32.mrf.mxu0
        %v1174 = vadd.f32 %v497, %v1173
        %v1175 = vpop.f32.mrf.mxu0
        %1176 = vdwg.mxu0
        %1177 = vmatpush.bf16.msra.mxu0 0
        %1178 = vmatpush.bf16.msra.mxu0 0
        %1179 = vmatpush.bf16.msra.mxu0 0
        %1180 = vmatpush.bf16.msra.mxu0 %v1026
        %1181 = vmatpush.bf16.msra.mxu0 %v898
        %1182 = vmatpush.bf16.msra.mxu0 %v890
        %1183 = vmatpush.bf16.msra.mxu0 %v882
        %1184 = vmatpush.bf16.msra.mxu0 %v874
        %1185 = vmatmul.bf16.gmra.mxu0 %v1007
        %v1186 = vpop.f32.mrf.mxu0
        %v1187 = vadd.f32 %v1174, %v1186
        %v1188 = vpop.f32.mrf.mxu0
        %1189 = vdwg.mxu0
        %1190 = vmatpush.bf16.msra.mxu0 %v867
        %1191 = vmatpush.bf16.msra.mxu0 %v859
        %1192 = vmatpush.bf16.msra.mxu0 %v851
        %1193 = vmatpush.bf16.msra.mxu0 %v843
        %1194 = vmatpush.bf16.msra.mxu0 %v835
        %1195 = vmatpush.bf16.msra.mxu0 %v827
        %1196 = vmatpush.bf16.msra.mxu0 %v819
        %1197 = vmatpush.bf16.msra.mxu0 %v811
        %1198 = vmatmul.bf16.gmra.mxu0 %v502
        %v1199 = vpop.f32.mrf.mxu0
        %v1200 = vadd.f32 %v497, %v1199
        %v1201 = vpop.f32.mrf.mxu0
        %1202 = vdwg.mxu0
        %1203 = vmatpush.bf16.msra.mxu0 0
        %1204 = vmatpush.bf16.msra.mxu0 0
        %1205 = vmatpush.bf16.msra.mxu0 0
        %1206 = vmatpush.bf16.msra.mxu0 %v1029
        %1207 = vmatpush.bf16.msra.mxu0 %v899
        %1208 = vmatpush.bf16.msra.mxu0 %v891
        %1209 = vmatpush.bf16.msra.mxu0 %v883
        %1210 = vmatpush.bf16.msra.mxu0 %v875
        %1211 = vmatmul.bf16.gmra.mxu0 %v1007
        %v1212 = vpop.f32.mrf.mxu0
        %v1213 = vadd.f32 %v1200, %v1212
        %v1214 = vpop.f32.mrf.mxu0
        %1215 = vdwg.mxu0
        %1216 = vmatpush.bf16.msra.mxu0 %v868
        %1217 = vmatpush.bf16.msra.mxu0 %v860
        %1218 = vmatpush.bf16.msra.mxu0 %v852
        %1219 = vmatpush.bf16.msra.mxu0 %v844
        %1220 = vmatpush.bf16.msra.mxu0 %v836
        %1221 = vmatpush.bf16.msra.mxu0 %v828
        %1222 = vmatpush.bf16.msra.mxu0 %v820
        %1223 = vmatpush.bf16.msra.mxu0 %v812
        %1224 = vmatmul.bf16.gmra.mxu0 %v502
        %v1225 = vpop.f32.mrf.mxu0
        %v1226 = vadd.f32 %v497, %v1225
        %v1227 = vpop.f32.mrf.mxu0
        %1228 = vdwg.mxu0
        %1229 = vmatpush.bf16.msra.mxu0 0
        %1230 = vmatpush.bf16.msra.mxu0 0
        %1231 = vmatpush.bf16.msra.mxu0 0
        %1232 = vmatpush.bf16.msra.mxu0 %v1032
        %1233 = vmatpush.bf16.msra.mxu0 %v900
        %1234 = vmatpush.bf16.msra.mxu0 %v892
        %1235 = vmatpush.bf16.msra.mxu0 %v884
        %1236 = vmatpush.bf16.msra.mxu0 %v876
        %1237 = vmatmul.bf16.gmra.mxu0 %v1007
        %v1238 = vpop.f32.mrf.mxu0
        %v1239 = vadd.f32 %v1226, %v1238
        %v1240 = vpop.f32.mrf.mxu0
        %1241 = vdwg.mxu0
        %1242 = vst [vmem:[%s389] sm:$0xff] %v1057
        %1243 = vst [vmem:[%s389 + $0x8] sm:$0xff] %v1083
        %1244 = vst [vmem:[%s389 + $0x10] sm:$0xff] %v1109
        %1245 = vst [vmem:[%s389 + $0x18] sm:$0xff] %v1135
        %1246 = vst [vmem:[%s389 + $0x20] sm:$0xff] %v1161
        %1247 = vst [vmem:[%s389 + $0x28] sm:$0xff] %v1187
        %1248 = vst [vmem:[%s389 + $0x30] sm:$0xff] %v1213
        %1249 = vst [vmem:[%s389 + $0x38] sm:$0xff] %v1239
        %s1250 = smul.u32 8, %s14
        %p1251 = scmp.lt.s32.totalorder %s1250, 15
        %s1252 = scalar_select %p1251, %s1250, 15
        %s1253 = smul.addr %s1252, 8
        %s1254 = scalar_lea.vmem %s3, %s1253
        // Predicated region
        $region56: #{generator_forward.33} parent=50 // pred_check
          %p1255 = pneg %p100
        $region57: #{generator_forward.33} parent=50 // pred_check_branch
          %1257 = sbr.rel (%p1255) target = $region59
        $region58: #{generator_forward.33} parent=50 // pred_region
          %s1258 = smul.u32 8, %s14
        $region59: #{generator_forward.33} parent=50 // pred_fallthru
          _
      $region51: #{generator_forward.33} parent=5 // pred_fallthru
        _
      %p1259 = scmp.le.s32.totalorder 2, %s9
      // Predicated region
      $region60: #{generator_forward.33} parent=5 // pred_check
        %p1260 = pneg %p1259
      $region61: #{generator_forward.33} parent=5 // pred_check_branch
        %1262 = sbr.rel (%p1260) target = $region63
      $region62: #{generator_forward.33} parent=5 // pred_region
        %s1263 = ssub.s32 %s9, 2
        // Predicated region
        $region64: #{generator_forward.33} parent=62 // pred_check
          %p1264 = pneg %p106
        $region65: #{generator_forward.33} parent=62 // pred_check_branch
          %1266 = sbr.rel (%p1264) target = $region67
        $region66: #{generator_forward.33} parent=62 // pred_region
          %s1267 = smul.u32 8, %s15
          %p1268 = scmp.lt.s32.totalorder %s1267, 15
          %s1269 = scalar_select %p1268, %s1267, 15
          %s1270 = smul.addr %s1269, 8
          %s1271 = scalar_lea.vmem %s3, %s1270
        $region67: #{generator_forward.33} parent=62 // pred_fallthru
          _
      $region63: #{generator_forward.33} parent=5 // pred_fallthru
        _
    $region6: #{generator_forward.33} parent=1 // loop_footer
      %s13 = sadd.s32 1, %s9
    $region7: #{generator_forward.33} parent=1 // loop_footer_branch
      %8 = sbr.rel target = $region3
    $region8: #{generator_forward.33} parent=1 // loop_exit
      _

</llo_original>
